<compile_context>
chip_gen: v7x
topology: tpu7x:2x2x1
jax: 0.10.0
libtpu: 0.0.40
codegen_flags: <defaults>
</compile_context>

<pallas_src>
import functools

import jax
import jax.numpy as jnp
from jax.experimental import pallas as pl
from jax.experimental.pallas import tpu as pltpu

EPS = 1e-5


def _round_up(x, m):
    return (x + m - 1) // m * m


# -----------------------------------------------------------------------------
# Kernel 1: per-channel batch statistics (sum, sum of squares).
#   x_ref:  (1, C, P) padded-flat slab for one batch element (halo is exact 0,
#           so it contributes nothing to the sums).
#   s_ref / sq_ref: (C, 1) accumulators, resident across the batch grid axis.
# -----------------------------------------------------------------------------
def bn_stats_kernel(x_ref, s_ref, sq_ref):
    @pl.when(pl.program_id(0) == 0)
    def _():
        s_ref[...] = jnp.zeros_like(s_ref)
        sq_ref[...] = jnp.zeros_like(sq_ref)

    x = x_ref[0]                                       # (C, P)
    s_ref[...] += jnp.sum(x, axis=1, keepdims=True)
    sq_ref[...] += jnp.sum(x * x, axis=1, keepdims=True)


# -----------------------------------------------------------------------------
# Kernel 2: fused (BatchNorm scale/shift) + ReLU + Conv3d (+ bias, + residual).
#   x_ref:    (1, Cin, P)   padded-flat activations (halo voxels are zero)
#   ss_ref:   (Cin, 2)      [:, 0] = folded BN scale, [:, 1] = folded BN shift
#   w_ref:    (Cout, K)     K = kD*kH*kW*Cin, im2col-flattened weights
#   b_ref:    (Cout, 1)     conv bias
#   mask_ref: (1, P)        1.0 at interior voxels, 0.0 on the padding halo
#   res_ref:  (1, Cout, P)  residual (only in the has_residual variant)
#   o_ref:    (1, Cout, P)  lane-dense, channels-first output
#   ext_ref:  (Cin, Pext)   zero-haloed working buffer (scratch)
#   col_ref:  (K, P)        im2col matrix (scratch)
# -----------------------------------------------------------------------------
def fused_bn_relu_conv_kernel(*refs, kdims, pad, Wp, HpWp, P, marginL,
                              has_residual):
    if has_residual:
        x_ref, ss_ref, w_ref, b_ref, mask_ref, res_ref, o_ref, ext_ref, col_ref = refs
    else:
        x_ref, ss_ref, w_ref, b_ref, mask_ref, o_ref, ext_ref, col_ref = refs
        res_ref = None
    kD, kH, kW = kdims
    Cin = x_ref.shape[1]

    scale = ss_ref[:, 0:1]                             # (Cin, 1)
    shift = ss_ref[:, 1:2]                             # (Cin, 1)
    mask = mask_ref[...]                               # (1, P)

    # Fused BatchNorm (folded per-channel scale/shift) + ReLU.  The mask forces
    # the padding halo back to exact zero (relu(shift) would otherwise leak in).
    a = jnp.maximum(x_ref[0] * scale + shift, 0.0) * mask

    # Zero-haloed working buffer in padded-flat coordinates (lane axis = voxel).
    ext_ref[...] = jnp.zeros_like(ext_ref)
    ext_ref[:, marginL:marginL + P] = a.astype(ext_ref.dtype)

    # im2col: every (kd, kh, kw) tap is a *static lane shift* in padded-flat
    # coordinates.  Stacking taps x Cin on sublanes folds the whole 3-D kernel
    # into ONE MXU contraction of width K = kD*kH*kW*Cin (vs 27 tiny dots +
    # VPU adds before).
    t = 0
    for kd in range(kD):
        for kh in range(kH):
            for kw in range(kW):
                off = marginL + (kd - pad) * HpWp + (kh - pad) * Wp + (kw - pad)
                col_ref[t * Cin:(t + 1) * Cin, :] = ext_ref[:, off:off + P]
                t += 1

    # Single matmul: (Cout, K) x (K, P) -> (Cout, P); voxels are lane-dense.
    acc = jnp.dot(w_ref[...], col_ref[...], preferred_element_type=jnp.float32)
    acc = acc + b_ref[...]                              # conv bias
    if has_residual:
        acc = acc + res_ref[0]                          # fused residual add
    # Mask the halo so the stored activation stays exactly zero there (needed
    # by the next stage's statistics / padding semantics).
    o_ref[0] = (acc * mask).astype(o_ref.dtype)


# -----------------------------------------------------------------------------
# Wrappers
# -----------------------------------------------------------------------------
def _bn_scale_shift(x_pf, gamma, beta, valid_count):
    """Training-mode batch stats over the padded-flat slab -> folded scale/shift."""
    N, C, P = x_pf.shape
    s, sq = pl.pallas_call(
        bn_stats_kernel,
        out_shape=(jax.ShapeDtypeStruct((C, 1), jnp.float32),
                   jax.ShapeDtypeStruct((C, 1), jnp.float32)),
        grid=(N,),
        in_specs=[pl.BlockSpec((1, C, P), lambda n: (n, 0, 0))],
        out_specs=[pl.BlockSpec((C, 1), lambda n: (0, 0)),
                   pl.BlockSpec((C, 1), lambda n: (0, 0))],
        compiler_params=pltpu.CompilerParams(dimension_semantics=("arbitrary",)),
    )(x_pf)
    mean = s[:, 0] / valid_count
    # Single-pass variance; fine for well-scaled activations (see review note).
    var = sq[:, 0] / valid_count - mean * mean
    scale = gamma * jax.lax.rsqrt(var + EPS)
    shift = beta - mean * scale
    return jnp.stack([scale, shift], axis=1)            # (C, 2)


def _fused_bn_relu_conv(x_pf, ss, w2d, bias, mask, geom, residual_pf=None,
                        matmul_dtype=jnp.float32):
    N, Cin, P = x_pf.shape
    Cout, K = w2d.shape
    kD, kH, kW, pad, Wp, HpWp, marginL, Pext = geom

    kern = functools.partial(
        fused_bn_relu_conv_kernel, kdims=(kD, kH, kW), pad=pad, Wp=Wp,
        HpWp=HpWp, P=P, marginL=marginL, has_residual=residual_pf is not None)

    in_specs = [
        pl.BlockSpec((1, Cin, P), lambda n: (n, 0, 0)),
        pl.BlockSpec((Cin, 2), lambda n: (0, 0)),
        pl.BlockSpec((Cout, K), lambda n: (0, 0)),
        pl.BlockSpec((Cout, 1), lambda n: (0, 0)),
        pl.BlockSpec((1, P), lambda n: (0, 0)),
    ]
    args = [x_pf, ss, w2d.astype(matmul_dtype), bias, mask]
    if residual_pf is not None:
        in_specs.append(pl.BlockSpec((1, Cout, P), lambda n: (n, 0, 0)))
        args.append(residual_pf)

    return pl.pallas_call(
        kern,
        out_shape=jax.ShapeDtypeStruct((N, Cout, P), jnp.float32),
        grid=(N,),
        in_specs=in_specs,
        out_specs=pl.BlockSpec((1, Cout, P), lambda n: (n, 0, 0)),
        scratch_shapes=[pltpu.VMEM((Cin, Pext), matmul_dtype),
                        pltpu.VMEM((K, P), matmul_dtype)],
        compiler_params=pltpu.CompilerParams(dimension_semantics=("parallel",)),
    )(*args)


def residual_block(x, params, stride, padding, matmul_dtype=jnp.float32):
    """x: (N, C, D, H, W) f32; conv weights in PyTorch (Cout, Cin, kD, kH, kW)."""
    (g1, be1, w1, b1), (g2, be2, w2, b2) = params
    N, Cin, D, H, W = x.shape
    Cout, _, kD, kH, kW = w1.shape
    # The residual add (z + y) requires a shape-preserving ("same") conv.
    # TODO(synk): general stride>1 BnReluConv path is not implemented here.
    assert stride == 1 and 2 * padding == kD - 1 == kH - 1 == kW - 1, \
        "fused ResidualBlock kernel assumes stride=1, padding=(k-1)//2"

    pad = padding
    Dp, Hp, Wp = D + 2 * pad, H + 2 * pad, W + 2 * pad
    HpWp = Hp * Wp
    P = Dp * HpWp
    margin = pad * HpWp + pad * Wp + pad        # max |tap offset| in flat coords
    marginL = _round_up(margin, 128)            # lane-aligned left halo
    Pext = _round_up(marginL + P + margin, 128)
    geom = (kD, kH, kW, pad, Wp, HpWp, marginL, Pext)
    valid_count = float(N * D * H * W)

    # --- block entry: single pad + flatten into the internal layout ---------
    x_pf = jnp.pad(x, ((0, 0), (0, 0), (pad, pad), (pad, pad), (pad, pad)))
    x_pf = x_pf.reshape(N, Cin, P)

    # Interior-voxel mask in padded-flat coordinates (tiny, built once).
    dm = (jnp.arange(Dp) >= pad) & (jnp.arange(Dp) < pad + D)
    hm = (jnp.arange(Hp) >= pad) & (jnp.arange(Hp) < pad + H)
    wm = (jnp.arange(Wp) >= pad) & (jnp.arange(Wp) < pad + W)
    mask = (dm[:, None, None] & hm[None, :, None] & wm[None, None, :])
    mask = mask.reshape(1, P).astype(jnp.float32)

    def w2d_of(w):   # (Cout, Cin, kD, kH, kW) -> (Cout, kD*kH*kW*Cin)
        return jnp.transpose(w, (0, 2, 3, 4, 1)).reshape(w.shape[0], -1)

    # --- bn_relu_conv1 -------------------------------------------------------
    ss1 = _bn_scale_shift(x_pf, g1, be1, valid_count)
    y_pf = _fused_bn_relu_conv(x_pf, ss1, w2d_of(w1), b1.reshape(-1, 1), mask,
                               geom, matmul_dtype=matmul_dtype)

    # --- bn_relu_conv2 + fused residual add ---------------------------------
    ss2 = _bn_scale_shift(y_pf, g2, be2, valid_count)
    z_pf = _fused_bn_relu_conv(y_pf, ss2, w2d_of(w2), b2.reshape(-1, 1), mask,
                               geom, residual_pf=y_pf, matmul_dtype=matmul_dtype)

    # --- block exit: single slice back to NCDHW ------------------------------
    z = z_pf.reshape(N, Cout, Dp, Hp, Wp)[:, :, pad:pad + D, pad:pad + H,
                                          pad:pad + W]
    return z


# -----------------------------------------------------------------------------
# Pure-JAX reference (for verification)
# -----------------------------------------------------------------------------
def ref_bn_relu_conv(x, gamma, beta, w, b, stride, padding):
    mean = x.mean(axis=(0, 2, 3, 4), keepdims=True)
    var = jnp.square(x - mean).mean(axis=(0, 2, 3, 4), keepdims=True)
    y = (x - mean) * jax.lax.rsqrt(var + EPS)
    y = y * gamma.reshape(1, -1, 1, 1, 1) + beta.reshape(1, -1, 1, 1, 1)
    y = jnp.maximum(y, 0.0)
    z = jax.lax.conv_general_dilated(
        y, w, (stride,) * 3, [(padding, padding)] * 3,
        dimension_numbers=("NCDHW", "OIDHW", "NCDHW"))
    return z + b.reshape(1, -1, 1, 1, 1)


def ref_residual_block(x, params, stride, padding):
    (g1, be1, w1, b1), (g2, be2, w2, b2) = params
    y = ref_bn_relu_conv(x, g1, be1, w1, b1, stride, padding)
    z = ref_bn_relu_conv(y, g2, be2, w2, b2, stride, padding)
    return z + y


# -----------------------------------------------------------------------------
if __name__ == "__main__":
    # ResidualBlock(in_channels=4, out_channels=4, stride=1, kernel_size=3,
    #               padding=1) on a (2, 4, 8, 8, 8) input.
    N, Cin, Cout, D, H, W = 2, 4, 4, 8, 8, 8
    k, stride, padding = 3, 1, 1

    key = jax.random.PRNGKey(0)
    kx, kw1, kb1, kw2, kb2 = jax.random.split(key, 5)

    x = jax.random.normal(kx, (N, Cin, D, H, W), jnp.float32)

    # BatchNorm affine params at init: gamma=1, beta=0
    g1 = jnp.ones((Cin,), jnp.float32)
    be1 = jnp.zeros((Cin,), jnp.float32)
    g2 = jnp.ones((Cout,), jnp.float32)
    be2 = jnp.zeros((Cout,), jnp.float32)

    # Conv weights in PyTorch (Cout, Cin, kD, kH, kW) layout.
    w1 = 0.1 * jax.random.normal(kw1, (Cout, Cin, k, k, k), jnp.float32)
    b1 = 0.1 * jax.random.normal(kb1, (Cout,), jnp.float32)
    w2 = 0.1 * jax.random.normal(kw2, (Cout, Cout, k, k, k), jnp.float32)
    b2 = 0.1 * jax.random.normal(kb2, (Cout,), jnp.float32)

    params = ((g1, be1, w1, b1), (g2, be2, w2, b2))

    run_f32 = jax.jit(functools.partial(residual_block, stride=stride,
                                        padding=padding))
    out = jax.block_until_ready(run_f32(x, params))

    ref = ref_residual_block(x, params, stride, padding)
    assert out.shape == (N, Cout, D, H, W), out.shape
    assert jnp.allclose(out, ref, atol=1e-4, rtol=1e-4), \
        float(jnp.abs(out - ref).max())

    # bf16 MXU-operand path (recommended on v6e/v7x); looser tolerance.
    run_bf16 = jax.jit(functools.partial(residual_block, stride=stride,
                                         padding=padding,
                                         matmul_dtype=jnp.bfloat16))
    out_bf16 = jax.block_until_ready(run_bf16(x, params))
    assert jnp.allclose(out_bf16, ref, atol=5e-2, rtol=5e-2), \
        float(jnp.abs(out_bf16 - ref).max())

    print("KERNEL_OK")
</pallas_src>

<mosaic_0001>
module attributes {stable_mosaic.version = 11 : i64} {
  func.func @bn_stats_kernel(%arg0: i32, %arg1: memref<1x4x1000xf32, #tpu.memory_space<vmem>>, %arg2: memref<4x1xf32, #tpu.memory_space<vmem>>, %arg3: memref<4x1xf32, #tpu.memory_space<vmem>>) attributes {dimension_semantics = [#tpu.dimension_semantics<arbitrary>], iteration_bounds = array<i64: 2>, scalar_prefetch = 0 : i64, scratch_operands = 0 : i64, tpu.core_type = #tpu.core_type<tc>, window_params = [{transform_indices = @transform_0, window_bounds = array<i64: 1, 4, 1000>}, {pipeline_mode = #tpu.pipeline_mode<synchronous>, transform_indices = @transform_1, window_bounds = array<i64: 4, 1>}, {pipeline_mode = #tpu.pipeline_mode<synchronous>, transform_indices = @transform_2, window_bounds = array<i64: 4, 1>}]} {
    %c0_i32 = arith.constant 0 : i32
    %0 = arith.cmpi eq, %arg0, %c0_i32 : i32
    %1 = arith.extui %0 : i1 to i32
    %c0_i32_0 = arith.constant 0 : i32
    %2 = arith.cmpi ne, %1, %c0_i32_0 : i32
    scf.if %2 {
      %cst_12 = arith.constant 0.000000e+00 : f32
      %16 = vector.broadcast %cst_12 : f32 to vector<4x1xf32>
      %c0_13 = arith.constant 0 : index
      %c0_14 = arith.constant 0 : index
      %17 = vector.load %arg2[%c0_13, %c0_14] : memref<4x1xf32, #tpu.memory_space<vmem>>, vector<4x1xf32>
      tpu.vector_store %arg2[%c0_13, %c0_14], %16 {strides = array<i32>} : memref<4x1xf32, #tpu.memory_space<vmem>>, vector<4x1xf32>,
      %cst_15 = arith.constant 0.000000e+00 : f32
      %18 = vector.broadcast %cst_15 : f32 to vector<4x1xf32>
      %c0_16 = arith.constant 0 : index
      %c0_17 = arith.constant 0 : index
      %19 = vector.load %arg3[%c0_16, %c0_17] : memref<4x1xf32, #tpu.memory_space<vmem>>, vector<4x1xf32>
      tpu.vector_store %arg3[%c0_16, %c0_17], %18 {strides = array<i32>} : memref<4x1xf32, #tpu.memory_space<vmem>>, vector<4x1xf32>,
    } else {
    }
    %c0 = arith.constant 0 : index
    %c0_1 = arith.constant 0 : index
    %c0_2 = arith.constant 0 : index
    %3 = vector.load %arg1[%c0, %c0_1, %c0_2] : memref<1x4x1000xf32, #tpu.memory_space<vmem>>, vector<1x4x1000xf32>
    %4 = vector.shape_cast %3 : vector<1x4x1000xf32> to vector<4x1000xf32>
    %c0_3 = arith.constant 0 : index
    %c0_4 = arith.constant 0 : index
    %5 = vector.load %arg2[%c0_3, %c0_4] : memref<4x1xf32, #tpu.memory_space<vmem>>, vector<4x1xf32>
    %cst = arith.constant dense<0.000000e+00> : vector<4xf32>
    %6 = vector.multi_reduction <add>, %4, %cst [1] : vector<4x1000xf32> to vector<4xf32>
    %7 = vector.shape_cast %6 : vector<4xf32> to vector<4x1xf32>
    %8 = arith.addf %5, %7 : vector<4x1xf32>
    %c0_5 = arith.constant 0 : index
    %c0_6 = arith.constant 0 : index
    %9 = vector.load %arg2[%c0_5, %c0_6] : memref<4x1xf32, #tpu.memory_space<vmem>>, vector<4x1xf32>
    tpu.vector_store %arg2[%c0_5, %c0_6], %8 {strides = array<i32>} : memref<4x1xf32, #tpu.memory_space<vmem>>, vector<4x1xf32>,
    %c0_7 = arith.constant 0 : index
    %c0_8 = arith.constant 0 : index
    %10 = vector.load %arg3[%c0_7, %c0_8] : memref<4x1xf32, #tpu.memory_space<vmem>>, vector<4x1xf32>
    %11 = arith.mulf %4, %4 : vector<4x1000xf32>
    %cst_9 = arith.constant dense<0.000000e+00> : vector<4xf32>
    %12 = vector.multi_reduction <add>, %11, %cst_9 [1] : vector<4x1000xf32> to vector<4xf32>
    %13 = vector.shape_cast %12 : vector<4xf32> to vector<4x1xf32>
    %14 = arith.addf %10, %13 : vector<4x1xf32>
    %c0_10 = arith.constant 0 : index
    %c0_11 = arith.constant 0 : index
    %15 = vector.load %arg3[%c0_10, %c0_11] : memref<4x1xf32, #tpu.memory_space<vmem>>, vector<4x1xf32>
    tpu.vector_store %arg3[%c0_10, %c0_11], %14 {strides = array<i32>} : memref<4x1xf32, #tpu.memory_space<vmem>>, vector<4x1xf32>,
    return
  }
  func.func @transform_0(%arg0: i32) -> (i32, i32, i32) {
    %c0_i32 = arith.constant 0 : i32
    %c0_i32_0 = arith.constant 0 : i32
    %c0_i32_1 = arith.constant 0 : i32
    return %arg0, %c0_i32, %c0_i32_0 : i32, i32, i32
  }
  func.func @transform_1(%arg0: i32) -> (i32, i32) {
    %c0_i32 = arith.constant 0 : i32
    %c0_i32_0 = arith.constant 0 : i32
    %c0_i32_1 = arith.constant 0 : i32
    return %c0_i32, %c0_i32_0 : i32, i32
  }
  func.func @transform_2(%arg0: i32) -> (i32, i32) {
    %c0_i32 = arith.constant 0 : i32
    %c0_i32_0 = arith.constant 0 : i32
    %c0_i32_1 = arith.constant 0 : i32
    return %c0_i32, %c0_i32_0 : i32, i32
  }
}

module attributes {stable_mosaic.version = 11 : i64} {
  func.func @fused_bn_relu_conv_kernel(%arg0: i32, %arg1: memref<1x4x1000xf32, #tpu.memory_space<vmem>>, %arg2: memref<4x2xf32, #tpu.memory_space<vmem>>, %arg3: memref<4x108xf32, #tpu.memory_space<vmem>>, %arg4: memref<4x1xf32, #tpu.memory_space<vmem>>, %arg5: memref<1x1000xf32, #tpu.memory_space<vmem>>, %arg6: memref<1x4x1000xf32, #tpu.memory_space<vmem>>, %arg7: memref<4x1280xf32, #tpu.memory_space<vmem>>, %arg8: memref<108x1000xf32, #tpu.memory_space<vmem>>) attributes {dimension_semantics = [#tpu.dimension_semantics<parallel>], iteration_bounds = array<i64: 2>, scalar_prefetch = 0 : i64, scratch_operands = 2 : i64, tpu.core_type = #tpu.core_type<tc>, window_params = [{transform_indices = @transform_0, window_bounds = array<i64: 1, 4, 1000>}, {pipeline_mode = #tpu.pipeline_mode<synchronous>, transform_indices = @transform_1, window_bounds = array<i64: 4, 2>}, {pipeline_mode = #tpu.pipeline_mode<synchronous>, transform_indices = @transform_2, window_bounds = array<i64: 4, 108>}, {pipeline_mode = #tpu.pipeline_mode<synchronous>, transform_indices = @transform_3, window_bounds = array<i64: 4, 1>}, {pipeline_mode = #tpu.pipeline_mode<synchronous>, transform_indices = @transform_4, window_bounds = array<i64: 1, 1000>}, {transform_indices = @transform_5, window_bounds = array<i64: 1, 4, 1000>}]} {
    %c0 = arith.constant 0 : index
    %c0_0 = arith.constant 0 : index
    %0 = vector.load %arg2[%c0, %c0_0] : memref<4x2xf32, #tpu.memory_space<vmem>>, vector<4x1xf32>
    %c0_1 = arith.constant 0 : index
    %c1 = arith.constant 1 : index
    %1 = vector.load %arg2[%c0_1, %c1] : memref<4x2xf32, #tpu.memory_space<vmem>>, vector<4x1xf32>
    %c0_2 = arith.constant 0 : index
    %c0_3 = arith.constant 0 : index
    %2 = vector.load %arg5[%c0_2, %c0_3] : memref<1x1000xf32, #tpu.memory_space<vmem>>, vector<1x1000xf32>
    %c0_4 = arith.constant 0 : index
    %c0_5 = arith.constant 0 : index
    %c0_6 = arith.constant 0 : index
    %3 = vector.load %arg1[%c0_4, %c0_5, %c0_6] : memref<1x4x1000xf32, #tpu.memory_space<vmem>>, vector<1x4x1000xf32>
    %4 = vector.shape_cast %3 : vector<1x4x1000xf32> to vector<4x1000xf32>
    %5 = vector.broadcast %0 : vector<4x1xf32> to vector<4x1000xf32>
    %6 = arith.mulf %4, %5 : vector<4x1000xf32>
    %7 = vector.broadcast %1 : vector<4x1xf32> to vector<4x1000xf32>
    %8 = arith.addf %6, %7 : vector<4x1000xf32>
    %cst = arith.constant 0.000000e+00 : f32
    %9 = vector.broadcast %cst : f32 to vector<4x1000xf32>
    %10 = arith.maximumf %8, %9 : vector<4x1000xf32>
    %11 = vector.broadcast %2 : vector<1x1000xf32> to vector<4x1000xf32>
    %12 = arith.mulf %10, %11 : vector<4x1000xf32>
    %cst_7 = arith.constant 0.000000e+00 : f32
    %13 = vector.broadcast %cst_7 : f32 to vector<4x1280xf32>
    %c0_8 = arith.constant 0 : index
    %c0_9 = arith.constant 0 : index
    %14 = vector.load %arg7[%c0_8, %c0_9] : memref<4x1280xf32, #tpu.memory_space<vmem>>, vector<4x1280xf32>
    tpu.vector_store %arg7[%c0_8, %c0_9], %13 {strides = array<i32>} : memref<4x1280xf32, #tpu.memory_space<vmem>>, vector<4x1280xf32>,
    %c0_10 = arith.constant 0 : index
    %c128 = arith.constant 128 : index
    %15 = vector.load %arg7[%c0_10, %c128] : memref<4x1280xf32, #tpu.memory_space<vmem>>, vector<4x1000xf32>
    tpu.vector_store %arg7[%c0_10, %c128], %12 {strides = array<i32>} : memref<4x1280xf32, #tpu.memory_space<vmem>>, vector<4x1000xf32>,
    %c0_11 = arith.constant 0 : index
    %c17 = arith.constant 17 : index
    %16 = vector.load %arg7[%c0_11, %c17] : memref<4x1280xf32, #tpu.memory_space<vmem>>, vector<4x1000xf32>
    %c0_12 = arith.constant 0 : index
    %c0_13 = arith.constant 0 : index
    %17 = vector.load %arg8[%c0_12, %c0_13] : memref<108x1000xf32, #tpu.memory_space<vmem>>, vector<4x1000xf32>
    tpu.vector_store %arg8[%c0_12, %c0_13], %16 {strides = array<i32>} : memref<108x1000xf32, #tpu.memory_space<vmem>>, vector<4x1000xf32>,
    %c0_14 = arith.constant 0 : index
    %c18 = arith.constant 18 : index
    %18 = vector.load %arg7[%c0_14, %c18] : memref<4x1280xf32, #tpu.memory_space<vmem>>, vector<4x1000xf32>
    %c4 = arith.constant 4 : index
    %c0_15 = arith.constant 0 : index
    %19 = vector.load %arg8[%c4, %c0_15] : memref<108x1000xf32, #tpu.memory_space<vmem>>, vector<4x1000xf32>
    tpu.vector_store %arg8[%c4, %c0_15], %18 {strides = array<i32>} : memref<108x1000xf32, #tpu.memory_space<vmem>>, vector<4x1000xf32>,
    %c0_16 = arith.constant 0 : index
    %c19 = arith.constant 19 : index
    %20 = vector.load %arg7[%c0_16, %c19] : memref<4x1280xf32, #tpu.memory_space<vmem>>, vector<4x1000xf32>
    %c8 = arith.constant 8 : index
    %c0_17 = arith.constant 0 : index
    %21 = vector.load %arg8[%c8, %c0_17] : memref<108x1000xf32, #tpu.memory_space<vmem>>, vector<4x1000xf32>
    tpu.vector_store %arg8[%c8, %c0_17], %20 {strides = array<i32>} : memref<108x1000xf32, #tpu.memory_space<vmem>>, vector<4x1000xf32>,
    %c0_18 = arith.constant 0 : index
    %c27 = arith.constant 27 : index
    %22 = vector.load %arg7[%c0_18, %c27] : memref<4x1280xf32, #tpu.memory_space<vmem>>, vector<4x1000xf32>
    %c12 = arith.constant 12 : index
    %c0_19 = arith.constant 0 : index
    %23 = vector.load %arg8[%c12, %c0_19] : memref<108x1000xf32, #tpu.memory_space<vmem>>, vector<4x1000xf32>
    tpu.vector_store %arg8[%c12, %c0_19], %22 {strides = array<i32>} : memref<108x1000xf32, #tpu.memory_space<vmem>>, vector<4x1000xf32>,
    %c0_20 = arith.constant 0 : index
    %c28 = arith.constant 28 : index
    %24 = vector.load %arg7[%c0_20, %c28] : memref<4x1280xf32, #tpu.memory_space<vmem>>, vector<4x1000xf32>
    %c16 = arith.constant 16 : index
    %c0_21 = arith.constant 0 : index
    %25 = vector.load %arg8[%c16, %c0_21] : memref<108x1000xf32, #tpu.memory_space<vmem>>, vector<4x1000xf32>
    tpu.vector_store %arg8[%c16, %c0_21], %24 {strides = array<i32>} : memref<108x1000xf32, #tpu.memory_space<vmem>>, vector<4x1000xf32>,
    %c0_22 = arith.constant 0 : index
    %c29 = arith.constant 29 : index
    %26 = vector.load %arg7[%c0_22, %c29] : memref<4x1280xf32, #tpu.memory_space<vmem>>, vector<4x1000xf32>
    %c20 = arith.constant 20 : index
    %c0_23 = arith.constant 0 : index
    %27 = vector.load %arg8[%c20, %c0_23] : memref<108x1000xf32, #tpu.memory_space<vmem>>, vector<4x1000xf32>
    tpu.vector_store %arg8[%c20, %c0_23], %26 {strides = array<i32>} : memref<108x1000xf32, #tpu.memory_space<vmem>>, vector<4x1000xf32>,
    %c0_24 = arith.constant 0 : index
    %c37 = arith.constant 37 : index
    %28 = vector.load %arg7[%c0_24, %c37] : memref<4x1280xf32, #tpu.memory_space<vmem>>, vector<4x1000xf32>
    %c24 = arith.constant 24 : index
    %c0_25 = arith.constant 0 : index
    %29 = vector.load %arg8[%c24, %c0_25] : memref<108x1000xf32, #tpu.memory_space<vmem>>, vector<4x1000xf32>
    tpu.vector_store %arg8[%c24, %c0_25], %28 {strides = array<i32>} : memref<108x1000xf32, #tpu.memory_space<vmem>>, vector<4x1000xf32>,
    %c0_26 = arith.constant 0 : index
    %c38 = arith.constant 38 : index
    %30 = vector.load %arg7[%c0_26, %c38] : memref<4x1280xf32, #tpu.memory_space<vmem>>, vector<4x1000xf32>
    %c28_27 = arith.constant 28 : index
    %c0_28 = arith.constant 0 : index
    %31 = vector.load %arg8[%c28_27, %c0_28] : memref<108x1000xf32, #tpu.memory_space<vmem>>, vector<4x1000xf32>
    tpu.vector_store %arg8[%c28_27, %c0_28], %30 {strides = array<i32>} : memref<108x1000xf32, #tpu.memory_space<vmem>>, vector<4x1000xf32>,
    %c0_29 = arith.constant 0 : index
    %c39 = arith.constant 39 : index
    %32 = vector.load %arg7[%c0_29, %c39] : memref<4x1280xf32, #tpu.memory_space<vmem>>, vector<4x1000xf32>
    %c32 = arith.constant 32 : index
    %c0_30 = arith.constant 0 : index
    %33 = vector.load %arg8[%c32, %c0_30] : memref<108x1000xf32, #tpu.memory_space<vmem>>, vector<4x1000xf32>
    tpu.vector_store %arg8[%c32, %c0_30], %32 {strides = array<i32>} : memref<108x1000xf32, #tpu.memory_space<vmem>>, vector<4x1000xf32>,
    %c0_31 = arith.constant 0 : index
    %c117 = arith.constant 117 : index
    %34 = vector.load %arg7[%c0_31, %c117] : memref<4x1280xf32, #tpu.memory_space<vmem>>, vector<4x1000xf32>
    %c36 = arith.constant 36 : index
    %c0_32 = arith.constant 0 : index
    %35 = vector.load %arg8[%c36, %c0_32] : memref<108x1000xf32, #tpu.memory_space<vmem>>, vector<4x1000xf32>
    tpu.vector_store %arg8[%c36, %c0_32], %34 {strides = array<i32>} : memref<108x1000xf32, #tpu.memory_space<vmem>>, vector<4x1000xf32>,
    %c0_33 = arith.constant 0 : index
    %c118 = arith.constant 118 : index
    %36 = vector.load %arg7[%c0_33, %c118] : memref<4x1280xf32, #tpu.memory_space<vmem>>, vector<4x1000xf32>
    %c40 = arith.constant 40 : index
    %c0_34 = arith.constant 0 : index
    %37 = vector.load %arg8[%c40, %c0_34] : memref<108x1000xf32, #tpu.memory_space<vmem>>, vector<4x1000xf32>
    tpu.vector_store %arg8[%c40, %c0_34], %36 {strides = array<i32>} : memref<108x1000xf32, #tpu.memory_space<vmem>>, vector<4x1000xf32>,
    %c0_35 = arith.constant 0 : index
    %c119 = arith.constant 119 : index
    %38 = vector.load %arg7[%c0_35, %c119] : memref<4x1280xf32, #tpu.memory_space<vmem>>, vector<4x1000xf32>
    %c44 = arith.constant 44 : index
    %c0_36 = arith.constant 0 : index
    %39 = vector.load %arg8[%c44, %c0_36] : memref<108x1000xf32, #tpu.memory_space<vmem>>, vector<4x1000xf32>
    tpu.vector_store %arg8[%c44, %c0_36], %38 {strides = array<i32>} : memref<108x1000xf32, #tpu.memory_space<vmem>>, vector<4x1000xf32>,
    %c0_37 = arith.constant 0 : index
    %c127 = arith.constant 127 : index
    %40 = vector.load %arg7[%c0_37, %c127] : memref<4x1280xf32, #tpu.memory_space<vmem>>, vector<4x1000xf32>
    %c48 = arith.constant 48 : index
    %c0_38 = arith.constant 0 : index
    %41 = vector.load %arg8[%c48, %c0_38] : memref<108x1000xf32, #tpu.memory_space<vmem>>, vector<4x1000xf32>
    tpu.vector_store %arg8[%c48, %c0_38], %40 {strides = array<i32>} : memref<108x1000xf32, #tpu.memory_space<vmem>>, vector<4x1000xf32>,
    %c0_39 = arith.constant 0 : index
    %c128_40 = arith.constant 128 : index
    %42 = vector.load %arg7[%c0_39, %c128_40] : memref<4x1280xf32, #tpu.memory_space<vmem>>, vector<4x1000xf32>
    %c52 = arith.constant 52 : index
    %c0_41 = arith.constant 0 : index
    %43 = vector.load %arg8[%c52, %c0_41] : memref<108x1000xf32, #tpu.memory_space<vmem>>, vector<4x1000xf32>
    tpu.vector_store %arg8[%c52, %c0_41], %42 {strides = array<i32>} : memref<108x1000xf32, #tpu.memory_space<vmem>>, vector<4x1000xf32>,
    %c0_42 = arith.constant 0 : index
    %c129 = arith.constant 129 : index
    %44 = vector.load %arg7[%c0_42, %c129] : memref<4x1280xf32, #tpu.memory_space<vmem>>, vector<4x1000xf32>
    %c56 = arith.constant 56 : index
    %c0_43 = arith.constant 0 : index
    %45 = vector.load %arg8[%c56, %c0_43] : memref<108x1000xf32, #tpu.memory_space<vmem>>, vector<4x1000xf32>
    tpu.vector_store %arg8[%c56, %c0_43], %44 {strides = array<i32>} : memref<108x1000xf32, #tpu.memory_space<vmem>>, vector<4x1000xf32>,
    %c0_44 = arith.constant 0 : index
    %c137 = arith.constant 137 : index
    %46 = vector.load %arg7[%c0_44, %c137] : memref<4x1280xf32, #tpu.memory_space<vmem>>, vector<4x1000xf32>
    %c60 = arith.constant 60 : index
    %c0_45 = arith.constant 0 : index
    %47 = vector.load %arg8[%c60, %c0_45] : memref<108x1000xf32, #tpu.memory_space<vmem>>, vector<4x1000xf32>
    tpu.vector_store %arg8[%c60, %c0_45], %46 {strides = array<i32>} : memref<108x1000xf32, #tpu.memory_space<vmem>>, vector<4x1000xf32>,
    %c0_46 = arith.constant 0 : index
    %c138 = arith.constant 138 : index
    %48 = vector.load %arg7[%c0_46, %c138] : memref<4x1280xf32, #tpu.memory_space<vmem>>, vector<4x1000xf32>
    %c64 = arith.constant 64 : index
    %c0_47 = arith.constant 0 : index
    %49 = vector.load %arg8[%c64, %c0_47] : memref<108x1000xf32, #tpu.memory_space<vmem>>, vector<4x1000xf32>
    tpu.vector_store %arg8[%c64, %c0_47], %48 {strides = array<i32>} : memref<108x1000xf32, #tpu.memory_space<vmem>>, vector<4x1000xf32>,
    %c0_48 = arith.constant 0 : index
    %c139 = arith.constant 139 : index
    %50 = vector.load %arg7[%c0_48, %c139] : memref<4x1280xf32, #tpu.memory_space<vmem>>, vector<4x1000xf32>
    %c68 = arith.constant 68 : index
    %c0_49 = arith.constant 0 : index
    %51 = vector.load %arg8[%c68, %c0_49] : memref<108x1000xf32, #tpu.memory_space<vmem>>, vector<4x1000xf32>
    tpu.vector_store %arg8[%c68, %c0_49], %50 {strides = array<i32>} : memref<108x1000xf32, #tpu.memory_space<vmem>>, vector<4x1000xf32>,
    %c0_50 = arith.constant 0 : index
    %c217 = arith.constant 217 : index
    %52 = vector.load %arg7[%c0_50, %c217] : memref<4x1280xf32, #tpu.memory_space<vmem>>, vector<4x1000xf32>
    %c72 = arith.constant 72 : index
    %c0_51 = arith.constant 0 : index
    %53 = vector.load %arg8[%c72, %c0_51] : memref<108x1000xf32, #tpu.memory_space<vmem>>, vector<4x1000xf32>
    tpu.vector_store %arg8[%c72, %c0_51], %52 {strides = array<i32>} : memref<108x1000xf32, #tpu.memory_space<vmem>>, vector<4x1000xf32>,
    %c0_52 = arith.constant 0 : index
    %c218 = arith.constant 218 : index
    %54 = vector.load %arg7[%c0_52, %c218] : memref<4x1280xf32, #tpu.memory_space<vmem>>, vector<4x1000xf32>
    %c76 = arith.constant 76 : index
    %c0_53 = arith.constant 0 : index
    %55 = vector.load %arg8[%c76, %c0_53] : memref<108x1000xf32, #tpu.memory_space<vmem>>, vector<4x1000xf32>
    tpu.vector_store %arg8[%c76, %c0_53], %54 {strides = array<i32>} : memref<108x1000xf32, #tpu.memory_space<vmem>>, vector<4x1000xf32>,
    %c0_54 = arith.constant 0 : index
    %c219 = arith.constant 219 : index
    %56 = vector.load %arg7[%c0_54, %c219] : memref<4x1280xf32, #tpu.memory_space<vmem>>, vector<4x1000xf32>
    %c80 = arith.constant 80 : index
    %c0_55 = arith.constant 0 : index
    %57 = vector.load %arg8[%c80, %c0_55] : memref<108x1000xf32, #tpu.memory_space<vmem>>, vector<4x1000xf32>
    tpu.vector_store %arg8[%c80, %c0_55], %56 {strides = array<i32>} : memref<108x1000xf32, #tpu.memory_space<vmem>>, vector<4x1000xf32>,
    %c0_56 = arith.constant 0 : index
    %c227 = arith.constant 227 : index
    %58 = vector.load %arg7[%c0_56, %c227] : memref<4x1280xf32, #tpu.memory_space<vmem>>, vector<4x1000xf32>
    %c84 = arith.constant 84 : index
    %c0_57 = arith.constant 0 : index
    %59 = vector.load %arg8[%c84, %c0_57] : memref<108x1000xf32, #tpu.memory_space<vmem>>, vector<4x1000xf32>
    tpu.vector_store %arg8[%c84, %c0_57], %58 {strides = array<i32>} : memref<108x1000xf32, #tpu.memory_space<vmem>>, vector<4x1000xf32>,
    %c0_58 = arith.constant 0 : index
    %c228 = arith.constant 228 : index
    %60 = vector.load %arg7[%c0_58, %c228] : memref<4x1280xf32, #tpu.memory_space<vmem>>, vector<4x1000xf32>
    %c88 = arith.constant 88 : index
    %c0_59 = arith.constant 0 : index
    %61 = vector.load %arg8[%c88, %c0_59] : memref<108x1000xf32, #tpu.memory_space<vmem>>, vector<4x1000xf32>
    tpu.vector_store %arg8[%c88, %c0_59], %60 {strides = array<i32>} : memref<108x1000xf32, #tpu.memory_space<vmem>>, vector<4x1000xf32>,
    %c0_60 = arith.constant 0 : index
    %c229 = arith.constant 229 : index
    %62 = vector.load %arg7[%c0_60, %c229] : memref<4x1280xf32, #tpu.memory_space<vmem>>, vector<4x1000xf32>
    %c92 = arith.constant 92 : index
    %c0_61 = arith.constant 0 : index
    %63 = vector.load %arg8[%c92, %c0_61] : memref<108x1000xf32, #tpu.memory_space<vmem>>, vector<4x1000xf32>
    tpu.vector_store %arg8[%c92, %c0_61], %62 {strides = array<i32>} : memref<108x1000xf32, #tpu.memory_space<vmem>>, vector<4x1000xf32>,
    %c0_62 = arith.constant 0 : index
    %c237 = arith.constant 237 : index
    %64 = vector.load %arg7[%c0_62, %c237] : memref<4x1280xf32, #tpu.memory_space<vmem>>, vector<4x1000xf32>
    %c96 = arith.constant 96 : index
    %c0_63 = arith.constant 0 : index
    %65 = vector.load %arg8[%c96, %c0_63] : memref<108x1000xf32, #tpu.memory_space<vmem>>, vector<4x1000xf32>
    tpu.vector_store %arg8[%c96, %c0_63], %64 {strides = array<i32>} : memref<108x1000xf32, #tpu.memory_space<vmem>>, vector<4x1000xf32>,
    %c0_64 = arith.constant 0 : index
    %c238 = arith.constant 238 : index
    %66 = vector.load %arg7[%c0_64, %c238] : memref<4x1280xf32, #tpu.memory_space<vmem>>, vector<4x1000xf32>
    %c100 = arith.constant 100 : index
    %c0_65 = arith.constant 0 : index
    %67 = vector.load %arg8[%c100, %c0_65] : memref<108x1000xf32, #tpu.memory_space<vmem>>, vector<4x1000xf32>
    tpu.vector_store %arg8[%c100, %c0_65], %66 {strides = array<i32>} : memref<108x1000xf32, #tpu.memory_space<vmem>>, vector<4x1000xf32>,
    %c0_66 = arith.constant 0 : index
    %c239 = arith.constant 239 : index
    %68 = vector.load %arg7[%c0_66, %c239] : memref<4x1280xf32, #tpu.memory_space<vmem>>, vector<4x1000xf32>
    %c104 = arith.constant 104 : index
    %c0_67 = arith.constant 0 : index
    %69 = vector.load %arg8[%c104, %c0_67] : memref<108x1000xf32, #tpu.memory_space<vmem>>, vector<4x1000xf32>
    tpu.vector_store %arg8[%c104, %c0_67], %68 {strides = array<i32>} : memref<108x1000xf32, #tpu.memory_space<vmem>>, vector<4x1000xf32>,
    %c0_68 = arith.constant 0 : index
    %c0_69 = arith.constant 0 : index
    %70 = vector.load %arg3[%c0_68, %c0_69] : memref<4x108xf32, #tpu.memory_space<vmem>>, vector<4x108xf32>
    %c0_70 = arith.constant 0 : index
    %c0_71 = arith.constant 0 : index
    %71 = vector.load %arg8[%c0_70, %c0_71] : memref<108x1000xf32, #tpu.memory_space<vmem>>, vector<108x1000xf32>
    %cst_72 = arith.constant dense<0.000000e+00> : vector<4x1000xf32>
    %72 = tpu.matmul %70, %71, %cst_72 {dimension_numbers = #tpu.dot_dimension_numbers<[1], [0], [0], [1], [0, 0, 1, 1], [], []>} : vector<4x108xf32>, vector<108x1000xf32>, vector<4x1000xf32> -> vector<4x1000xf32>
    %c0_73 = arith.constant 0 : index
    %c0_74 = arith.constant 0 : index
    %73 = vector.load %arg4[%c0_73, %c0_74] : memref<4x1xf32, #tpu.memory_space<vmem>>, vector<4x1xf32>
    %74 = vector.broadcast %73 : vector<4x1xf32> to vector<4x1000xf32>
    %75 = arith.addf %72, %74 : vector<4x1000xf32>
    %76 = vector.broadcast %2 : vector<1x1000xf32> to vector<4x1000xf32>
    %77 = arith.mulf %75, %76 : vector<4x1000xf32>
    %c0_75 = arith.constant 0 : index
    %c0_76 = arith.constant 0 : index
    %c0_77 = arith.constant 0 : index
    %78 = vector.load %arg6[%c0_75, %c0_76, %c0_77] : memref<1x4x1000xf32, #tpu.memory_space<vmem>>, vector<1x4x1000xf32>
    %79 = vector.shape_cast %78 : vector<1x4x1000xf32> to vector<4x1000xf32>
    %80 = vector.shape_cast %77 : vector<4x1000xf32> to vector<1x4x1000xf32>
    tpu.vector_store %arg6[%c0_75, %c0_76, %c0_77], %80 {strides = array<i32>} : memref<1x4x1000xf32, #tpu.memory_space<vmem>>, vector<1x4x1000xf32>,
    return
  }
  func.func @transform_0(%arg0: i32) -> (i32, i32, i32) {
    %c0_i32 = arith.constant 0 : i32
    %c0_i32_0 = arith.constant 0 : i32
    %c0_i32_1 = arith.constant 0 : i32
    return %arg0, %c0_i32, %c0_i32_0 : i32, i32, i32
  }
  func.func @transform_1(%arg0: i32) -> (i32, i32) {
    %c0_i32 = arith.constant 0 : i32
    %c0_i32_0 = arith.constant 0 : i32
    %c0_i32_1 = arith.constant 0 : i32
    return %c0_i32, %c0_i32_0 : i32, i32
  }
  func.func @transform_2(%arg0: i32) -> (i32, i32) {
    %c0_i32 = arith.constant 0 : i32
    %c0_i32_0 = arith.constant 0 : i32
    %c0_i32_1 = arith.constant 0 : i32
    return %c0_i32, %c0_i32_0 : i32, i32
  }
  func.func @transform_3(%arg0: i32) -> (i32, i32) {
    %c0_i32 = arith.constant 0 : i32
    %c0_i32_0 = arith.constant 0 : i32
    %c0_i32_1 = arith.constant 0 : i32
    return %c0_i32, %c0_i32_0 : i32, i32
  }
  func.func @transform_4(%arg0: i32) -> (i32, i32) {
    %c0_i32 = arith.constant 0 : i32
    %c0_i32_0 = arith.constant 0 : i32
    %c0_i32_1 = arith.constant 0 : i32
    return %c0_i32, %c0_i32_0 : i32, i32
  }
  func.func @transform_5(%arg0: i32) -> (i32, i32, i32) {
    %c0_i32 = arith.constant 0 : i32
    %c0_i32_0 = arith.constant 0 : i32
    %c0_i32_1 = arith.constant 0 : i32
    return %arg0, %c0_i32, %c0_i32_0 : i32, i32, i32
  }
}

module attributes {stable_mosaic.version = 11 : i64} {
  func.func @fused_bn_relu_conv_kernel(%arg0: i32, %arg1: memref<1x4x1000xf32, #tpu.memory_space<vmem>>, %arg2: memref<4x2xf32, #tpu.memory_space<vmem>>, %arg3: memref<4x108xf32, #tpu.memory_space<vmem>>, %arg4: memref<4x1xf32, #tpu.memory_space<vmem>>, %arg5: memref<1x1000xf32, #tpu.memory_space<vmem>>, %arg6: memref<1x4x1000xf32, #tpu.memory_space<vmem>>, %arg7: memref<1x4x1000xf32, #tpu.memory_space<vmem>>, %arg8: memref<4x1280xf32, #tpu.memory_space<vmem>>, %arg9: memref<108x1000xf32, #tpu.memory_space<vmem>>) attributes {dimension_semantics = [#tpu.dimension_semantics<parallel>], iteration_bounds = array<i64: 2>, scalar_prefetch = 0 : i64, scratch_operands = 2 : i64, tpu.core_type = #tpu.core_type<tc>, window_params = [{transform_indices = @transform_0, window_bounds = array<i64: 1, 4, 1000>}, {pipeline_mode = #tpu.pipeline_mode<synchronous>, transform_indices = @transform_1, window_bounds = array<i64: 4, 2>}, {pipeline_mode = #tpu.pipeline_mode<synchronous>, transform_indices = @transform_2, window_bounds = array<i64: 4, 108>}, {pipeline_mode = #tpu.pipeline_mode<synchronous>, transform_indices = @transform_3, window_bounds = array<i64: 4, 1>}, {pipeline_mode = #tpu.pipeline_mode<synchronous>, transform_indices = @transform_4, window_bounds = array<i64: 1, 1000>}, {transform_indices = @transform_5, window_bounds = array<i64: 1, 4, 1000>}, {transform_indices = @transform_6, window_bounds = array<i64: 1, 4, 1000>}]} {
    %c0 = arith.constant 0 : index
    %c0_0 = arith.constant 0 : index
    %0 = vector.load %arg2[%c0, %c0_0] : memref<4x2xf32, #tpu.memory_space<vmem>>, vector<4x1xf32>
    %c0_1 = arith.constant 0 : index
    %c1 = arith.constant 1 : index
    %1 = vector.load %arg2[%c0_1, %c1] : memref<4x2xf32, #tpu.memory_space<vmem>>, vector<4x1xf32>
    %c0_2 = arith.constant 0 : index
    %c0_3 = arith.constant 0 : index
    %2 = vector.load %arg5[%c0_2, %c0_3] : memref<1x1000xf32, #tpu.memory_space<vmem>>, vector<1x1000xf32>
    %c0_4 = arith.constant 0 : index
    %c0_5 = arith.constant 0 : index
    %c0_6 = arith.constant 0 : index
    %3 = vector.load %arg1[%c0_4, %c0_5, %c0_6] : memref<1x4x1000xf32, #tpu.memory_space<vmem>>, vector<1x4x1000xf32>
    %4 = vector.shape_cast %3 : vector<1x4x1000xf32> to vector<4x1000xf32>
    %5 = vector.broadcast %0 : vector<4x1xf32> to vector<4x1000xf32>
    %6 = arith.mulf %4, %5 : vector<4x1000xf32>
    %7 = vector.broadcast %1 : vector<4x1xf32> to vector<4x1000xf32>
    %8 = arith.addf %6, %7 : vector<4x1000xf32>
    %cst = arith.constant 0.000000e+00 : f32
    %9 = vector.broadcast %cst : f32 to vector<4x1000xf32>
    %10 = arith.maximumf %8, %9 : vector<4x1000xf32>
    %11 = vector.broadcast %2 : vector<1x1000xf32> to vector<4x1000xf32>
    %12 = arith.mulf %10, %11 : vector<4x1000xf32>
    %cst_7 = arith.constant 0.000000e+00 : f32
    %13 = vector.broadcast %cst_7 : f32 to vector<4x1280xf32>
    %c0_8 = arith.constant 0 : index
    %c0_9 = arith.constant 0 : index
    %14 = vector.load %arg8[%c0_8, %c0_9] : memref<4x1280xf32, #tpu.memory_space<vmem>>, vector<4x1280xf32>
    tpu.vector_store %arg8[%c0_8, %c0_9], %13 {strides = array<i32>} : memref<4x1280xf32, #tpu.memory_space<vmem>>, vector<4x1280xf32>,
    %c0_10 = arith.constant 0 : index
    %c128 = arith.constant 128 : index
    %15 = vector.load %arg8[%c0_10, %c128] : memref<4x1280xf32, #tpu.memory_space<vmem>>, vector<4x1000xf32>
    tpu.vector_store %arg8[%c0_10, %c128], %12 {strides = array<i32>} : memref<4x1280xf32, #tpu.memory_space<vmem>>, vector<4x1000xf32>,
    %c0_11 = arith.constant 0 : index
    %c17 = arith.constant 17 : index
    %16 = vector.load %arg8[%c0_11, %c17] : memref<4x1280xf32, #tpu.memory_space<vmem>>, vector<4x1000xf32>
    %c0_12 = arith.constant 0 : index
    %c0_13 = arith.constant 0 : index
    %17 = vector.load %arg9[%c0_12, %c0_13] : memref<108x1000xf32, #tpu.memory_space<vmem>>, vector<4x1000xf32>
    tpu.vector_store %arg9[%c0_12, %c0_13], %16 {strides = array<i32>} : memref<108x1000xf32, #tpu.memory_space<vmem>>, vector<4x1000xf32>,
    %c0_14 = arith.constant 0 : index
    %c18 = arith.constant 18 : index
    %18 = vector.load %arg8[%c0_14, %c18] : memref<4x1280xf32, #tpu.memory_space<vmem>>, vector<4x1000xf32>
    %c4 = arith.constant 4 : index
    %c0_15 = arith.constant 0 : index
    %19 = vector.load %arg9[%c4, %c0_15] : memref<108x1000xf32, #tpu.memory_space<vmem>>, vector<4x1000xf32>
    tpu.vector_store %arg9[%c4, %c0_15], %18 {strides = array<i32>} : memref<108x1000xf32, #tpu.memory_space<vmem>>, vector<4x1000xf32>,
    %c0_16 = arith.constant 0 : index
    %c19 = arith.constant 19 : index
    %20 = vector.load %arg8[%c0_16, %c19] : memref<4x1280xf32, #tpu.memory_space<vmem>>, vector<4x1000xf32>
    %c8 = arith.constant 8 : index
    %c0_17 = arith.constant 0 : index
    %21 = vector.load %arg9[%c8, %c0_17] : memref<108x1000xf32, #tpu.memory_space<vmem>>, vector<4x1000xf32>
    tpu.vector_store %arg9[%c8, %c0_17], %20 {strides = array<i32>} : memref<108x1000xf32, #tpu.memory_space<vmem>>, vector<4x1000xf32>,
    %c0_18 = arith.constant 0 : index
    %c27 = arith.constant 27 : index
    %22 = vector.load %arg8[%c0_18, %c27] : memref<4x1280xf32, #tpu.memory_space<vmem>>, vector<4x1000xf32>
    %c12 = arith.constant 12 : index
    %c0_19 = arith.constant 0 : index
    %23 = vector.load %arg9[%c12, %c0_19] : memref<108x1000xf32, #tpu.memory_space<vmem>>, vector<4x1000xf32>
    tpu.vector_store %arg9[%c12, %c0_19], %22 {strides = array<i32>} : memref<108x1000xf32, #tpu.memory_space<vmem>>, vector<4x1000xf32>,
    %c0_20 = arith.constant 0 : index
    %c28 = arith.constant 28 : index
    %24 = vector.load %arg8[%c0_20, %c28] : memref<4x1280xf32, #tpu.memory_space<vmem>>, vector<4x1000xf32>
    %c16 = arith.constant 16 : index
    %c0_21 = arith.constant 0 : index
    %25 = vector.load %arg9[%c16, %c0_21] : memref<108x1000xf32, #tpu.memory_space<vmem>>, vector<4x1000xf32>
    tpu.vector_store %arg9[%c16, %c0_21], %24 {strides = array<i32>} : memref<108x1000xf32, #tpu.memory_space<vmem>>, vector<4x1000xf32>,
    %c0_22 = arith.constant 0 : index
    %c29 = arith.constant 29 : index
    %26 = vector.load %arg8[%c0_22, %c29] : memref<4x1280xf32, #tpu.memory_space<vmem>>, vector<4x1000xf32>
    %c20 = arith.constant 20 : index
    %c0_23 = arith.constant 0 : index
    %27 = vector.load %arg9[%c20, %c0_23] : memref<108x1000xf32, #tpu.memory_space<vmem>>, vector<4x1000xf32>
    tpu.vector_store %arg9[%c20, %c0_23], %26 {strides = array<i32>} : memref<108x1000xf32, #tpu.memory_space<vmem>>, vector<4x1000xf32>,
    %c0_24 = arith.constant 0 : index
    %c37 = arith.constant 37 : index
    %28 = vector.load %arg8[%c0_24, %c37] : memref<4x1280xf32, #tpu.memory_space<vmem>>, vector<4x1000xf32>
    %c24 = arith.constant 24 : index
    %c0_25 = arith.constant 0 : index
    %29 = vector.load %arg9[%c24, %c0_25] : memref<108x1000xf32, #tpu.memory_space<vmem>>, vector<4x1000xf32>
    tpu.vector_store %arg9[%c24, %c0_25], %28 {strides = array<i32>} : memref<108x1000xf32, #tpu.memory_space<vmem>>, vector<4x1000xf32>,
    %c0_26 = arith.constant 0 : index
    %c38 = arith.constant 38 : index
    %30 = vector.load %arg8[%c0_26, %c38] : memref<4x1280xf32, #tpu.memory_space<vmem>>, vector<4x1000xf32>
    %c28_27 = arith.constant 28 : index
    %c0_28 = arith.constant 0 : index
    %31 = vector.load %arg9[%c28_27, %c0_28] : memref<108x1000xf32, #tpu.memory_space<vmem>>, vector<4x1000xf32>
    tpu.vector_store %arg9[%c28_27, %c0_28], %30 {strides = array<i32>} : memref<108x1000xf32, #tpu.memory_space<vmem>>, vector<4x1000xf32>,
    %c0_29 = arith.constant 0 : index
    %c39 = arith.constant 39 : index
    %32 = vector.load %arg8[%c0_29, %c39] : memref<4x1280xf32, #tpu.memory_space<vmem>>, vector<4x1000xf32>
    %c32 = arith.constant 32 : index
    %c0_30 = arith.constant 0 : index
    %33 = vector.load %arg9[%c32, %c0_30] : memref<108x1000xf32, #tpu.memory_space<vmem>>, vector<4x1000xf32>
    tpu.vector_store %arg9[%c32, %c0_30], %32 {strides = array<i32>} : memref<108x1000xf32, #tpu.memory_space<vmem>>, vector<4x1000xf32>,
    %c0_31 = arith.constant 0 : index
    %c117 = arith.constant 117 : index
    %34 = vector.load %arg8[%c0_31, %c117] : memref<4x1280xf32, #tpu.memory_space<vmem>>, vector<4x1000xf32>
    %c36 = arith.constant 36 : index
    %c0_32 = arith.constant 0 : index
    %35 = vector.load %arg9[%c36, %c0_32] : memref<108x1000xf32, #tpu.memory_space<vmem>>, vector<4x1000xf32>
    tpu.vector_store %arg9[%c36, %c0_32], %34 {strides = array<i32>} : memref<108x1000xf32, #tpu.memory_space<vmem>>, vector<4x1000xf32>,
    %c0_33 = arith.constant 0 : index
    %c118 = arith.constant 118 : index
    %36 = vector.load %arg8[%c0_33, %c118] : memref<4x1280xf32, #tpu.memory_space<vmem>>, vector<4x1000xf32>
    %c40 = arith.constant 40 : index
    %c0_34 = arith.constant 0 : index
    %37 = vector.load %arg9[%c40, %c0_34] : memref<108x1000xf32, #tpu.memory_space<vmem>>, vector<4x1000xf32>
    tpu.vector_store %arg9[%c40, %c0_34], %36 {strides = array<i32>} : memref<108x1000xf32, #tpu.memory_space<vmem>>, vector<4x1000xf32>,
    %c0_35 = arith.constant 0 : index
    %c119 = arith.constant 119 : index
    %38 = vector.load %arg8[%c0_35, %c119] : memref<4x1280xf32, #tpu.memory_space<vmem>>, vector<4x1000xf32>
    %c44 = arith.constant 44 : index
    %c0_36 = arith.constant 0 : index
    %39 = vector.load %arg9[%c44, %c0_36] : memref<108x1000xf32, #tpu.memory_space<vmem>>, vector<4x1000xf32>
    tpu.vector_store %arg9[%c44, %c0_36], %38 {strides = array<i32>} : memref<108x1000xf32, #tpu.memory_space<vmem>>, vector<4x1000xf32>,
    %c0_37 = arith.constant 0 : index
    %c127 = arith.constant 127 : index
    %40 = vector.load %arg8[%c0_37, %c127] : memref<4x1280xf32, #tpu.memory_space<vmem>>, vector<4x1000xf32>
    %c48 = arith.constant 48 : index
    %c0_38 = arith.constant 0 : index
    %41 = vector.load %arg9[%c48, %c0_38] : memref<108x1000xf32, #tpu.memory_space<vmem>>, vector<4x1000xf32>
    tpu.vector_store %arg9[%c48, %c0_38], %40 {strides = array<i32>} : memref<108x1000xf32, #tpu.memory_space<vmem>>, vector<4x1000xf32>,
    %c0_39 = arith.constant 0 : index
    %c128_40 = arith.constant 128 : index
    %42 = vector.load %arg8[%c0_39, %c128_40] : memref<4x1280xf32, #tpu.memory_space<vmem>>, vector<4x1000xf32>
    %c52 = arith.constant 52 : index
    %c0_41 = arith.constant 0 : index
    %43 = vector.load %arg9[%c52, %c0_41] : memref<108x1000xf32, #tpu.memory_space<vmem>>, vector<4x1000xf32>
    tpu.vector_store %arg9[%c52, %c0_41], %42 {strides = array<i32>} : memref<108x1000xf32, #tpu.memory_space<vmem>>, vector<4x1000xf32>,
    %c0_42 = arith.constant 0 : index
    %c129 = arith.constant 129 : index
    %44 = vector.load %arg8[%c0_42, %c129] : memref<4x1280xf32, #tpu.memory_space<vmem>>, vector<4x1000xf32>
    %c56 = arith.constant 56 : index
    %c0_43 = arith.constant 0 : index
    %45 = vector.load %arg9[%c56, %c0_43] : memref<108x1000xf32, #tpu.memory_space<vmem>>, vector<4x1000xf32>
    tpu.vector_store %arg9[%c56, %c0_43], %44 {strides = array<i32>} : memref<108x1000xf32, #tpu.memory_space<vmem>>, vector<4x1000xf32>,
    %c0_44 = arith.constant 0 : index
    %c137 = arith.constant 137 : index
    %46 = vector.load %arg8[%c0_44, %c137] : memref<4x1280xf32, #tpu.memory_space<vmem>>, vector<4x1000xf32>
    %c60 = arith.constant 60 : index
    %c0_45 = arith.constant 0 : index
    %47 = vector.load %arg9[%c60, %c0_45] : memref<108x1000xf32, #tpu.memory_space<vmem>>, vector<4x1000xf32>
    tpu.vector_store %arg9[%c60, %c0_45], %46 {strides = array<i32>} : memref<108x1000xf32, #tpu.memory_space<vmem>>, vector<4x1000xf32>,
    %c0_46 = arith.constant 0 : index
    %c138 = arith.constant 138 : index
    %48 = vector.load %arg8[%c0_46, %c138] : memref<4x1280xf32, #tpu.memory_space<vmem>>, vector<4x1000xf32>
    %c64 = arith.constant 64 : index
    %c0_47 = arith.constant 0 : index
    %49 = vector.load %arg9[%c64, %c0_47] : memref<108x1000xf32, #tpu.memory_space<vmem>>, vector<4x1000xf32>
    tpu.vector_store %arg9[%c64, %c0_47], %48 {strides = array<i32>} : memref<108x1000xf32, #tpu.memory_space<vmem>>, vector<4x1000xf32>,
    %c0_48 = arith.constant 0 : index
    %c139 = arith.constant 139 : index
    %50 = vector.load %arg8[%c0_48, %c139] : memref<4x1280xf32, #tpu.memory_space<vmem>>, vector<4x1000xf32>
    %c68 = arith.constant 68 : index
    %c0_49 = arith.constant 0 : index
    %51 = vector.load %arg9[%c68, %c0_49] : memref<108x1000xf32, #tpu.memory_space<vmem>>, vector<4x1000xf32>
    tpu.vector_store %arg9[%c68, %c0_49], %50 {strides = array<i32>} : memref<108x1000xf32, #tpu.memory_space<vmem>>, vector<4x1000xf32>,
    %c0_50 = arith.constant 0 : index
    %c217 = arith.constant 217 : index
    %52 = vector.load %arg8[%c0_50, %c217] : memref<4x1280xf32, #tpu.memory_space<vmem>>, vector<4x1000xf32>
    %c72 = arith.constant 72 : index
    %c0_51 = arith.constant 0 : index
    %53 = vector.load %arg9[%c72, %c0_51] : memref<108x1000xf32, #tpu.memory_space<vmem>>, vector<4x1000xf32>
    tpu.vector_store %arg9[%c72, %c0_51], %52 {strides = array<i32>} : memref<108x1000xf32, #tpu.memory_space<vmem>>, vector<4x1000xf32>,
    %c0_52 = arith.constant 0 : index
    %c218 = arith.constant 218 : index
    %54 = vector.load %arg8[%c0_52, %c218] : memref<4x1280xf32, #tpu.memory_space<vmem>>, vector<4x1000xf32>
    %c76 = arith.constant 76 : index
    %c0_53 = arith.constant 0 : index
    %55 = vector.load %arg9[%c76, %c0_53] : memref<108x1000xf32, #tpu.memory_space<vmem>>, vector<4x1000xf32>
    tpu.vector_store %arg9[%c76, %c0_53], %54 {strides = array<i32>} : memref<108x1000xf32, #tpu.memory_space<vmem>>, vector<4x1000xf32>,
    %c0_54 = arith.constant 0 : index
    %c219 = arith.constant 219 : index
    %56 = vector.load %arg8[%c0_54, %c219] : memref<4x1280xf32, #tpu.memory_space<vmem>>, vector<4x1000xf32>
    %c80 = arith.constant 80 : index
    %c0_55 = arith.constant 0 : index
    %57 = vector.load %arg9[%c80, %c0_55] : memref<108x1000xf32, #tpu.memory_space<vmem>>, vector<4x1000xf32>
    tpu.vector_store %arg9[%c80, %c0_55], %56 {strides = array<i32>} : memref<108x1000xf32, #tpu.memory_space<vmem>>, vector<4x1000xf32>,
    %c0_56 = arith.constant 0 : index
    %c227 = arith.constant 227 : index
    %58 = vector.load %arg8[%c0_56, %c227] : memref<4x1280xf32, #tpu.memory_space<vmem>>, vector<4x1000xf32>
    %c84 = arith.constant 84 : index
    %c0_57 = arith.constant 0 : index
    %59 = vector.load %arg9[%c84, %c0_57] : memref<108x1000xf32, #tpu.memory_space<vmem>>, vector<4x1000xf32>
    tpu.vector_store %arg9[%c84, %c0_57], %58 {strides = array<i32>} : memref<108x1000xf32, #tpu.memory_space<vmem>>, vector<4x1000xf32>,
    %c0_58 = arith.constant 0 : index
    %c228 = arith.constant 228 : index
    %60 = vector.load %arg8[%c0_58, %c228] : memref<4x1280xf32, #tpu.memory_space<vmem>>, vector<4x1000xf32>
    %c88 = arith.constant 88 : index
    %c0_59 = arith.constant 0 : index
    %61 = vector.load %arg9[%c88, %c0_59] : memref<108x1000xf32, #tpu.memory_space<vmem>>, vector<4x1000xf32>
    tpu.vector_store %arg9[%c88, %c0_59], %60 {strides = array<i32>} : memref<108x1000xf32, #tpu.memory_space<vmem>>, vector<4x1000xf32>,
    %c0_60 = arith.constant 0 : index
    %c229 = arith.constant 229 : index
    %62 = vector.load %arg8[%c0_60, %c229] : memref<4x1280xf32, #tpu.memory_space<vmem>>, vector<4x1000xf32>
    %c92 = arith.constant 92 : index
    %c0_61 = arith.constant 0 : index
    %63 = vector.load %arg9[%c92, %c0_61] : memref<108x1000xf32, #tpu.memory_space<vmem>>, vector<4x1000xf32>
    tpu.vector_store %arg9[%c92, %c0_61], %62 {strides = array<i32>} : memref<108x1000xf32, #tpu.memory_space<vmem>>, vector<4x1000xf32>,
    %c0_62 = arith.constant 0 : index
    %c237 = arith.constant 237 : index
    %64 = vector.load %arg8[%c0_62, %c237] : memref<4x1280xf32, #tpu.memory_space<vmem>>, vector<4x1000xf32>
    %c96 = arith.constant 96 : index
    %c0_63 = arith.constant 0 : index
    %65 = vector.load %arg9[%c96, %c0_63] : memref<108x1000xf32, #tpu.memory_space<vmem>>, vector<4x1000xf32>
    tpu.vector_store %arg9[%c96, %c0_63], %64 {strides = array<i32>} : memref<108x1000xf32, #tpu.memory_space<vmem>>, vector<4x1000xf32>,
    %c0_64 = arith.constant 0 : index
    %c238 = arith.constant 238 : index
    %66 = vector.load %arg8[%c0_64, %c238] : memref<4x1280xf32, #tpu.memory_space<vmem>>, vector<4x1000xf32>
    %c100 = arith.constant 100 : index
    %c0_65 = arith.constant 0 : index
    %67 = vector.load %arg9[%c100, %c0_65] : memref<108x1000xf32, #tpu.memory_space<vmem>>, vector<4x1000xf32>
    tpu.vector_store %arg9[%c100, %c0_65], %66 {strides = array<i32>} : memref<108x1000xf32, #tpu.memory_space<vmem>>, vector<4x1000xf32>,
    %c0_66 = arith.constant 0 : index
    %c239 = arith.constant 239 : index
    %68 = vector.load %arg8[%c0_66, %c239] : memref<4x1280xf32, #tpu.memory_space<vmem>>, vector<4x1000xf32>
    %c104 = arith.constant 104 : index
    %c0_67 = arith.constant 0 : index
    %69 = vector.load %arg9[%c104, %c0_67] : memref<108x1000xf32, #tpu.memory_space<vmem>>, vector<4x1000xf32>
    tpu.vector_store %arg9[%c104, %c0_67], %68 {strides = array<i32>} : memref<108x1000xf32, #tpu.memory_space<vmem>>, vector<4x1000xf32>,
    %c0_68 = arith.constant 0 : index
    %c0_69 = arith.constant 0 : index
    %70 = vector.load %arg3[%c0_68, %c0_69] : memref<4x108xf32, #tpu.memory_space<vmem>>, vector<4x108xf32>
    %c0_70 = arith.constant 0 : index
    %c0_71 = arith.constant 0 : index
    %71 = vector.load %arg9[%c0_70, %c0_71] : memref<108x1000xf32, #tpu.memory_space<vmem>>, vector<108x1000xf32>
    %cst_72 = arith.constant dense<0.000000e+00> : vector<4x1000xf32>
    %72 = tpu.matmul %70, %71, %cst_72 {dimension_numbers = #tpu.dot_dimension_numbers<[1], [0], [0], [1], [0, 0, 1, 1], [], []>} : vector<4x108xf32>, vector<108x1000xf32>, vector<4x1000xf32> -> vector<4x1000xf32>
    %c0_73 = arith.constant 0 : index
    %c0_74 = arith.constant 0 : index
    %73 = vector.load %arg4[%c0_73, %c0_74] : memref<4x1xf32, #tpu.memory_space<vmem>>, vector<4x1xf32>
    %74 = vector.broadcast %73 : vector<4x1xf32> to vector<4x1000xf32>
    %75 = arith.addf %72, %74 : vector<4x1000xf32>
    %c0_75 = arith.constant 0 : index
    %c0_76 = arith.constant 0 : index
    %c0_77 = arith.constant 0 : index
    %76 = vector.load %arg6[%c0_75, %c0_76, %c0_77] : memref<1x4x1000xf32, #tpu.memory_space<vmem>>, vector<1x4x1000xf32>
    %77 = vector.shape_cast %76 : vector<1x4x1000xf32> to vector<4x1000xf32>
    %78 = arith.addf %75, %77 : vector<4x1000xf32>
    %79 = vector.broadcast %2 : vector<1x1000xf32> to vector<4x1000xf32>
    %80 = arith.mulf %78, %79 : vector<4x1000xf32>
    %c0_78 = arith.constant 0 : index
    %c0_79 = arith.constant 0 : index
    %c0_80 = arith.constant 0 : index
    %81 = vector.load %arg7[%c0_78, %c0_79, %c0_80] : memref<1x4x1000xf32, #tpu.memory_space<vmem>>, vector<1x4x1000xf32>
    %82 = vector.shape_cast %81 : vector<1x4x1000xf32> to vector<4x1000xf32>
    %83 = vector.shape_cast %80 : vector<4x1000xf32> to vector<1x4x1000xf32>
    tpu.vector_store %arg7[%c0_78, %c0_79, %c0_80], %83 {strides = array<i32>} : memref<1x4x1000xf32, #tpu.memory_space<vmem>>, vector<1x4x1000xf32>,
    return
  }
  func.func @transform_0(%arg0: i32) -> (i32, i32, i32) {
    %c0_i32 = arith.constant 0 : i32
    %c0_i32_0 = arith.constant 0 : i32
    %c0_i32_1 = arith.constant 0 : i32
    return %arg0, %c0_i32, %c0_i32_0 : i32, i32, i32
  }
  func.func @transform_1(%arg0: i32) -> (i32, i32) {
    %c0_i32 = arith.constant 0 : i32
    %c0_i32_0 = arith.constant 0 : i32
    %c0_i32_1 = arith.constant 0 : i32
    return %c0_i32, %c0_i32_0 : i32, i32
  }
  func.func @transform_2(%arg0: i32) -> (i32, i32) {
    %c0_i32 = arith.constant 0 : i32
    %c0_i32_0 = arith.constant 0 : i32
    %c0_i32_1 = arith.constant 0 : i32
    return %c0_i32, %c0_i32_0 : i32, i32
  }
  func.func @transform_3(%arg0: i32) -> (i32, i32) {
    %c0_i32 = arith.constant 0 : i32
    %c0_i32_0 = arith.constant 0 : i32
    %c0_i32_1 = arith.constant 0 : i32
    return %c0_i32, %c0_i32_0 : i32, i32
  }
  func.func @transform_4(%arg0: i32) -> (i32, i32) {
    %c0_i32 = arith.constant 0 : i32
    %c0_i32_0 = arith.constant 0 : i32
    %c0_i32_1 = arith.constant 0 : i32
    return %c0_i32, %c0_i32_0 : i32, i32
  }
  func.func @transform_5(%arg0: i32) -> (i32, i32, i32) {
    %c0_i32 = arith.constant 0 : i32
    %c0_i32_0 = arith.constant 0 : i32
    %c0_i32_1 = arith.constant 0 : i32
    return %arg0, %c0_i32, %c0_i32_0 : i32, i32, i32
  }
  func.func @transform_6(%arg0: i32) -> (i32, i32, i32) {
    %c0_i32 = arith.constant 0 : i32
    %c0_i32_0 = arith.constant 0 : i32
    %c0_i32_1 = arith.constant 0 : i32
    return %arg0, %c0_i32, %c0_i32_0 : i32, i32, i32
  }
}

</mosaic_0001>

<llo_original>
// kernel: residual_block.4
$region0: #{residual_block.4}
  #allocation0 [shape = 'u32[]', space=smem, size = 0x4, offset = 0x4, fixed_abs, tag = 'smem constant byte address 0x4 - core index']
  #allocation1 [shape = 'u32[144,128]{1,0:T(1,128)}', space=vmem, size = 0x12000, scoped, tag = 'internal scratch']
  %s0 = inlined_call_operand.vmem [shape: f32[2,4,1000], index: 0, kind: input, shape index: {}]
  %s1 = inlined_call_operand.vmem [shape: f32[4,1], index: 1, kind: output, shape index: {0}]
  %s2 = inlined_call_operand.vmem [shape: f32[4,1], index: 2, kind: output, shape index: {1}]
  %3 = xla_tuple %s1, %s2
  %s4 = sld [smem:[#allocation0]]
  $region49: #{residual_block.4} parent=0
    _
  %s6 = ssub.s32 1, %s4
  %s7 = scalar_select 0, %s6, %s4
  loop: start=0, step=1, limit=4
  $region2: #{residual_block.4} parent=0 // loop_pre_header
    _
  $region3: #{residual_block.4} parent=0 // loop_header
    %s9 = sphi 0, %s13
    %p10 = scmp.ge.s32.totalorder %s9, 4
    %s19 = sphi 0, %s21
    %s22 = sphi 0, %s19
    %s23 = sphi 0, %s22
    %s39 = sphi 0, %s23
    %s43 = sphi 0, %s43
    %s45 = sphi 0, %s43
    %s46 = sphi 0, %s45
    %s60 = sphi 0, %s46
    %s64 = sphi 0, %s64
    %s66 = sphi 0, %s64
    %s67 = sphi 0, %s66
    %s81 = sphi 0, %s67
  $region4: #{residual_block.4} parent=0 // loop_header_branch
    %12 = sbr.rel (%p10) target = $region8
  $region5: #{residual_block.4} parent=0 // loop_body
    %s14 = ssub.s32 %s9, 1
    %s15 = ssub.s32 %s9, 2
    %s16 = sadd.s32 %s9, 1
    %s17 = ssub.s32 %s9, %s16
    %p18 = scmp.eq.s32.totalorder %s17, 0
    %s20 = sadd.s32 %s19, 1
    %s21 = scalar_select %p18, %s19, %s20
    %p24 = pneg %p18
    %p25 = scmp.eq.s32.totalorder %s9, 1
    %p26 = por %p24, %p25
    %p27 = scmp.ne.s32.totalorder %s19, %s22
    %p28 = scmp.eq.s32.totalorder %s9, 0
    %p29 = por %p27, %p28
    %p30 = scmp.ne.s32.totalorder %s19, %s22
    %p31 = scmp.eq.s32.totalorder %s14, 1
    %p32 = por %p30, %p31
    %p33 = scmp.ne.s32.totalorder %s22, %s23
    %p34 = scmp.eq.s32.totalorder %s14, 0
    %p35 = por %p33, %p34
    %p36 = scmp.ne.s32.totalorder %s22, %s23
    %p37 = scmp.eq.s32.totalorder %s15, 1
    %p38 = por %p36, %p37
    %p40 = scmp.ne.s32.totalorder %s23, %s39
    %p41 = scmp.eq.s32.totalorder %s15, 0
    %p42 = por %p40, %p41
    %s44 = sadd.s32 %s43, 1
    %p47 = scmp.eq.s32.totalorder %s9, 1
    %p48 = scmp.ne.s32.totalorder %s43, %s45
    %p49 = scmp.eq.s32.totalorder %s9, 0
    %p50 = por %p48, %p49
    %p51 = scmp.ne.s32.totalorder %s43, %s45
    %p52 = scmp.eq.s32.totalorder %s14, 1
    %p53 = por %p51, %p52
    %p54 = scmp.ne.s32.totalorder %s45, %s46
    %p55 = scmp.eq.s32.totalorder %s14, 0
    %p56 = por %p54, %p55
    %p57 = scmp.ne.s32.totalorder %s45, %s46
    %p58 = scmp.eq.s32.totalorder %s15, 1
    %p59 = por %p57, %p58
    %p61 = scmp.ne.s32.totalorder %s46, %s60
    %p62 = scmp.eq.s32.totalorder %s15, 0
    %p63 = por %p61, %p62
    %s65 = sadd.s32 %s64, 1
    %p68 = scmp.eq.s32.totalorder %s9, 1
    %p69 = scmp.ne.s32.totalorder %s64, %s66
    %p70 = scmp.eq.s32.totalorder %s9, 0
    %p71 = por %p69, %p70
    %p72 = scmp.ne.s32.totalorder %s64, %s66
    %p73 = scmp.eq.s32.totalorder %s14, 1
    %p74 = por %p72, %p73
    %p75 = scmp.ne.s32.totalorder %s66, %s67
    %p76 = scmp.eq.s32.totalorder %s14, 0
    %p77 = por %p75, %p76
    %p78 = scmp.ne.s32.totalorder %s66, %s67
    %p79 = scmp.eq.s32.totalorder %s15, 1
    %p80 = por %p78, %p79
    %p82 = scmp.ne.s32.totalorder %s67, %s81
    %p83 = scmp.eq.s32.totalorder %s15, 0
    %p84 = por %p82, %p83
    %p85 = scmp.le.s32.totalorder 1, %s9
    %p86 = scmp.lt.s32.totalorder %s9, 3
    %p87 = pnand %p85, %p86
    %p88 = pneg %p87
    // Predicated region
    $region9: #{residual_block.4} parent=5 // pred_check
      _
    $region10: #{residual_block.4} parent=5 // pred_check_branch
      %90 = sbr.rel (%p87) target = $region12
    $region11: #{residual_block.4} parent=5 // pred_region
      %s91 = ssub.s32 %s9, 1
    $region12: #{residual_block.4} parent=5 // pred_fallthru
      _
    %p92 = scmp.lt.s32.totalorder %s9, 2
    // Predicated region
    $region13: #{residual_block.4} parent=5 // pred_check
      %p93 = pneg %p92
    $region14: #{residual_block.4} parent=5 // pred_check_branch
      %95 = sbr.rel (%p93) target = $region16
    $region15: #{residual_block.4} parent=5 // pred_region
      // Predicated region
      $region17: #{residual_block.4} parent=15 // pred_check
        %p96 = pneg %p29
      $region18: #{residual_block.4} parent=15 // pred_check_branch
        %98 = sbr.rel (%p96) target = $region20
      $region19: #{residual_block.4} parent=15 // pred_region
        %p99 = scmp.lt.s32.totalorder %s9, 1
        %s100 = scalar_select %p99, %s9, 1
        %s101 = smul.addr %s100, 8
        %s102 = smul.addr %s101, 4
        %s103 = scalar_lea.vmem %s0, %s102
      $region20: #{residual_block.4} parent=15 // pred_fallthru
        _
    $region16: #{residual_block.4} parent=5 // pred_fallthru
      _
    %p104 = scmp.le.s32.totalorder 1, %s9
    %p105 = scmp.lt.s32.totalorder %s9, 3
    %p106 = pnand %p104, %p105
    %p107 = pneg %p106
    // Predicated region
    $region21: #{residual_block.4} parent=5 // pred_check
      _
    $region22: #{residual_block.4} parent=5 // pred_check_branch
      %109 = sbr.rel (%p106) target = $region24
    $region23: #{residual_block.4} parent=5 // pred_region
      %s110 = ssub.s32 %s9, 1
      %p111 = scmp.lt.s32.totalorder %s14, 1
      %s112 = scalar_select %p111, %s14, 1
      %s113 = smul.addr %s112, 8
      %s114 = smul.addr %s113, 4
      %s115 = scalar_lea.vmem %s0, %s114
      %p116 = pneg %p35
      %p117 = pneg %p32
      %p118 = pneg %p56
      %p119 = pneg %p53
      %p120 = pneg %p77
      %p121 = pneg %p74
      %p122 = scmp.lt.s32.totalorder %s14, 1
      %s123 = scalar_select %p122, %s14, 1
      %s124 = smul.addr %s123, 8
      %s125 = smul.addr %s124, 4
      %s126 = scalar_lea.vmem %s0, %s125
      %p127 = scmp.eq.s32.totalorder %s14, 0
      // Predicated region
      $region25: #{residual_block.4} parent=23 // pred_check
        %p128 = pneg %p127
      $region26: #{residual_block.4} parent=23 // pred_check_branch
        %130 = sbr.rel (%p128) target = $region28
      $region27: #{residual_block.4} parent=23 // pred_region
        %vm131 = vcmask 3072
        %132 = vst.msk [vmem:[%s1] sm:$0xf] %vm131, 0.0
        %133 = vst.msk [vmem:[%s2] sm:$0xf] %vm131, 0.0
      $region28: #{residual_block.4} parent=23 // pred_fallthru
        _
      %v134 = vld [vmem:[%s126] sm:$0xff]
      %v135 = vld [vmem:[%s126 + $0x8] sm:$0xff]
      %v136 = vld [vmem:[%s126 + $0x10] sm:$0xff]
      %v137 = vld [vmem:[%s126 + $0x18] sm:$0xff]
      %v138 = vld [vmem:[%s1] sm:$0xf]
      %v143 = vcombine.high %v134, %v134
      %v144 = vcombine.high %v135, %v135
      %v145 = vcombine.high %v136, %v136
      %v146 = vcombine.high %v137, %v137
      %vm151 = vcmask 1043456
      %v152 = vsel %vm151, %v134, 0.0
      %v153 = vsel %vm151, %v143, 0.0
      %v154 = vadd.f32 %v152, %v153
      %v155 = vsel %vm151, %v135, 0.0
      %v156 = vadd.f32 %v154, %v155
      %v157 = vsel %vm151, %v144, 0.0
      %v158 = vadd.f32 %v156, %v157
      %v159 = vsel %vm151, %v136, 0.0
      %v160 = vadd.f32 %v158, %v159
      %v161 = vsel %vm151, %v145, 0.0
      %v162 = vadd.f32 %v160, %v161
      %v163 = vsel %vm151, %v137, 0.0
      %v164 = vadd.f32 %v162, %v163
      %vm165 = vcmask 846848
      %v166 = vsel %vm165, %v146, 0.0
      %v167 = vadd.f32 %v164, %v166
      %168 = vadd.xlane.f32.xlu0 %v167
      %v169 = vpop.xlane.xlu0 %168
      %v170 = vadd.f32 %v138, %v169
      %vm171 = vcmask 3072
      %172 = vst.msk [vmem:[%s1] sm:$0xf] %vm171, %v170
      %v173 = vld [vmem:[%s2] sm:$0xf]
      %v174 = vmul.f32 %v134, %v134
      %v175 = vmul.f32 %v135, %v135
      %v176 = vmul.f32 %v136, %v136
      %v177 = vmul.f32 %v137, %v137
      %v182 = vcombine.high %v174, %v174
      %v183 = vcombine.high %v175, %v175
      %v184 = vcombine.high %v176, %v176
      %v185 = vcombine.high %v177, %v177
      %v190 = vsel %vm151, %v174, 0.0
      %v191 = vsel %vm151, %v182, 0.0
      %v192 = vadd.f32 %v190, %v191
      %v193 = vsel %vm151, %v175, 0.0
      %v194 = vadd.f32 %v192, %v193
      %v195 = vsel %vm151, %v183, 0.0
      %v196 = vadd.f32 %v194, %v195
      %v197 = vsel %vm151, %v176, 0.0
      %v198 = vadd.f32 %v196, %v197
      %v199 = vsel %vm151, %v184, 0.0
      %v200 = vadd.f32 %v198, %v199
      %v201 = vsel %vm151, %v177, 0.0
      %v202 = vadd.f32 %v200, %v201
      %v203 = vsel %vm165, %v185, 0.0
      %v204 = vadd.f32 %v202, %v203
      %205 = vadd.xlane.f32.xlu0 %v204
      %v206 = vpop.xlane.xlu0 %205
      %v207 = vadd.f32 %v173, %v206
      %208 = vst.msk [vmem:[%s2] sm:$0xf] %vm171, %v207
      // Predicated region
      $region29: #{residual_block.4} parent=23 // pred_check
        %p209 = pneg %p53
      $region30: #{residual_block.4} parent=23 // pred_check_branch
        %211 = sbr.rel (%p209) target = $region32
      $region31: #{residual_block.4} parent=23 // pred_region
        _
      $region32: #{residual_block.4} parent=23 // pred_fallthru
        _
      // Predicated region
      $region33: #{residual_block.4} parent=23 // pred_check
        %p212 = pneg %p74
      $region34: #{residual_block.4} parent=23 // pred_check_branch
        %214 = sbr.rel (%p212) target = $region36
      $region35: #{residual_block.4} parent=23 // pred_region
        _
      $region36: #{residual_block.4} parent=23 // pred_fallthru
        _
      // Predicated region
      $region37: #{residual_block.4} parent=23 // pred_check
        %p215 = pneg %p53
      $region38: #{residual_block.4} parent=23 // pred_check_branch
        %217 = sbr.rel (%p215) target = $region40
      $region39: #{residual_block.4} parent=23 // pred_region
        _
      $region40: #{residual_block.4} parent=23 // pred_fallthru
        _
      // Predicated region
      $region41: #{residual_block.4} parent=23 // pred_check
        %p218 = pneg %p74
      $region42: #{residual_block.4} parent=23 // pred_check_branch
        %220 = sbr.rel (%p218) target = $region44
      $region43: #{residual_block.4} parent=23 // pred_region
        _
      $region44: #{residual_block.4} parent=23 // pred_fallthru
        _
    $region24: #{residual_block.4} parent=5 // pred_fallthru
      _
    %p221 = scmp.le.s32.totalorder 2, %s9
    // Predicated region
    $region45: #{residual_block.4} parent=5 // pred_check
      %p222 = pneg %p221
    $region46: #{residual_block.4} parent=5 // pred_check_branch
      %224 = sbr.rel (%p222) target = $region48
    $region47: #{residual_block.4} parent=5 // pred_region
      %s225 = ssub.s32 %s9, 2
    $region48: #{residual_block.4} parent=5 // pred_fallthru
      _
  $region6: #{residual_block.4} parent=0 // loop_footer
    %s13 = sadd.s32 1, %s9
  $region7: #{residual_block.4} parent=0 // loop_footer_branch
    %8 = sbr.rel target = $region3
  $region8: #{residual_block.4} parent=0 // loop_exit
    _

// kernel: residual_block.5
$region0: #{residual_block.5}
  #allocation0 [shape = 'u32[]', space=smem, size = 0x4, offset = 0x4, fixed_abs, tag = 'smem constant byte address 0x4 - core index']
  #allocation1 [shape = 'u32[144,128]{1,0:T(1,128)}', space=vmem, size = 0x12000, scoped, tag = 'internal scratch']
  #allocation2 [shape = 'f32[4,1280]{1,0:T(4,128)}', space=vmem, size = 0x5000, scoped, tag = 'scratch operand']
  #allocation3 [shape = 'f32[108,1000]{1,0:T(8,128)}', space=vmem, size = 0x70000, scoped, tag = 'scratch operand']
  %s0 = inlined_call_operand.vmem [shape: f32[2,4,1000], index: 0, kind: input, shape index: {}]
  %s1 = inlined_call_operand.vmem [shape: f32[4,2], index: 1, kind: input, shape index: {}]
  %s2 = inlined_call_operand.vmem [shape: f32[4,108], index: 2, kind: input, shape index: {}]
  %s3 = inlined_call_operand.vmem [shape: f32[4,1], index: 3, kind: input, shape index: {}]
  %s4 = inlined_call_operand.vmem [shape: f32[1,1000], index: 4, kind: input, shape index: {}]
  %s5 = inlined_call_operand.vmem [shape: f32[2,4,1000], index: 5, kind: output, shape index: {}]
  %s6 = sld [smem:[#allocation0]]
  $region53: #{residual_block.5} parent=0
    _
  %s8 = ssub.s32 1, %s6
  %s9 = scalar_select 0, %s8, %s6
  loop: start=0, step=1, limit=4
  $region2: #{residual_block.5} parent=0 // loop_pre_header
    _
  $region3: #{residual_block.5} parent=0 // loop_header
    %s11 = sphi 0, %s15
    %p12 = scmp.ge.s32.totalorder %s11, 4
    %s21 = sphi 0, %s23
    %s24 = sphi 0, %s21
    %s25 = sphi 0, %s24
    %s41 = sphi 0, %s25
    %s45 = sphi 0, %s45
    %s47 = sphi 0, %s45
    %s48 = sphi 0, %s47
    %s62 = sphi 0, %s48
    %s66 = sphi 0, %s66
    %s68 = sphi 0, %s66
    %s69 = sphi 0, %s68
    %s83 = sphi 0, %s69
    %s87 = sphi 0, %s87
    %s89 = sphi 0, %s87
    %s90 = sphi 0, %s89
    %s104 = sphi 0, %s90
    %s108 = sphi 0, %s108
    %s110 = sphi 0, %s108
    %s111 = sphi 0, %s110
    %s125 = sphi 0, %s111
    %s131 = sphi 0, %s133
    %s134 = sphi 0, %s131
    %s135 = sphi 0, %s134
    %s151 = sphi 0, %s135
  $region4: #{residual_block.5} parent=0 // loop_header_branch
    %14 = sbr.rel (%p12) target = $region8
  $region5: #{residual_block.5} parent=0 // loop_body
    %s16 = ssub.s32 %s11, 1
    %s17 = ssub.s32 %s11, 2
    %s18 = sadd.s32 %s11, 1
    %s19 = ssub.s32 %s11, %s18
    %p20 = scmp.eq.s32.totalorder %s19, 0
    %s22 = sadd.s32 %s21, 1
    %s23 = scalar_select %p20, %s21, %s22
    %p26 = pneg %p20
    %p27 = scmp.eq.s32.totalorder %s11, 1
    %p28 = por %p26, %p27
    %p29 = scmp.ne.s32.totalorder %s21, %s24
    %p30 = scmp.eq.s32.totalorder %s11, 0
    %p31 = por %p29, %p30
    %p32 = scmp.ne.s32.totalorder %s21, %s24
    %p33 = scmp.eq.s32.totalorder %s16, 1
    %p34 = por %p32, %p33
    %p35 = scmp.ne.s32.totalorder %s24, %s25
    %p36 = scmp.eq.s32.totalorder %s16, 0
    %p37 = por %p35, %p36
    %p38 = scmp.ne.s32.totalorder %s24, %s25
    %p39 = scmp.eq.s32.totalorder %s17, 1
    %p40 = por %p38, %p39
    %p42 = scmp.ne.s32.totalorder %s25, %s41
    %p43 = scmp.eq.s32.totalorder %s17, 0
    %p44 = por %p42, %p43
    %s46 = sadd.s32 %s45, 1
    %p49 = scmp.eq.s32.totalorder %s11, 1
    %p50 = scmp.ne.s32.totalorder %s45, %s47
    %p51 = scmp.eq.s32.totalorder %s11, 0
    %p52 = por %p50, %p51
    %p53 = scmp.ne.s32.totalorder %s45, %s47
    %p54 = scmp.eq.s32.totalorder %s16, 1
    %p55 = por %p53, %p54
    %p56 = scmp.ne.s32.totalorder %s47, %s48
    %p57 = scmp.eq.s32.totalorder %s16, 0
    %p58 = por %p56, %p57
    %p59 = scmp.ne.s32.totalorder %s47, %s48
    %p60 = scmp.eq.s32.totalorder %s17, 1
    %p61 = por %p59, %p60
    %p63 = scmp.ne.s32.totalorder %s48, %s62
    %p64 = scmp.eq.s32.totalorder %s17, 0
    %p65 = por %p63, %p64
    %s67 = sadd.s32 %s66, 1
    %p70 = scmp.eq.s32.totalorder %s11, 1
    %p71 = scmp.ne.s32.totalorder %s66, %s68
    %p72 = scmp.eq.s32.totalorder %s11, 0
    %p73 = por %p71, %p72
    %p74 = scmp.ne.s32.totalorder %s66, %s68
    %p75 = scmp.eq.s32.totalorder %s16, 1
    %p76 = por %p74, %p75
    %p77 = scmp.ne.s32.totalorder %s68, %s69
    %p78 = scmp.eq.s32.totalorder %s16, 0
    %p79 = por %p77, %p78
    %p80 = scmp.ne.s32.totalorder %s68, %s69
    %p81 = scmp.eq.s32.totalorder %s17, 1
    %p82 = por %p80, %p81
    %p84 = scmp.ne.s32.totalorder %s69, %s83
    %p85 = scmp.eq.s32.totalorder %s17, 0
    %p86 = por %p84, %p85
    %s88 = sadd.s32 %s87, 1
    %p91 = scmp.eq.s32.totalorder %s11, 1
    %p92 = scmp.ne.s32.totalorder %s87, %s89
    %p93 = scmp.eq.s32.totalorder %s11, 0
    %p94 = por %p92, %p93
    %p95 = scmp.ne.s32.totalorder %s87, %s89
    %p96 = scmp.eq.s32.totalorder %s16, 1
    %p97 = por %p95, %p96
    %p98 = scmp.ne.s32.totalorder %s89, %s90
    %p99 = scmp.eq.s32.totalorder %s16, 0
    %p100 = por %p98, %p99
    %p101 = scmp.ne.s32.totalorder %s89, %s90
    %p102 = scmp.eq.s32.totalorder %s17, 1
    %p103 = por %p101, %p102
    %p105 = scmp.ne.s32.totalorder %s90, %s104
    %p106 = scmp.eq.s32.totalorder %s17, 0
    %p107 = por %p105, %p106
    %s109 = sadd.s32 %s108, 1
    %p112 = scmp.eq.s32.totalorder %s11, 1
    %p113 = scmp.ne.s32.totalorder %s108, %s110
    %p114 = scmp.eq.s32.totalorder %s11, 0
    %p115 = por %p113, %p114
    %p116 = scmp.ne.s32.totalorder %s108, %s110
    %p117 = scmp.eq.s32.totalorder %s16, 1
    %p118 = por %p116, %p117
    %p119 = scmp.ne.s32.totalorder %s110, %s111
    %p120 = scmp.eq.s32.totalorder %s16, 0
    %p121 = por %p119, %p120
    %p122 = scmp.ne.s32.totalorder %s110, %s111
    %p123 = scmp.eq.s32.totalorder %s17, 1
    %p124 = por %p122, %p123
    %p126 = scmp.ne.s32.totalorder %s111, %s125
    %p127 = scmp.eq.s32.totalorder %s17, 0
    %p128 = por %p126, %p127
    %s129 = ssub.s32 %s11, %s18
    %p130 = scmp.eq.s32.totalorder %s129, 0
    %s132 = sadd.s32 %s131, 1
    %s133 = scalar_select %p130, %s131, %s132
    %p136 = pneg %p130
    %p137 = scmp.eq.s32.totalorder %s11, 1
    %p138 = por %p136, %p137
    %p139 = scmp.ne.s32.totalorder %s131, %s134
    %p140 = scmp.eq.s32.totalorder %s11, 0
    %p141 = por %p139, %p140
    %p142 = scmp.ne.s32.totalorder %s131, %s134
    %p143 = scmp.eq.s32.totalorder %s16, 1
    %p144 = por %p142, %p143
    %p145 = scmp.ne.s32.totalorder %s134, %s135
    %p146 = scmp.eq.s32.totalorder %s16, 0
    %p147 = por %p145, %p146
    %p148 = scmp.ne.s32.totalorder %s134, %s135
    %p149 = scmp.eq.s32.totalorder %s17, 1
    %p150 = por %p148, %p149
    %p152 = scmp.ne.s32.totalorder %s135, %s151
    %p153 = scmp.eq.s32.totalorder %s17, 0
    %p154 = por %p152, %p153
    %p155 = scmp.le.s32.totalorder 1, %s11
    %p156 = scmp.lt.s32.totalorder %s11, 3
    %p157 = pnand %p155, %p156
    %p158 = pneg %p157
    // Predicated region
    $region9: #{residual_block.5} parent=5 // pred_check
      _
    $region10: #{residual_block.5} parent=5 // pred_check_branch
      %160 = sbr.rel (%p157) target = $region12
    $region11: #{residual_block.5} parent=5 // pred_region
      %s161 = ssub.s32 %s11, 1
      // Predicated region
      $region13: #{residual_block.5} parent=11 // pred_check
        %p162 = pneg %p58
      $region14: #{residual_block.5} parent=11 // pred_check_branch
        %164 = sbr.rel (%p162) target = $region16
      $region15: #{residual_block.5} parent=11 // pred_region
        _
      $region16: #{residual_block.5} parent=11 // pred_fallthru
        _
      // Predicated region
      $region17: #{residual_block.5} parent=11 // pred_check
        %p165 = pneg %p79
      $region18: #{residual_block.5} parent=11 // pred_check_branch
        %167 = sbr.rel (%p165) target = $region20
      $region19: #{residual_block.5} parent=11 // pred_region
        _
      $region20: #{residual_block.5} parent=11 // pred_fallthru
        _
      // Predicated region
      $region21: #{residual_block.5} parent=11 // pred_check
        %p168 = pneg %p100
      $region22: #{residual_block.5} parent=11 // pred_check_branch
        %170 = sbr.rel (%p168) target = $region24
      $region23: #{residual_block.5} parent=11 // pred_region
        _
      $region24: #{residual_block.5} parent=11 // pred_fallthru
        _
      // Predicated region
      $region25: #{residual_block.5} parent=11 // pred_check
        %p171 = pneg %p121
      $region26: #{residual_block.5} parent=11 // pred_check_branch
        %173 = sbr.rel (%p171) target = $region28
      $region27: #{residual_block.5} parent=11 // pred_region
        _
      $region28: #{residual_block.5} parent=11 // pred_fallthru
        _
    $region12: #{residual_block.5} parent=5 // pred_fallthru
      _
    %p174 = scmp.lt.s32.totalorder %s11, 2
    // Predicated region
    $region29: #{residual_block.5} parent=5 // pred_check
      %p175 = pneg %p174
    $region30: #{residual_block.5} parent=5 // pred_check_branch
      %177 = sbr.rel (%p175) target = $region32
    $region31: #{residual_block.5} parent=5 // pred_region
      // Predicated region
      $region33: #{residual_block.5} parent=31 // pred_check
        %p178 = pneg %p31
      $region34: #{residual_block.5} parent=31 // pred_check_branch
        %180 = sbr.rel (%p178) target = $region36
      $region35: #{residual_block.5} parent=31 // pred_region
        %p181 = scmp.lt.s32.totalorder %s11, 1
        %s182 = scalar_select %p181, %s11, 1
        %s183 = smul.addr %s182, 8
        %s184 = smul.addr %s183, 4
        %s185 = scalar_lea.vmem %s0, %s184
      $region36: #{residual_block.5} parent=31 // pred_fallthru
        _
    $region32: #{residual_block.5} parent=5 // pred_fallthru
      _
    %p186 = scmp.le.s32.totalorder 1, %s11
    %p187 = scmp.lt.s32.totalorder %s11, 3
    %p188 = pnand %p186, %p187
    %p189 = pneg %p188
    // Predicated region
    $region37: #{residual_block.5} parent=5 // pred_check
      _
    $region38: #{residual_block.5} parent=5 // pred_check_branch
      %191 = sbr.rel (%p188) target = $region40
    $region39: #{residual_block.5} parent=5 // pred_region
      %s192 = ssub.s32 %s11, 1
      %p193 = scmp.lt.s32.totalorder %s16, 1
      %s194 = scalar_select %p193, %s16, 1
      %s195 = smul.addr %s194, 8
      %s196 = smul.addr %s195, 4
      %s197 = scalar_lea.vmem %s0, %s196
      %p198 = pneg %p37
      %p199 = pneg %p34
      %p200 = pneg %p58
      %p201 = pneg %p55
      %p202 = pneg %p79
      %p203 = pneg %p76
      %p204 = pneg %p100
      %p205 = pneg %p97
      %p206 = pneg %p121
      %p207 = pneg %p118
      %p208 = pneg %p147
      %p209 = pneg %p144
      %p210 = scmp.lt.s32.totalorder %s16, 1
      %s211 = scalar_select %p210, %s16, 1
      %s212 = smul.addr %s211, 8
      %s213 = smul.addr %s212, 4
      %s214 = scalar_lea.vmem %s5, %s213
      %p215 = scmp.lt.s32.totalorder %s16, 1
      %s216 = scalar_select %p215, %s16, 1
      %s217 = smul.addr %s216, 8
      %s218 = smul.addr %s217, 4
      %s219 = scalar_lea.vmem %s0, %s218
      %p220 = scmp.lt.s32.totalorder %s16, 1
      %s221 = scalar_select %p220, %s16, 1
      %s222 = smul.addr %s221, 8
      %s223 = smul.addr %s222, 4
      %s224 = scalar_lea.vmem %s5, %s223
      %v225 = vld [vmem:[%s1] sm:$0xf]
      %v226 = vld [vmem:[%s4] sm:$0xff]
      %v227 = vld [vmem:[%s219] sm:$0xff]
      %v228 = vld [vmem:[%s219 + $0x8] sm:$0xff]
      %v229 = vld [vmem:[%s219 + $0x10] sm:$0xff]
      %v230 = vld [vmem:[%s219 + $0x18] sm:$0xff]
      %232 = vset.pattern.permute.xlu0 0
      %233 = vperm.xlu0 %232, %v225
      %v234 = vpop.permute.xlu0 %233
      %v236 = vunpack.c.l.s4 839922192
      %v237 = vunpack.c.0.s8 %v236
      %v238 = vlaneseq
      %v239 = vshrl.u32 %v238, 7
      %v240 = vsub.s32 %v237, %v239
      %v241 = vrot.slane %v234, %v240
      %v243 = vmul.f32 %v227, %v241
      %v244 = vmul.f32 %v228, %v241
      %v245 = vmul.f32 %v229, %v241
      %v246 = vmul.f32 %v230, %v241
      %247 = vset.pattern.permute.xlu0 1
      %248 = vperm.xlu0 %247, %v225
      %v249 = vpop.permute.xlu0 %248
      %v251 = vunpack.c.l.s4 839922192
      %v252 = vunpack.c.0.s8 %v251
      %v253 = vlaneseq
      %v254 = vshrl.u32 %v253, 7
      %v255 = vsub.s32 %v252, %v254
      %v256 = vrot.slane %v249, %v255
      %v258 = vadd.f32 %v243, %v256
      %v259 = vadd.f32 %v244, %v256
      %v260 = vadd.f32 %v245, %v256
      %v261 = vadd.f32 %v246, %v256
      %v262 = vmax.f32 %v258, 0.0
      %v263 = vmax.f32 %v259, 0.0
      %v264 = vmax.f32 %v260, 0.0
      %v265 = vmax.f32 %v261, 0.0
      %v267 = vlaneseq
      %v268 = vshrl.u32 %v267, 7
      %v269 = vsub.s32 0, %v268
      %v270 = vrot.slane %v226, %v269
      %v271 = vlaneseq
      %v272 = vshrl.u32 %v271, 7
      %v273 = vsub.s32 1, %v272
      %v274 = vrot.slane %v226, %v273
      %v275 = vlaneseq
      %v276 = vshrl.u32 %v275, 7
      %v277 = vsub.s32 2, %v276
      %v278 = vrot.slane %v226, %v277
      %v279 = vlaneseq
      %v280 = vshrl.u32 %v279, 7
      %v281 = vsub.s32 3, %v280
      %v282 = vrot.slane %v226, %v281
      %v283 = vlaneseq
      %v284 = vshrl.u32 %v283, 7
      %v285 = vsub.s32 4, %v284
      %v286 = vrot.slane %v226, %v285
      %v287 = vlaneseq
      %v288 = vshrl.u32 %v287, 7
      %v289 = vsub.s32 5, %v288
      %v290 = vrot.slane %v226, %v289
      %v291 = vlaneseq
      %v292 = vshrl.u32 %v291, 7
      %v293 = vsub.s32 6, %v292
      %v294 = vrot.slane %v226, %v293
      %v295 = vlaneseq
      %v296 = vshrl.u32 %v295, 7
      %v297 = vsub.s32 7, %v296
      %v298 = vrot.slane %v226, %v297
      %v307 = vcombine.low %v270, %v274
      %v308 = vcombine.low %v278, %v282
      %v309 = vcombine.low %v286, %v290
      %v310 = vcombine.low %v294, %v298
      %v315 = vmul.f32 %v262, %v307
      %v316 = vmul.f32 %v263, %v308
      %v317 = vmul.f32 %v264, %v309
      %v318 = vmul.f32 %v265, %v310
      %319 = vst [vmem:[#allocation2] sm:$0xff] 0.0
      %320 = vst [vmem:[#allocation2 + $0x8] sm:$0xff] 0.0
      %321 = vst [vmem:[#allocation2 + $0x10] sm:$0xff] 0.0
      %322 = vst [vmem:[#allocation2 + $0x18] sm:$0xff] 0.0
      %323 = vst [vmem:[#allocation2 + $0x20] sm:$0xff] 0.0
      %324 = vst [vmem:[#allocation2 + $0x4] sm:$0xff] %v315
      %325 = vst [vmem:[#allocation2 + $0xc] sm:$0xff] %v316
      %326 = vst [vmem:[#allocation2 + $0x14] sm:$0xff] %v317
      %vm327 = vcmask 1043456
      %vm328 = vcmask 850948
      %vm329 = vmor %vm328, %vm327
      %330 = vst.msk [vmem:[#allocation2 + $0x1c] sm:$0xff] %vm329, %v318
      %v331 = vld [vmem:[#allocation2] sm:$0xff]
      %v332 = vld [vmem:[#allocation2 + $0x8] sm:$0xff]
      %v333 = vld [vmem:[#allocation2 + $0x10] sm:$0xff]
      %v334 = vld [vmem:[#allocation2 + $0x18] sm:$0xff]
      %v339 = vcombine.high %v331, %v331
      %v340 = vcombine.high %v332, %v332
      %v341 = vcombine.high %v333, %v333
      %v342 = vcombine.high %v334, %v334
      %343 = vrot.lane.b32.xlu0 %v331, 111
      %v344 = vpop.permute.xlu0 %343
      %345 = vrot.lane.b32.xlu0 %v339, 111
      %v346 = vpop.permute.xlu0 %345
      %347 = vrot.lane.b32.xlu0 %v332, 111
      %v348 = vpop.permute.xlu0 %347
      %349 = vrot.lane.b32.xlu0 %v340, 111
      %v350 = vpop.permute.xlu0 %349
      %351 = vrot.lane.b32.xlu0 %v333, 111
      %v352 = vpop.permute.xlu0 %351
      %353 = vrot.lane.b32.xlu0 %v341, 111
      %v354 = vpop.permute.xlu0 %353
      %355 = vrot.lane.b32.xlu0 %v334, 111
      %v356 = vpop.permute.xlu0 %355
      %357 = vrot.lane.b32.xlu0 %v342, 111
      %v358 = vpop.permute.xlu0 %357
      %vm359 = vcmask 908288
      %v360 = vsel %vm359, %v344, %v346
      %v361 = vsel %vm359, %v346, %v348
      %v362 = vsel %vm359, %v348, %v350
      %v363 = vsel %vm359, %v350, %v352
      %v364 = vsel %vm359, %v352, %v354
      %v365 = vsel %vm359, %v354, %v356
      %v366 = vsel %vm359, %v356, %v358
      %375 = vst [vmem:[#allocation3] sm:$0xf] %v360
      %376 = vst [vmem:[#allocation3 + $0x8] sm:$0xf] %v361
      %377 = vst [vmem:[#allocation3 + $0x10] sm:$0xf] %v362
      %378 = vst [vmem:[#allocation3 + $0x18] sm:$0xf] %v363
      %379 = vst [vmem:[#allocation3 + $0x20] sm:$0xf] %v364
      %380 = vst [vmem:[#allocation3 + $0x28] sm:$0xf] %v365
      %381 = vst [vmem:[#allocation3 + $0x30] sm:$0xf] %v366
      %vm382 = vcmask 846848
      %383 = vst.msk [vmem:[#allocation3 + $0x38] sm:$0xf] %vm382, %v358
      %v384 = vld [vmem:[#allocation2] sm:$0xff]
      %v385 = vld [vmem:[#allocation2 + $0x8] sm:$0xff]
      %v386 = vld [vmem:[#allocation2 + $0x10] sm:$0xff]
      %v387 = vld [vmem:[#allocation2 + $0x18] sm:$0xff]
      %v392 = vcombine.low %v384, %v384
      %v393 = vcombine.low %v385, %v385
      %v394 = vcombine.low %v386, %v386
      %v395 = vcombine.low %v387, %v387
      %396 = vrot.lane.b32.xlu0 %v392, 110
      %v397 = vpop.permute.xlu0 %396
      %398 = vrot.lane.b32.xlu0 %v384, 110
      %v399 = vpop.permute.xlu0 %398
      %400 = vrot.lane.b32.xlu0 %v393, 110
      %v401 = vpop.permute.xlu0 %400
      %402 = vrot.lane.b32.xlu0 %v385, 110
      %v403 = vpop.permute.xlu0 %402
      %404 = vrot.lane.b32.xlu0 %v394, 110
      %v405 = vpop.permute.xlu0 %404
      %406 = vrot.lane.b32.xlu0 %v386, 110
      %v407 = vpop.permute.xlu0 %406
      %408 = vrot.lane.b32.xlu0 %v395, 110
      %v409 = vpop.permute.xlu0 %408
      %410 = vrot.lane.b32.xlu0 %v387, 110
      %v411 = vpop.permute.xlu0 %410
      %vm412 = vcmask 900096
      %v413 = vsel %vm412, %v397, %v399
      %v414 = vsel %vm412, %v399, %v401
      %v415 = vsel %vm412, %v401, %v403
      %v416 = vsel %vm412, %v403, %v405
      %v417 = vsel %vm412, %v405, %v407
      %v418 = vsel %vm412, %v407, %v409
      %v419 = vsel %vm412, %v409, %v411
      %428 = vst [vmem:[#allocation3] sm:$0xf0] %v413
      %429 = vst [vmem:[#allocation3 + $0x8] sm:$0xf0] %v414
      %430 = vst [vmem:[#allocation3 + $0x10] sm:$0xf0] %v415
      %431 = vst [vmem:[#allocation3 + $0x18] sm:$0xf0] %v416
      %432 = vst [vmem:[#allocation3 + $0x20] sm:$0xf0] %v417
      %433 = vst [vmem:[#allocation3 + $0x28] sm:$0xf0] %v418
      %434 = vst [vmem:[#allocation3 + $0x30] sm:$0xf0] %v419
      %435 = vst.msk [vmem:[#allocation3 + $0x38] sm:$0xf0] %vm328, %v411
      %v436 = vld [vmem:[#allocation2] sm:$0xff]
      %v437 = vld [vmem:[#allocation2 + $0x8] sm:$0xff]
      %v438 = vld [vmem:[#allocation2 + $0x10] sm:$0xff]
      %v439 = vld [vmem:[#allocation2 + $0x18] sm:$0xff]
      %v444 = vcombine.high %v436, %v436
      %v445 = vcombine.high %v437, %v437
      %v446 = vcombine.high %v438, %v438
      %v447 = vcombine.high %v439, %v439
      %448 = vrot.lane.b32.xlu0 %v436, 109
      %v449 = vpop.permute.xlu0 %448
      %450 = vrot.lane.b32.xlu0 %v444, 109
      %v451 = vpop.permute.xlu0 %450
      %452 = vrot.lane.b32.xlu0 %v437, 109
      %v453 = vpop.permute.xlu0 %452
      %454 = vrot.lane.b32.xlu0 %v445, 109
      %v455 = vpop.permute.xlu0 %454
      %456 = vrot.lane.b32.xlu0 %v438, 109
      %v457 = vpop.permute.xlu0 %456
      %458 = vrot.lane.b32.xlu0 %v446, 109
      %v459 = vpop.permute.xlu0 %458
      %460 = vrot.lane.b32.xlu0 %v439, 109
      %v461 = vpop.permute.xlu0 %460
      %462 = vrot.lane.b32.xlu0 %v447, 109
      %v463 = vpop.permute.xlu0 %462
      %vm464 = vcmask 891904
      %v465 = vsel %vm464, %v449, %v451
      %v466 = vsel %vm464, %v451, %v453
      %v467 = vsel %vm464, %v453, %v455
      %v468 = vsel %vm464, %v455, %v457
      %v469 = vsel %vm464, %v457, %v459
      %v470 = vsel %vm464, %v459, %v461
      %v471 = vsel %vm464, %v461, %v463
      %480 = vst [vmem:[#allocation3 + $0x40] sm:$0xf] %v465
      %481 = vst [vmem:[#allocation3 + $0x48] sm:$0xf] %v466
      %482 = vst [vmem:[#allocation3 + $0x50] sm:$0xf] %v467
      %483 = vst [vmem:[#allocation3 + $0x58] sm:$0xf] %v468
      %484 = vst [vmem:[#allocation3 + $0x60] sm:$0xf] %v469
      %485 = vst [vmem:[#allocation3 + $0x68] sm:$0xf] %v470
      %486 = vst [vmem:[#allocation3 + $0x70] sm:$0xf] %v471
      %487 = vst.msk [vmem:[#allocation3 + $0x78] sm:$0xf] %vm382, %v463
      %v488 = vld [vmem:[#allocation2] sm:$0xff]
      %v489 = vld [vmem:[#allocation2 + $0x8] sm:$0xff]
      %v490 = vld [vmem:[#allocation2 + $0x10] sm:$0xff]
      %v491 = vld [vmem:[#allocation2 + $0x18] sm:$0xff]
      %v492 = vld [vmem:[#allocation2 + $0x20] sm:$0xf]
      %v498 = vcombine.low %v488, %v488
      %v499 = vcombine.low %v489, %v489
      %v500 = vcombine.low %v490, %v490
      %v501 = vcombine.low %v491, %v491
      %v502 = vcombine.low %v492, %v492
      %503 = vrot.lane.b32.xlu0 %v498, 101
      %v504 = vpop.permute.xlu0 %503
      %505 = vrot.lane.b32.xlu0 %v488, 101
      %v506 = vpop.permute.xlu0 %505
      %507 = vrot.lane.b32.xlu0 %v499, 101
      %v508 = vpop.permute.xlu0 %507
      %509 = vrot.lane.b32.xlu0 %v489, 101
      %v510 = vpop.permute.xlu0 %509
      %511 = vrot.lane.b32.xlu0 %v500, 101
      %v512 = vpop.permute.xlu0 %511
      %513 = vrot.lane.b32.xlu0 %v490, 101
      %v514 = vpop.permute.xlu0 %513
      %515 = vrot.lane.b32.xlu0 %v501, 101
      %v516 = vpop.permute.xlu0 %515
      %517 = vrot.lane.b32.xlu0 %v491, 101
      %v518 = vpop.permute.xlu0 %517
      %519 = vrot.lane.b32.xlu0 %v502, 101
      %v520 = vpop.permute.xlu0 %519
      %vm521 = vcmask 826368
      %v522 = vsel %vm521, %v504, %v506
      %v523 = vsel %vm521, %v506, %v508
      %v524 = vsel %vm521, %v508, %v510
      %v525 = vsel %vm521, %v510, %v512
      %v526 = vsel %vm521, %v512, %v514
      %v527 = vsel %vm521, %v514, %v516
      %v528 = vsel %vm521, %v516, %v518
      %v529 = vsel %vm521, %v518, %v520
      %538 = vst [vmem:[#allocation3 + $0x40] sm:$0xf0] %v522
      %539 = vst [vmem:[#allocation3 + $0x48] sm:$0xf0] %v523
      %540 = vst [vmem:[#allocation3 + $0x50] sm:$0xf0] %v524
      %541 = vst [vmem:[#allocation3 + $0x58] sm:$0xf0] %v525
      %542 = vst [vmem:[#allocation3 + $0x60] sm:$0xf0] %v526
      %543 = vst [vmem:[#allocation3 + $0x68] sm:$0xf0] %v527
      %544 = vst [vmem:[#allocation3 + $0x70] sm:$0xf0] %v528
      %545 = vst.msk [vmem:[#allocation3 + $0x78] sm:$0xf0] %vm328, %v529
      %v546 = vld [vmem:[#allocation2] sm:$0xff]
      %v547 = vld [vmem:[#allocation2 + $0x8] sm:$0xff]
      %v548 = vld [vmem:[#allocation2 + $0x10] sm:$0xff]
      %v549 = vld [vmem:[#allocation2 + $0x18] sm:$0xff]
      %v550 = vld [vmem:[#allocation2 + $0x20] sm:$0xf]
      %v556 = vcombine.high %v546, %v546
      %v557 = vcombine.high %v547, %v547
      %v558 = vcombine.high %v548, %v548
      %v559 = vcombine.high %v549, %v549
      %560 = vrot.lane.b32.xlu0 %v546, 100
      %v561 = vpop.permute.xlu0 %560
      %562 = vrot.lane.b32.xlu0 %v556, 100
      %v563 = vpop.permute.xlu0 %562
      %564 = vrot.lane.b32.xlu0 %v547, 100
      %v565 = vpop.permute.xlu0 %564
      %566 = vrot.lane.b32.xlu0 %v557, 100
      %v567 = vpop.permute.xlu0 %566
      %568 = vrot.lane.b32.xlu0 %v548, 100
      %v569 = vpop.permute.xlu0 %568
      %570 = vrot.lane.b32.xlu0 %v558, 100
      %v571 = vpop.permute.xlu0 %570
      %572 = vrot.lane.b32.xlu0 %v549, 100
      %v573 = vpop.permute.xlu0 %572
      %574 = vrot.lane.b32.xlu0 %v559, 100
      %v575 = vpop.permute.xlu0 %574
      %576 = vrot.lane.b32.xlu0 %v550, 100
      %v577 = vpop.permute.xlu0 %576
      %vm578 = vcmask 818176
      %v579 = vsel %vm578, %v561, %v563
      %v580 = vsel %vm578, %v563, %v565
      %v581 = vsel %vm578, %v565, %v567
      %v582 = vsel %vm578, %v567, %v569
      %v583 = vsel %vm578, %v569, %v571
      %v584 = vsel %vm578, %v571, %v573
      %v585 = vsel %vm578, %v573, %v575
      %v586 = vsel %vm578, %v575, %v577
      %595 = vst [vmem:[#allocation3 + $0x80] sm:$0xf] %v579
      %596 = vst [vmem:[#allocation3 + $0x88] sm:$0xf] %v580
      %597 = vst [vmem:[#allocation3 + $0x90] sm:$0xf] %v581
      %598 = vst [vmem:[#allocation3 + $0x98] sm:$0xf] %v582
      %599 = vst [vmem:[#allocation3 + $0xa0] sm:$0xf] %v583
      %600 = vst [vmem:[#allocation3 + $0xa8] sm:$0xf] %v584
      %601 = vst [vmem:[#allocation3 + $0xb0] sm:$0xf] %v585
      %602 = vst.msk [vmem:[#allocation3 + $0xb8] sm:$0xf] %vm382, %v586
      %v603 = vld [vmem:[#allocation2] sm:$0xff]
      %v604 = vld [vmem:[#allocation2 + $0x8] sm:$0xff]
      %v605 = vld [vmem:[#allocation2 + $0x10] sm:$0xff]
      %v606 = vld [vmem:[#allocation2 + $0x18] sm:$0xff]
      %v607 = vld [vmem:[#allocation2 + $0x20] sm:$0xf]
      %v613 = vcombine.low %v603, %v603
      %v614 = vcombine.low %v604, %v604
      %v615 = vcombine.low %v605, %v605
      %v616 = vcombine.low %v606, %v606
      %v617 = vcombine.low %v607, %v607
      %618 = vrot.lane.b32.xlu0 %v613, 99
      %v619 = vpop.permute.xlu0 %618
      %620 = vrot.lane.b32.xlu0 %v603, 99
      %v621 = vpop.permute.xlu0 %620
      %622 = vrot.lane.b32.xlu0 %v614, 99
      %v623 = vpop.permute.xlu0 %622
      %624 = vrot.lane.b32.xlu0 %v604, 99
      %v625 = vpop.permute.xlu0 %624
      %626 = vrot.lane.b32.xlu0 %v615, 99
      %v627 = vpop.permute.xlu0 %626
      %628 = vrot.lane.b32.xlu0 %v605, 99
      %v629 = vpop.permute.xlu0 %628
      %630 = vrot.lane.b32.xlu0 %v616, 99
      %v631 = vpop.permute.xlu0 %630
      %632 = vrot.lane.b32.xlu0 %v606, 99
      %v633 = vpop.permute.xlu0 %632
      %634 = vrot.lane.b32.xlu0 %v617, 99
      %v635 = vpop.permute.xlu0 %634
      %vm636 = vcmask 809984
      %v637 = vsel %vm636, %v619, %v621
      %v638 = vsel %vm636, %v621, %v623
      %v639 = vsel %vm636, %v623, %v625
      %v640 = vsel %vm636, %v625, %v627
      %v641 = vsel %vm636, %v627, %v629
      %v642 = vsel %vm636, %v629, %v631
      %v643 = vsel %vm636, %v631, %v633
      %v644 = vsel %vm636, %v633, %v635
      %653 = vst [vmem:[#allocation3 + $0x80] sm:$0xf0] %v637
      %654 = vst [vmem:[#allocation3 + $0x88] sm:$0xf0] %v638
      %655 = vst [vmem:[#allocation3 + $0x90] sm:$0xf0] %v639
      %656 = vst [vmem:[#allocation3 + $0x98] sm:$0xf0] %v640
      %657 = vst [vmem:[#allocation3 + $0xa0] sm:$0xf0] %v641
      %658 = vst [vmem:[#allocation3 + $0xa8] sm:$0xf0] %v642
      %659 = vst [vmem:[#allocation3 + $0xb0] sm:$0xf0] %v643
      %660 = vst.msk [vmem:[#allocation3 + $0xb8] sm:$0xf0] %vm328, %v644
      %v661 = vld [vmem:[#allocation2] sm:$0xff]
      %v662 = vld [vmem:[#allocation2 + $0x8] sm:$0xff]
      %v663 = vld [vmem:[#allocation2 + $0x10] sm:$0xff]
      %v664 = vld [vmem:[#allocation2 + $0x18] sm:$0xff]
      %v665 = vld [vmem:[#allocation2 + $0x20] sm:$0xf]
      %v671 = vcombine.high %v661, %v661
      %v672 = vcombine.high %v662, %v662
      %v673 = vcombine.high %v663, %v663
      %v674 = vcombine.high %v664, %v664
      %675 = vrot.lane.b32.xlu0 %v661, 91
      %v676 = vpop.permute.xlu0 %675
      %677 = vrot.lane.b32.xlu0 %v671, 91
      %v678 = vpop.permute.xlu0 %677
      %679 = vrot.lane.b32.xlu0 %v662, 91
      %v680 = vpop.permute.xlu0 %679
      %681 = vrot.lane.b32.xlu0 %v672, 91
      %v682 = vpop.permute.xlu0 %681
      %683 = vrot.lane.b32.xlu0 %v663, 91
      %v684 = vpop.permute.xlu0 %683
      %685 = vrot.lane.b32.xlu0 %v673, 91
      %v686 = vpop.permute.xlu0 %685
      %687 = vrot.lane.b32.xlu0 %v664, 91
      %v688 = vpop.permute.xlu0 %687
      %689 = vrot.lane.b32.xlu0 %v674, 91
      %v690 = vpop.permute.xlu0 %689
      %691 = vrot.lane.b32.xlu0 %v665, 91
      %v692 = vpop.permute.xlu0 %691
      %vm693 = vcmask 744448
      %v694 = vsel %vm693, %v676, %v678
      %v695 = vsel %vm693, %v678, %v680
      %v696 = vsel %vm693, %v680, %v682
      %v697 = vsel %vm693, %v682, %v684
      %v698 = vsel %vm693, %v684, %v686
      %v699 = vsel %vm693, %v686, %v688
      %v700 = vsel %vm693, %v688, %v690
      %v701 = vsel %vm693, %v690, %v692
      %710 = vst [vmem:[#allocation3 + $0xc0] sm:$0xf] %v694
      %711 = vst [vmem:[#allocation3 + $0xc8] sm:$0xf] %v695
      %712 = vst [vmem:[#allocation3 + $0xd0] sm:$0xf] %v696
      %713 = vst [vmem:[#allocation3 + $0xd8] sm:$0xf] %v697
      %714 = vst [vmem:[#allocation3 + $0xe0] sm:$0xf] %v698
      %715 = vst [vmem:[#allocation3 + $0xe8] sm:$0xf] %v699
      %716 = vst [vmem:[#allocation3 + $0xf0] sm:$0xf] %v700
      %717 = vst.msk [vmem:[#allocation3 + $0xf8] sm:$0xf] %vm382, %v701
      %v718 = vld [vmem:[#allocation2] sm:$0xff]
      %v719 = vld [vmem:[#allocation2 + $0x8] sm:$0xff]
      %v720 = vld [vmem:[#allocation2 + $0x10] sm:$0xff]
      %v721 = vld [vmem:[#allocation2 + $0x18] sm:$0xff]
      %v722 = vld [vmem:[#allocation2 + $0x20] sm:$0xf]
      %v728 = vcombine.low %v718, %v718
      %v729 = vcombine.low %v719, %v719
      %v730 = vcombine.low %v720, %v720
      %v731 = vcombine.low %v721, %v721
      %v732 = vcombine.low %v722, %v722
      %733 = vrot.lane.b32.xlu0 %v728, 90
      %v734 = vpop.permute.xlu0 %733
      %735 = vrot.lane.b32.xlu0 %v718, 90
      %v736 = vpop.permute.xlu0 %735
      %737 = vrot.lane.b32.xlu0 %v729, 90
      %v738 = vpop.permute.xlu0 %737
      %739 = vrot.lane.b32.xlu0 %v719, 90
      %v740 = vpop.permute.xlu0 %739
      %741 = vrot.lane.b32.xlu0 %v730, 90
      %v742 = vpop.permute.xlu0 %741
      %743 = vrot.lane.b32.xlu0 %v720, 90
      %v744 = vpop.permute.xlu0 %743
      %745 = vrot.lane.b32.xlu0 %v731, 90
      %v746 = vpop.permute.xlu0 %745
      %747 = vrot.lane.b32.xlu0 %v721, 90
      %v748 = vpop.permute.xlu0 %747
      %749 = vrot.lane.b32.xlu0 %v732, 90
      %v750 = vpop.permute.xlu0 %749
      %vm751 = vcmask 736256
      %v752 = vsel %vm751, %v734, %v736
      %v753 = vsel %vm751, %v736, %v738
      %v754 = vsel %vm751, %v738, %v740
      %v755 = vsel %vm751, %v740, %v742
      %v756 = vsel %vm751, %v742, %v744
      %v757 = vsel %vm751, %v744, %v746
      %v758 = vsel %vm751, %v746, %v748
      %v759 = vsel %vm751, %v748, %v750
      %768 = vst [vmem:[#allocation3 + $0xc0] sm:$0xf0] %v752
      %769 = vst [vmem:[#allocation3 + $0xc8] sm:$0xf0] %v753
      %770 = vst [vmem:[#allocation3 + $0xd0] sm:$0xf0] %v754
      %771 = vst [vmem:[#allocation3 + $0xd8] sm:$0xf0] %v755
      %772 = vst [vmem:[#allocation3 + $0xe0] sm:$0xf0] %v756
      %773 = vst [vmem:[#allocation3 + $0xe8] sm:$0xf0] %v757
      %774 = vst [vmem:[#allocation3 + $0xf0] sm:$0xf0] %v758
      %775 = vst.msk [vmem:[#allocation3 + $0xf8] sm:$0xf0] %vm328, %v759
      %v776 = vld [vmem:[#allocation2] sm:$0xff]
      %v777 = vld [vmem:[#allocation2 + $0x8] sm:$0xff]
      %v778 = vld [vmem:[#allocation2 + $0x10] sm:$0xff]
      %v779 = vld [vmem:[#allocation2 + $0x18] sm:$0xff]
      %v780 = vld [vmem:[#allocation2 + $0x20] sm:$0xf]
      %v786 = vcombine.high %v776, %v776
      %v787 = vcombine.high %v777, %v777
      %v788 = vcombine.high %v778, %v778
      %v789 = vcombine.high %v779, %v779
      %790 = vrot.lane.b32.xlu0 %v776, 89
      %v791 = vpop.permute.xlu0 %790
      %792 = vrot.lane.b32.xlu0 %v786, 89
      %v793 = vpop.permute.xlu0 %792
      %794 = vrot.lane.b32.xlu0 %v777, 89
      %v795 = vpop.permute.xlu0 %794
      %796 = vrot.lane.b32.xlu0 %v787, 89
      %v797 = vpop.permute.xlu0 %796
      %798 = vrot.lane.b32.xlu0 %v778, 89
      %v799 = vpop.permute.xlu0 %798
      %800 = vrot.lane.b32.xlu0 %v788, 89
      %v801 = vpop.permute.xlu0 %800
      %802 = vrot.lane.b32.xlu0 %v779, 89
      %v803 = vpop.permute.xlu0 %802
      %804 = vrot.lane.b32.xlu0 %v789, 89
      %v805 = vpop.permute.xlu0 %804
      %806 = vrot.lane.b32.xlu0 %v780, 89
      %v807 = vpop.permute.xlu0 %806
      %vm808 = vcmask 728064
      %v809 = vsel %vm808, %v791, %v793
      %v810 = vsel %vm808, %v793, %v795
      %v811 = vsel %vm808, %v795, %v797
      %v812 = vsel %vm808, %v797, %v799
      %v813 = vsel %vm808, %v799, %v801
      %v814 = vsel %vm808, %v801, %v803
      %v815 = vsel %vm808, %v803, %v805
      %v816 = vsel %vm808, %v805, %v807
      %825 = vst [vmem:[#allocation3 + $0x100] sm:$0xf] %v809
      %826 = vst [vmem:[#allocation3 + $0x108] sm:$0xf] %v810
      %827 = vst [vmem:[#allocation3 + $0x110] sm:$0xf] %v811
      %828 = vst [vmem:[#allocation3 + $0x118] sm:$0xf] %v812
      %829 = vst [vmem:[#allocation3 + $0x120] sm:$0xf] %v813
      %830 = vst [vmem:[#allocation3 + $0x128] sm:$0xf] %v814
      %831 = vst [vmem:[#allocation3 + $0x130] sm:$0xf] %v815
      %832 = vst.msk [vmem:[#allocation3 + $0x138] sm:$0xf] %vm382, %v816
      %v833 = vld [vmem:[#allocation2] sm:$0xff]
      %v834 = vld [vmem:[#allocation2 + $0x8] sm:$0xff]
      %v835 = vld [vmem:[#allocation2 + $0x10] sm:$0xff]
      %v836 = vld [vmem:[#allocation2 + $0x18] sm:$0xff]
      %v837 = vld [vmem:[#allocation2 + $0x20] sm:$0xf]
      %v843 = vcombine.low %v833, %v833
      %v844 = vcombine.low %v834, %v834
      %v845 = vcombine.low %v835, %v835
      %v846 = vcombine.low %v836, %v836
      %v847 = vcombine.low %v837, %v837
      %848 = vrot.lane.b32.xlu0 %v843, 11
      %v849 = vpop.permute.xlu0 %848
      %850 = vrot.lane.b32.xlu0 %v833, 11
      %v851 = vpop.permute.xlu0 %850
      %852 = vrot.lane.b32.xlu0 %v844, 11
      %v853 = vpop.permute.xlu0 %852
      %854 = vrot.lane.b32.xlu0 %v834, 11
      %v855 = vpop.permute.xlu0 %854
      %856 = vrot.lane.b32.xlu0 %v845, 11
      %v857 = vpop.permute.xlu0 %856
      %858 = vrot.lane.b32.xlu0 %v835, 11
      %v859 = vpop.permute.xlu0 %858
      %860 = vrot.lane.b32.xlu0 %v846, 11
      %v861 = vpop.permute.xlu0 %860
      %862 = vrot.lane.b32.xlu0 %v836, 11
      %v863 = vpop.permute.xlu0 %862
      %864 = vrot.lane.b32.xlu0 %v847, 11
      %v865 = vpop.permute.xlu0 %864
      %vm866 = vcmask 89088
      %v867 = vsel %vm866, %v849, %v851
      %v868 = vsel %vm866, %v851, %v853
      %v869 = vsel %vm866, %v853, %v855
      %v870 = vsel %vm866, %v855, %v857
      %v871 = vsel %vm866, %v857, %v859
      %v872 = vsel %vm866, %v859, %v861
      %v873 = vsel %vm866, %v861, %v863
      %v874 = vsel %vm866, %v863, %v865
      %883 = vst [vmem:[#allocation3 + $0x100] sm:$0xf0] %v867
      %884 = vst [vmem:[#allocation3 + $0x108] sm:$0xf0] %v868
      %885 = vst [vmem:[#allocation3 + $0x110] sm:$0xf0] %v869
      %886 = vst [vmem:[#allocation3 + $0x118] sm:$0xf0] %v870
      %887 = vst [vmem:[#allocation3 + $0x120] sm:$0xf0] %v871
      %888 = vst [vmem:[#allocation3 + $0x128] sm:$0xf0] %v872
      %889 = vst [vmem:[#allocation3 + $0x130] sm:$0xf0] %v873
      %890 = vst.msk [vmem:[#allocation3 + $0x138] sm:$0xf0] %vm328, %v874
      %v891 = vld [vmem:[#allocation2] sm:$0xff]
      %v892 = vld [vmem:[#allocation2 + $0x8] sm:$0xff]
      %v893 = vld [vmem:[#allocation2 + $0x10] sm:$0xff]
      %v894 = vld [vmem:[#allocation2 + $0x18] sm:$0xff]
      %v895 = vld [vmem:[#allocation2 + $0x20] sm:$0xf]
      %v901 = vcombine.high %v891, %v891
      %v902 = vcombine.high %v892, %v892
      %v903 = vcombine.high %v893, %v893
      %v904 = vcombine.high %v894, %v894
      %905 = vrot.lane.b32.xlu0 %v891, 10
      %v906 = vpop.permute.xlu0 %905
      %907 = vrot.lane.b32.xlu0 %v901, 10
      %v908 = vpop.permute.xlu0 %907
      %909 = vrot.lane.b32.xlu0 %v892, 10
      %v910 = vpop.permute.xlu0 %909
      %911 = vrot.lane.b32.xlu0 %v902, 10
      %v912 = vpop.permute.xlu0 %911
      %913 = vrot.lane.b32.xlu0 %v893, 10
      %v914 = vpop.permute.xlu0 %913
      %915 = vrot.lane.b32.xlu0 %v903, 10
      %v916 = vpop.permute.xlu0 %915
      %917 = vrot.lane.b32.xlu0 %v894, 10
      %v918 = vpop.permute.xlu0 %917
      %919 = vrot.lane.b32.xlu0 %v904, 10
      %v920 = vpop.permute.xlu0 %919
      %921 = vrot.lane.b32.xlu0 %v895, 10
      %v922 = vpop.permute.xlu0 %921
      %vm923 = vcmask 80896
      %v924 = vsel %vm923, %v906, %v908
      %v925 = vsel %vm923, %v908, %v910
      %v926 = vsel %vm923, %v910, %v912
      %v927 = vsel %vm923, %v912, %v914
      %v928 = vsel %vm923, %v914, %v916
      %v929 = vsel %vm923, %v916, %v918
      %v930 = vsel %vm923, %v918, %v920
      %v931 = vsel %vm923, %v920, %v922
      %940 = vst [vmem:[#allocation3 + $0x140] sm:$0xf] %v924
      %941 = vst [vmem:[#allocation3 + $0x148] sm:$0xf] %v925
      %942 = vst [vmem:[#allocation3 + $0x150] sm:$0xf] %v926
      %943 = vst [vmem:[#allocation3 + $0x158] sm:$0xf] %v927
      %944 = vst [vmem:[#allocation3 + $0x160] sm:$0xf] %v928
      %945 = vst [vmem:[#allocation3 + $0x168] sm:$0xf] %v929
      %946 = vst [vmem:[#allocation3 + $0x170] sm:$0xf] %v930
      %947 = vst.msk [vmem:[#allocation3 + $0x178] sm:$0xf] %vm382, %v931
      %v948 = vld [vmem:[#allocation2] sm:$0xff]
      %v949 = vld [vmem:[#allocation2 + $0x8] sm:$0xff]
      %v950 = vld [vmem:[#allocation2 + $0x10] sm:$0xff]
      %v951 = vld [vmem:[#allocation2 + $0x18] sm:$0xff]
      %v952 = vld [vmem:[#allocation2 + $0x20] sm:$0xf]
      %v958 = vcombine.low %v948, %v948
      %v959 = vcombine.low %v949, %v949
      %v960 = vcombine.low %v950, %v950
      %v961 = vcombine.low %v951, %v951
      %v962 = vcombine.low %v952, %v952
      %963 = vrot.lane.b32.xlu0 %v958, 9
      %v964 = vpop.permute.xlu0 %963
      %965 = vrot.lane.b32.xlu0 %v948, 9
      %v966 = vpop.permute.xlu0 %965
      %967 = vrot.lane.b32.xlu0 %v959, 9
      %v968 = vpop.permute.xlu0 %967
      %969 = vrot.lane.b32.xlu0 %v949, 9
      %v970 = vpop.permute.xlu0 %969
      %971 = vrot.lane.b32.xlu0 %v960, 9
      %v972 = vpop.permute.xlu0 %971
      %973 = vrot.lane.b32.xlu0 %v950, 9
      %v974 = vpop.permute.xlu0 %973
      %975 = vrot.lane.b32.xlu0 %v961, 9
      %v976 = vpop.permute.xlu0 %975
      %977 = vrot.lane.b32.xlu0 %v951, 9
      %v978 = vpop.permute.xlu0 %977
      %979 = vrot.lane.b32.xlu0 %v962, 9
      %v980 = vpop.permute.xlu0 %979
      %vm981 = vcmask 72704
      %v982 = vsel %vm981, %v964, %v966
      %v983 = vsel %vm981, %v966, %v968
      %v984 = vsel %vm981, %v968, %v970
      %v985 = vsel %vm981, %v970, %v972
      %v986 = vsel %vm981, %v972, %v974
      %v987 = vsel %vm981, %v974, %v976
      %v988 = vsel %vm981, %v976, %v978
      %v989 = vsel %vm981, %v978, %v980
      %998 = vst [vmem:[#allocation3 + $0x140] sm:$0xf0] %v982
      %999 = vst [vmem:[#allocation3 + $0x148] sm:$0xf0] %v983
      %1000 = vst [vmem:[#allocation3 + $0x150] sm:$0xf0] %v984
      %1001 = vst [vmem:[#allocation3 + $0x158] sm:$0xf0] %v985
      %1002 = vst [vmem:[#allocation3 + $0x160] sm:$0xf0] %v986
      %1003 = vst [vmem:[#allocation3 + $0x168] sm:$0xf0] %v987
      %1004 = vst [vmem:[#allocation3 + $0x170] sm:$0xf0] %v988
      %1005 = vst.msk [vmem:[#allocation3 + $0x178] sm:$0xf0] %vm328, %v989
      %v1006 = vld [vmem:[#allocation2] sm:$0xff]
      %v1007 = vld [vmem:[#allocation2 + $0x8] sm:$0xff]
      %v1008 = vld [vmem:[#allocation2 + $0x10] sm:$0xff]
      %v1009 = vld [vmem:[#allocation2 + $0x18] sm:$0xff]
      %v1010 = vld [vmem:[#allocation2 + $0x20] sm:$0xf]
      %v1016 = vcombine.high %v1006, %v1006
      %v1017 = vcombine.high %v1007, %v1007
      %v1018 = vcombine.high %v1008, %v1008
      %v1019 = vcombine.high %v1009, %v1009
      %1020 = vrot.lane.b32.xlu0 %v1006, 1
      %v1021 = vpop.permute.xlu0 %1020
      %1022 = vrot.lane.b32.xlu0 %v1016, 1
      %v1023 = vpop.permute.xlu0 %1022
      %1024 = vrot.lane.b32.xlu0 %v1007, 1
      %v1025 = vpop.permute.xlu0 %1024
      %1026 = vrot.lane.b32.xlu0 %v1017, 1
      %v1027 = vpop.permute.xlu0 %1026
      %1028 = vrot.lane.b32.xlu0 %v1008, 1
      %v1029 = vpop.permute.xlu0 %1028
      %1030 = vrot.lane.b32.xlu0 %v1018, 1
      %v1031 = vpop.permute.xlu0 %1030
      %1032 = vrot.lane.b32.xlu0 %v1009, 1
      %v1033 = vpop.permute.xlu0 %1032
      %1034 = vrot.lane.b32.xlu0 %v1019, 1
      %v1035 = vpop.permute.xlu0 %1034
      %1036 = vrot.lane.b32.xlu0 %v1010, 1
      %v1037 = vpop.permute.xlu0 %1036
      %vm1038 = vcmask 7168
      %v1039 = vsel %vm1038, %v1021, %v1023
      %v1040 = vsel %vm1038, %v1023, %v1025
      %v1041 = vsel %vm1038, %v1025, %v1027
      %v1042 = vsel %vm1038, %v1027, %v1029
      %v1043 = vsel %vm1038, %v1029, %v1031
      %v1044 = vsel %vm1038, %v1031, %v1033
      %v1045 = vsel %vm1038, %v1033, %v1035
      %v1046 = vsel %vm1038, %v1035, %v1037
      %1055 = vst [vmem:[#allocation3 + $0x180] sm:$0xf] %v1039
      %1056 = vst [vmem:[#allocation3 + $0x188] sm:$0xf] %v1040
      %1057 = vst [vmem:[#allocation3 + $0x190] sm:$0xf] %v1041
      %1058 = vst [vmem:[#allocation3 + $0x198] sm:$0xf] %v1042
      %1059 = vst [vmem:[#allocation3 + $0x1a0] sm:$0xf] %v1043
      %1060 = vst [vmem:[#allocation3 + $0x1a8] sm:$0xf] %v1044
      %1061 = vst [vmem:[#allocation3 + $0x1b0] sm:$0xf] %v1045
      %1062 = vst.msk [vmem:[#allocation3 + $0x1b8] sm:$0xf] %vm382, %v1046
      %v1063 = vld [vmem:[#allocation2 + $0x4] sm:$0xff]
      %v1064 = vld [vmem:[#allocation2 + $0xc] sm:$0xff]
      %v1065 = vld [vmem:[#allocation2 + $0x14] sm:$0xff]
      %v1066 = vld [vmem:[#allocation2 + $0x1c] sm:$0xff]
      %v1071 = vcombine.low %v1063, %v1063
      %v1072 = vcombine.low %v1064, %v1064
      %v1073 = vcombine.low %v1065, %v1065
      %v1074 = vcombine.low %v1066, %v1066
      %1079 = vst [vmem:[#allocation3 + $0x180] sm:$0xf0] %v1071
      %1080 = vst [vmem:[#allocation3 + $0x188] sm:$0xf0] %v1063
      %1081 = vst [vmem:[#allocation3 + $0x190] sm:$0xf0] %v1072
      %1082 = vst [vmem:[#allocation3 + $0x198] sm:$0xf0] %v1064
      %1083 = vst [vmem:[#allocation3 + $0x1a0] sm:$0xf0] %v1073
      %1084 = vst [vmem:[#allocation3 + $0x1a8] sm:$0xf0] %v1065
      %1085 = vst [vmem:[#allocation3 + $0x1b0] sm:$0xf0] %v1074
      %1086 = vst.msk [vmem:[#allocation3 + $0x1b8] sm:$0xf0] %vm328, %v1066
      %v1087 = vld [vmem:[#allocation2 + $0x4] sm:$0xff]
      %v1088 = vld [vmem:[#allocation2 + $0xc] sm:$0xff]
      %v1089 = vld [vmem:[#allocation2 + $0x14] sm:$0xff]
      %v1090 = vld [vmem:[#allocation2 + $0x1c] sm:$0xff]
      %v1095 = vcombine.high %v1087, %v1087
      %v1096 = vcombine.high %v1088, %v1088
      %v1097 = vcombine.high %v1089, %v1089
      %v1098 = vcombine.high %v1090, %v1090
      %1099 = vrot.lane.b32.xlu0 %v1087, 127
      %v1100 = vpop.permute.xlu0 %1099
      %1101 = vrot.lane.b32.xlu0 %v1095, 127
      %v1102 = vpop.permute.xlu0 %1101
      %1103 = vrot.lane.b32.xlu0 %v1088, 127
      %v1104 = vpop.permute.xlu0 %1103
      %1105 = vrot.lane.b32.xlu0 %v1096, 127
      %v1106 = vpop.permute.xlu0 %1105
      %1107 = vrot.lane.b32.xlu0 %v1089, 127
      %v1108 = vpop.permute.xlu0 %1107
      %1109 = vrot.lane.b32.xlu0 %v1097, 127
      %v1110 = vpop.permute.xlu0 %1109
      %1111 = vrot.lane.b32.xlu0 %v1090, 127
      %v1112 = vpop.permute.xlu0 %1111
      %1113 = vrot.lane.b32.xlu0 %v1098, 127
      %v1114 = vpop.permute.xlu0 %1113
      %vm1115 = vcmask 1039360
      %v1116 = vsel %vm1115, %v1100, %v1102
      %v1117 = vsel %vm1115, %v1102, %v1104
      %v1118 = vsel %vm1115, %v1104, %v1106
      %v1119 = vsel %vm1115, %v1106, %v1108
      %v1120 = vsel %vm1115, %v1108, %v1110
      %v1121 = vsel %vm1115, %v1110, %v1112
      %v1122 = vsel %vm1115, %v1112, %v1114
      %1131 = vst [vmem:[#allocation3 + $0x1c0] sm:$0xf] %v1116
      %1132 = vst [vmem:[#allocation3 + $0x1c8] sm:$0xf] %v1117
      %1133 = vst [vmem:[#allocation3 + $0x1d0] sm:$0xf] %v1118
      %1134 = vst [vmem:[#allocation3 + $0x1d8] sm:$0xf] %v1119
      %1135 = vst [vmem:[#allocation3 + $0x1e0] sm:$0xf] %v1120
      %1136 = vst [vmem:[#allocation3 + $0x1e8] sm:$0xf] %v1121
      %1137 = vst [vmem:[#allocation3 + $0x1f0] sm:$0xf] %v1122
      %1138 = vst.msk [vmem:[#allocation3 + $0x1f8] sm:$0xf] %vm382, %v1114
      %v1139 = vld [vmem:[#allocation2 + $0x4] sm:$0xff]
      %v1140 = vld [vmem:[#allocation2 + $0xc] sm:$0xff]
      %v1141 = vld [vmem:[#allocation2 + $0x14] sm:$0xff]
      %v1142 = vld [vmem:[#allocation2 + $0x1c] sm:$0xff]
      %v1147 = vcombine.low %v1139, %v1139
      %v1148 = vcombine.low %v1140, %v1140
      %v1149 = vcombine.low %v1141, %v1141
      %v1150 = vcombine.low %v1142, %v1142
      %1151 = vrot.lane.b32.xlu0 %v1147, 119
      %v1152 = vpop.permute.xlu0 %1151
      %1153 = vrot.lane.b32.xlu0 %v1139, 119
      %v1154 = vpop.permute.xlu0 %1153
      %1155 = vrot.lane.b32.xlu0 %v1148, 119
      %v1156 = vpop.permute.xlu0 %1155
      %1157 = vrot.lane.b32.xlu0 %v1140, 119
      %v1158 = vpop.permute.xlu0 %1157
      %1159 = vrot.lane.b32.xlu0 %v1149, 119
      %v1160 = vpop.permute.xlu0 %1159
      %1161 = vrot.lane.b32.xlu0 %v1141, 119
      %v1162 = vpop.permute.xlu0 %1161
      %1163 = vrot.lane.b32.xlu0 %v1150, 119
      %v1164 = vpop.permute.xlu0 %1163
      %1165 = vrot.lane.b32.xlu0 %v1142, 119
      %v1166 = vpop.permute.xlu0 %1165
      %vm1167 = vcmask 973824
      %v1168 = vsel %vm1167, %v1152, %v1154
      %v1169 = vsel %vm1167, %v1154, %v1156
      %v1170 = vsel %vm1167, %v1156, %v1158
      %v1171 = vsel %vm1167, %v1158, %v1160
      %v1172 = vsel %vm1167, %v1160, %v1162
      %v1173 = vsel %vm1167, %v1162, %v1164
      %v1174 = vsel %vm1167, %v1164, %v1166
      %1183 = vst [vmem:[#allocation3 + $0x1c0] sm:$0xf0] %v1168
      %1184 = vst [vmem:[#allocation3 + $0x1c8] sm:$0xf0] %v1169
      %1185 = vst [vmem:[#allocation3 + $0x1d0] sm:$0xf0] %v1170
      %1186 = vst [vmem:[#allocation3 + $0x1d8] sm:$0xf0] %v1171
      %1187 = vst [vmem:[#allocation3 + $0x1e0] sm:$0xf0] %v1172
      %1188 = vst [vmem:[#allocation3 + $0x1e8] sm:$0xf0] %v1173
      %1189 = vst [vmem:[#allocation3 + $0x1f0] sm:$0xf0] %v1174
      %1190 = vst.msk [vmem:[#allocation3 + $0x1f8] sm:$0xf0] %vm328, %v1166
      %v1191 = vld [vmem:[#allocation2 + $0x4] sm:$0xff]
      %v1192 = vld [vmem:[#allocation2 + $0xc] sm:$0xff]
      %v1193 = vld [vmem:[#allocation2 + $0x14] sm:$0xff]
      %v1194 = vld [vmem:[#allocation2 + $0x1c] sm:$0xff]
      %v1199 = vcombine.high %v1191, %v1191
      %v1200 = vcombine.high %v1192, %v1192
      %v1201 = vcombine.high %v1193, %v1193
      %v1202 = vcombine.high %v1194, %v1194
      %1203 = vrot.lane.b32.xlu0 %v1191, 118
      %v1204 = vpop.permute.xlu0 %1203
      %1205 = vrot.lane.b32.xlu0 %v1199, 118
      %v1206 = vpop.permute.xlu0 %1205
      %1207 = vrot.lane.b32.xlu0 %v1192, 118
      %v1208 = vpop.permute.xlu0 %1207
      %1209 = vrot.lane.b32.xlu0 %v1200, 118
      %v1210 = vpop.permute.xlu0 %1209
      %1211 = vrot.lane.b32.xlu0 %v1193, 118
      %v1212 = vpop.permute.xlu0 %1211
      %1213 = vrot.lane.b32.xlu0 %v1201, 118
      %v1214 = vpop.permute.xlu0 %1213
      %1215 = vrot.lane.b32.xlu0 %v1194, 118
      %v1216 = vpop.permute.xlu0 %1215
      %1217 = vrot.lane.b32.xlu0 %v1202, 118
      %v1218 = vpop.permute.xlu0 %1217
      %vm1219 = vcmask 965632
      %v1220 = vsel %vm1219, %v1204, %v1206
      %v1221 = vsel %vm1219, %v1206, %v1208
      %v1222 = vsel %vm1219, %v1208, %v1210
      %v1223 = vsel %vm1219, %v1210, %v1212
      %v1224 = vsel %vm1219, %v1212, %v1214
      %v1225 = vsel %vm1219, %v1214, %v1216
      %v1226 = vsel %vm1219, %v1216, %v1218
      %1235 = vst [vmem:[#allocation3 + $0x200] sm:$0xf] %v1220
      %1236 = vst [vmem:[#allocation3 + $0x208] sm:$0xf] %v1221
      %1237 = vst [vmem:[#allocation3 + $0x210] sm:$0xf] %v1222
      %1238 = vst [vmem:[#allocation3 + $0x218] sm:$0xf] %v1223
      %1239 = vst [vmem:[#allocation3 + $0x220] sm:$0xf] %v1224
      %1240 = vst [vmem:[#allocation3 + $0x228] sm:$0xf] %v1225
      %1241 = vst [vmem:[#allocation3 + $0x230] sm:$0xf] %v1226
      %1242 = vst.msk [vmem:[#allocation3 + $0x238] sm:$0xf] %vm382, %v1218
      %v1243 = vld [vmem:[#allocation2 + $0x4] sm:$0xff]
      %v1244 = vld [vmem:[#allocation2 + $0xc] sm:$0xff]
      %v1245 = vld [vmem:[#allocation2 + $0x14] sm:$0xff]
      %v1246 = vld [vmem:[#allocation2 + $0x1c] sm:$0xff]
      %v1251 = vcombine.low %v1243, %v1243
      %v1252 = vcombine.low %v1244, %v1244
      %v1253 = vcombine.low %v1245, %v1245
      %v1254 = vcombine.low %v1246, %v1246
      %1255 = vrot.lane.b32.xlu0 %v1251, 117
      %v1256 = vpop.permute.xlu0 %1255
      %1257 = vrot.lane.b32.xlu0 %v1243, 117
      %v1258 = vpop.permute.xlu0 %1257
      %1259 = vrot.lane.b32.xlu0 %v1252, 117
      %v1260 = vpop.permute.xlu0 %1259
      %1261 = vrot.lane.b32.xlu0 %v1244, 117
      %v1262 = vpop.permute.xlu0 %1261
      %1263 = vrot.lane.b32.xlu0 %v1253, 117
      %v1264 = vpop.permute.xlu0 %1263
      %1265 = vrot.lane.b32.xlu0 %v1245, 117
      %v1266 = vpop.permute.xlu0 %1265
      %1267 = vrot.lane.b32.xlu0 %v1254, 117
      %v1268 = vpop.permute.xlu0 %1267
      %1269 = vrot.lane.b32.xlu0 %v1246, 117
      %v1270 = vpop.permute.xlu0 %1269
      %vm1271 = vcmask 957440
      %v1272 = vsel %vm1271, %v1256, %v1258
      %v1273 = vsel %vm1271, %v1258, %v1260
      %v1274 = vsel %vm1271, %v1260, %v1262
      %v1275 = vsel %vm1271, %v1262, %v1264
      %v1276 = vsel %vm1271, %v1264, %v1266
      %v1277 = vsel %vm1271, %v1266, %v1268
      %v1278 = vsel %vm1271, %v1268, %v1270
      %1287 = vst [vmem:[#allocation3 + $0x200] sm:$0xf0] %v1272
      %1288 = vst [vmem:[#allocation3 + $0x208] sm:$0xf0] %v1273
      %1289 = vst [vmem:[#allocation3 + $0x210] sm:$0xf0] %v1274
      %1290 = vst [vmem:[#allocation3 + $0x218] sm:$0xf0] %v1275
      %1291 = vst [vmem:[#allocation3 + $0x220] sm:$0xf0] %v1276
      %1292 = vst [vmem:[#allocation3 + $0x228] sm:$0xf0] %v1277
      %1293 = vst [vmem:[#allocation3 + $0x230] sm:$0xf0] %v1278
      %1294 = vst.msk [vmem:[#allocation3 + $0x238] sm:$0xf0] %vm328, %v1270
      %v1295 = vld [vmem:[#allocation2 + $0x4] sm:$0xff]
      %v1296 = vld [vmem:[#allocation2 + $0xc] sm:$0xff]
      %v1297 = vld [vmem:[#allocation2 + $0x14] sm:$0xff]
      %v1298 = vld [vmem:[#allocation2 + $0x1c] sm:$0xff]
      %v1299 = vld [vmem:[#allocation2 + $0x24] sm:$0xf]
      %v1305 = vcombine.high %v1295, %v1295
      %v1306 = vcombine.high %v1296, %v1296
      %v1307 = vcombine.high %v1297, %v1297
      %v1308 = vcombine.high %v1298, %v1298
      %1309 = vrot.lane.b32.xlu0 %v1295, 39
      %v1310 = vpop.permute.xlu0 %1309
      %1311 = vrot.lane.b32.xlu0 %v1305, 39
      %v1312 = vpop.permute.xlu0 %1311
      %1313 = vrot.lane.b32.xlu0 %v1296, 39
      %v1314 = vpop.permute.xlu0 %1313
      %1315 = vrot.lane.b32.xlu0 %v1306, 39
      %v1316 = vpop.permute.xlu0 %1315
      %1317 = vrot.lane.b32.xlu0 %v1297, 39
      %v1318 = vpop.permute.xlu0 %1317
      %1319 = vrot.lane.b32.xlu0 %v1307, 39
      %v1320 = vpop.permute.xlu0 %1319
      %1321 = vrot.lane.b32.xlu0 %v1298, 39
      %v1322 = vpop.permute.xlu0 %1321
      %1323 = vrot.lane.b32.xlu0 %v1308, 39
      %v1324 = vpop.permute.xlu0 %1323
      %1325 = vrot.lane.b32.xlu0 %v1299, 39
      %v1326 = vpop.permute.xlu0 %1325
      %vm1327 = vcmask 318464
      %v1328 = vsel %vm1327, %v1310, %v1312
      %v1329 = vsel %vm1327, %v1312, %v1314
      %v1330 = vsel %vm1327, %v1314, %v1316
      %v1331 = vsel %vm1327, %v1316, %v1318
      %v1332 = vsel %vm1327, %v1318, %v1320
      %v1333 = vsel %vm1327, %v1320, %v1322
      %v1334 = vsel %vm1327, %v1322, %v1324
      %v1335 = vsel %vm1327, %v1324, %v1326
      %1344 = vst [vmem:[#allocation3 + $0x240] sm:$0xf] %v1328
      %1345 = vst [vmem:[#allocation3 + $0x248] sm:$0xf] %v1329
      %1346 = vst [vmem:[#allocation3 + $0x250] sm:$0xf] %v1330
      %1347 = vst [vmem:[#allocation3 + $0x258] sm:$0xf] %v1331
      %1348 = vst [vmem:[#allocation3 + $0x260] sm:$0xf] %v1332
      %1349 = vst [vmem:[#allocation3 + $0x268] sm:$0xf] %v1333
      %1350 = vst [vmem:[#allocation3 + $0x270] sm:$0xf] %v1334
      %1351 = vst.msk [vmem:[#allocation3 + $0x278] sm:$0xf] %vm382, %v1335
      %v1352 = vld [vmem:[#allocation2 + $0x4] sm:$0xff]
      %v1353 = vld [vmem:[#allocation2 + $0xc] sm:$0xff]
      %v1354 = vld [vmem:[#allocation2 + $0x14] sm:$0xff]
      %v1355 = vld [vmem:[#allocation2 + $0x1c] sm:$0xff]
      %v1356 = vld [vmem:[#allocation2 + $0x24] sm:$0xf]
      %v1362 = vcombine.low %v1352, %v1352
      %v1363 = vcombine.low %v1353, %v1353
      %v1364 = vcombine.low %v1354, %v1354
      %v1365 = vcombine.low %v1355, %v1355
      %v1366 = vcombine.low %v1356, %v1356
      %1367 = vrot.lane.b32.xlu0 %v1362, 38
      %v1368 = vpop.permute.xlu0 %1367
      %1369 = vrot.lane.b32.xlu0 %v1352, 38
      %v1370 = vpop.permute.xlu0 %1369
      %1371 = vrot.lane.b32.xlu0 %v1363, 38
      %v1372 = vpop.permute.xlu0 %1371
      %1373 = vrot.lane.b32.xlu0 %v1353, 38
      %v1374 = vpop.permute.xlu0 %1373
      %1375 = vrot.lane.b32.xlu0 %v1364, 38
      %v1376 = vpop.permute.xlu0 %1375
      %1377 = vrot.lane.b32.xlu0 %v1354, 38
      %v1378 = vpop.permute.xlu0 %1377
      %1379 = vrot.lane.b32.xlu0 %v1365, 38
      %v1380 = vpop.permute.xlu0 %1379
      %1381 = vrot.lane.b32.xlu0 %v1355, 38
      %v1382 = vpop.permute.xlu0 %1381
      %1383 = vrot.lane.b32.xlu0 %v1366, 38
      %v1384 = vpop.permute.xlu0 %1383
      %vm1385 = vcmask 310272
      %v1386 = vsel %vm1385, %v1368, %v1370
      %v1387 = vsel %vm1385, %v1370, %v1372
      %v1388 = vsel %vm1385, %v1372, %v1374
      %v1389 = vsel %vm1385, %v1374, %v1376
      %v1390 = vsel %vm1385, %v1376, %v1378
      %v1391 = vsel %vm1385, %v1378, %v1380
      %v1392 = vsel %vm1385, %v1380, %v1382
      %v1393 = vsel %vm1385, %v1382, %v1384
      %1402 = vst [vmem:[#allocation3 + $0x240] sm:$0xf0] %v1386
      %1403 = vst [vmem:[#allocation3 + $0x248] sm:$0xf0] %v1387
      %1404 = vst [vmem:[#allocation3 + $0x250] sm:$0xf0] %v1388
      %1405 = vst [vmem:[#allocation3 + $0x258] sm:$0xf0] %v1389
      %1406 = vst [vmem:[#allocation3 + $0x260] sm:$0xf0] %v1390
      %1407 = vst [vmem:[#allocation3 + $0x268] sm:$0xf0] %v1391
      %1408 = vst [vmem:[#allocation3 + $0x270] sm:$0xf0] %v1392
      %1409 = vst.msk [vmem:[#allocation3 + $0x278] sm:$0xf0] %vm328, %v1393
      %v1410 = vld [vmem:[#allocation2 + $0x4] sm:$0xff]
      %v1411 = vld [vmem:[#allocation2 + $0xc] sm:$0xff]
      %v1412 = vld [vmem:[#allocation2 + $0x14] sm:$0xff]
      %v1413 = vld [vmem:[#allocation2 + $0x1c] sm:$0xff]
      %v1414 = vld [vmem:[#allocation2 + $0x24] sm:$0xf]
      %v1420 = vcombine.high %v1410, %v1410
      %v1421 = vcombine.high %v1411, %v1411
      %v1422 = vcombine.high %v1412, %v1412
      %v1423 = vcombine.high %v1413, %v1413
      %1424 = vrot.lane.b32.xlu0 %v1410, 37
      %v1425 = vpop.permute.xlu0 %1424
      %1426 = vrot.lane.b32.xlu0 %v1420, 37
      %v1427 = vpop.permute.xlu0 %1426
      %1428 = vrot.lane.b32.xlu0 %v1411, 37
      %v1429 = vpop.permute.xlu0 %1428
      %1430 = vrot.lane.b32.xlu0 %v1421, 37
      %v1431 = vpop.permute.xlu0 %1430
      %1432 = vrot.lane.b32.xlu0 %v1412, 37
      %v1433 = vpop.permute.xlu0 %1432
      %1434 = vrot.lane.b32.xlu0 %v1422, 37
      %v1435 = vpop.permute.xlu0 %1434
      %1436 = vrot.lane.b32.xlu0 %v1413, 37
      %v1437 = vpop.permute.xlu0 %1436
      %1438 = vrot.lane.b32.xlu0 %v1423, 37
      %v1439 = vpop.permute.xlu0 %1438
      %1440 = vrot.lane.b32.xlu0 %v1414, 37
      %v1441 = vpop.permute.xlu0 %1440
      %vm1442 = vcmask 302080
      %v1443 = vsel %vm1442, %v1425, %v1427
      %v1444 = vsel %vm1442, %v1427, %v1429
      %v1445 = vsel %vm1442, %v1429, %v1431
      %v1446 = vsel %vm1442, %v1431, %v1433
      %v1447 = vsel %vm1442, %v1433, %v1435
      %v1448 = vsel %vm1442, %v1435, %v1437
      %v1449 = vsel %vm1442, %v1437, %v1439
      %v1450 = vsel %vm1442, %v1439, %v1441
      %1459 = vst [vmem:[#allocation3 + $0x280] sm:$0xf] %v1443
      %1460 = vst [vmem:[#allocation3 + $0x288] sm:$0xf] %v1444
      %1461 = vst [vmem:[#allocation3 + $0x290] sm:$0xf] %v1445
      %1462 = vst [vmem:[#allocation3 + $0x298] sm:$0xf] %v1446
      %1463 = vst [vmem:[#allocation3 + $0x2a0] sm:$0xf] %v1447
      %1464 = vst [vmem:[#allocation3 + $0x2a8] sm:$0xf] %v1448
      %1465 = vst [vmem:[#allocation3 + $0x2b0] sm:$0xf] %v1449
      %1466 = vst.msk [vmem:[#allocation3 + $0x2b8] sm:$0xf] %vm382, %v1450
      %v1467 = vld [vmem:[#allocation2 + $0x4] sm:$0xff]
      %v1468 = vld [vmem:[#allocation2 + $0xc] sm:$0xff]
      %v1469 = vld [vmem:[#allocation2 + $0x14] sm:$0xff]
      %v1470 = vld [vmem:[#allocation2 + $0x1c] sm:$0xff]
      %v1471 = vld [vmem:[#allocation2 + $0x24] sm:$0xf]
      %v1477 = vcombine.low %v1467, %v1467
      %v1478 = vcombine.low %v1468, %v1468
      %v1479 = vcombine.low %v1469, %v1469
      %v1480 = vcombine.low %v1470, %v1470
      %v1481 = vcombine.low %v1471, %v1471
      %1482 = vrot.lane.b32.xlu0 %v1477, 29
      %v1483 = vpop.permute.xlu0 %1482
      %1484 = vrot.lane.b32.xlu0 %v1467, 29
      %v1485 = vpop.permute.xlu0 %1484
      %1486 = vrot.lane.b32.xlu0 %v1478, 29
      %v1487 = vpop.permute.xlu0 %1486
      %1488 = vrot.lane.b32.xlu0 %v1468, 29
      %v1489 = vpop.permute.xlu0 %1488
      %1490 = vrot.lane.b32.xlu0 %v1479, 29
      %v1491 = vpop.permute.xlu0 %1490
      %1492 = vrot.lane.b32.xlu0 %v1469, 29
      %v1493 = vpop.permute.xlu0 %1492
      %1494 = vrot.lane.b32.xlu0 %v1480, 29
      %v1495 = vpop.permute.xlu0 %1494
      %1496 = vrot.lane.b32.xlu0 %v1470, 29
      %v1497 = vpop.permute.xlu0 %1496
      %1498 = vrot.lane.b32.xlu0 %v1481, 29
      %v1499 = vpop.permute.xlu0 %1498
      %vm1500 = vcmask 236544
      %v1501 = vsel %vm1500, %v1483, %v1485
      %v1502 = vsel %vm1500, %v1485, %v1487
      %v1503 = vsel %vm1500, %v1487, %v1489
      %v1504 = vsel %vm1500, %v1489, %v1491
      %v1505 = vsel %vm1500, %v1491, %v1493
      %v1506 = vsel %vm1500, %v1493, %v1495
      %v1507 = vsel %vm1500, %v1495, %v1497
      %v1508 = vsel %vm1500, %v1497, %v1499
      %1517 = vst [vmem:[#allocation3 + $0x280] sm:$0xf0] %v1501
      %1518 = vst [vmem:[#allocation3 + $0x288] sm:$0xf0] %v1502
      %1519 = vst [vmem:[#allocation3 + $0x290] sm:$0xf0] %v1503
      %1520 = vst [vmem:[#allocation3 + $0x298] sm:$0xf0] %v1504
      %1521 = vst [vmem:[#allocation3 + $0x2a0] sm:$0xf0] %v1505
      %1522 = vst [vmem:[#allocation3 + $0x2a8] sm:$0xf0] %v1506
      %1523 = vst [vmem:[#allocation3 + $0x2b0] sm:$0xf0] %v1507
      %1524 = vst.msk [vmem:[#allocation3 + $0x2b8] sm:$0xf0] %vm328, %v1508
      %v1525 = vld [vmem:[#allocation2 + $0x4] sm:$0xff]
      %v1526 = vld [vmem:[#allocation2 + $0xc] sm:$0xff]
      %v1527 = vld [vmem:[#allocation2 + $0x14] sm:$0xff]
      %v1528 = vld [vmem:[#allocation2 + $0x1c] sm:$0xff]
      %v1529 = vld [vmem:[#allocation2 + $0x24] sm:$0xf]
      %v1535 = vcombine.high %v1525, %v1525
      %v1536 = vcombine.high %v1526, %v1526
      %v1537 = vcombine.high %v1527, %v1527
      %v1538 = vcombine.high %v1528, %v1528
      %1539 = vrot.lane.b32.xlu0 %v1525, 28
      %v1540 = vpop.permute.xlu0 %1539
      %1541 = vrot.lane.b32.xlu0 %v1535, 28
      %v1542 = vpop.permute.xlu0 %1541
      %1543 = vrot.lane.b32.xlu0 %v1526, 28
      %v1544 = vpop.permute.xlu0 %1543
      %1545 = vrot.lane.b32.xlu0 %v1536, 28
      %v1546 = vpop.permute.xlu0 %1545
      %1547 = vrot.lane.b32.xlu0 %v1527, 28
      %v1548 = vpop.permute.xlu0 %1547
      %1549 = vrot.lane.b32.xlu0 %v1537, 28
      %v1550 = vpop.permute.xlu0 %1549
      %1551 = vrot.lane.b32.xlu0 %v1528, 28
      %v1552 = vpop.permute.xlu0 %1551
      %1553 = vrot.lane.b32.xlu0 %v1538, 28
      %v1554 = vpop.permute.xlu0 %1553
      %1555 = vrot.lane.b32.xlu0 %v1529, 28
      %v1556 = vpop.permute.xlu0 %1555
      %vm1557 = vcmask 228352
      %v1558 = vsel %vm1557, %v1540, %v1542
      %v1559 = vsel %vm1557, %v1542, %v1544
      %v1560 = vsel %vm1557, %v1544, %v1546
      %v1561 = vsel %vm1557, %v1546, %v1548
      %v1562 = vsel %vm1557, %v1548, %v1550
      %v1563 = vsel %vm1557, %v1550, %v1552
      %v1564 = vsel %vm1557, %v1552, %v1554
      %v1565 = vsel %vm1557, %v1554, %v1556
      %1574 = vst [vmem:[#allocation3 + $0x2c0] sm:$0xf] %v1558
      %1575 = vst [vmem:[#allocation3 + $0x2c8] sm:$0xf] %v1559
      %1576 = vst [vmem:[#allocation3 + $0x2d0] sm:$0xf] %v1560
      %1577 = vst [vmem:[#allocation3 + $0x2d8] sm:$0xf] %v1561
      %1578 = vst [vmem:[#allocation3 + $0x2e0] sm:$0xf] %v1562
      %1579 = vst [vmem:[#allocation3 + $0x2e8] sm:$0xf] %v1563
      %1580 = vst [vmem:[#allocation3 + $0x2f0] sm:$0xf] %v1564
      %1581 = vst.msk [vmem:[#allocation3 + $0x2f8] sm:$0xf] %vm382, %v1565
      %v1582 = vld [vmem:[#allocation2 + $0x4] sm:$0xff]
      %v1583 = vld [vmem:[#allocation2 + $0xc] sm:$0xff]
      %v1584 = vld [vmem:[#allocation2 + $0x14] sm:$0xff]
      %v1585 = vld [vmem:[#allocation2 + $0x1c] sm:$0xff]
      %v1586 = vld [vmem:[#allocation2 + $0x24] sm:$0xf]
      %v1592 = vcombine.low %v1582, %v1582
      %v1593 = vcombine.low %v1583, %v1583
      %v1594 = vcombine.low %v1584, %v1584
      %v1595 = vcombine.low %v1585, %v1585
      %v1596 = vcombine.low %v1586, %v1586
      %1597 = vrot.lane.b32.xlu0 %v1592, 27
      %v1598 = vpop.permute.xlu0 %1597
      %1599 = vrot.lane.b32.xlu0 %v1582, 27
      %v1600 = vpop.permute.xlu0 %1599
      %1601 = vrot.lane.b32.xlu0 %v1593, 27
      %v1602 = vpop.permute.xlu0 %1601
      %1603 = vrot.lane.b32.xlu0 %v1583, 27
      %v1604 = vpop.permute.xlu0 %1603
      %1605 = vrot.lane.b32.xlu0 %v1594, 27
      %v1606 = vpop.permute.xlu0 %1605
      %1607 = vrot.lane.b32.xlu0 %v1584, 27
      %v1608 = vpop.permute.xlu0 %1607
      %1609 = vrot.lane.b32.xlu0 %v1595, 27
      %v1610 = vpop.permute.xlu0 %1609
      %1611 = vrot.lane.b32.xlu0 %v1585, 27
      %v1612 = vpop.permute.xlu0 %1611
      %1613 = vrot.lane.b32.xlu0 %v1596, 27
      %v1614 = vpop.permute.xlu0 %1613
      %vm1615 = vcmask 220160
      %v1616 = vsel %vm1615, %v1598, %v1600
      %v1617 = vsel %vm1615, %v1600, %v1602
      %v1618 = vsel %vm1615, %v1602, %v1604
      %v1619 = vsel %vm1615, %v1604, %v1606
      %v1620 = vsel %vm1615, %v1606, %v1608
      %v1621 = vsel %vm1615, %v1608, %v1610
      %v1622 = vsel %vm1615, %v1610, %v1612
      %v1623 = vsel %vm1615, %v1612, %v1614
      %1632 = vst [vmem:[#allocation3 + $0x2c0] sm:$0xf0] %v1616
      %1633 = vst [vmem:[#allocation3 + $0x2c8] sm:$0xf0] %v1617
      %1634 = vst [vmem:[#allocation3 + $0x2d0] sm:$0xf0] %v1618
      %1635 = vst [vmem:[#allocation3 + $0x2d8] sm:$0xf0] %v1619
      %1636 = vst [vmem:[#allocation3 + $0x2e0] sm:$0xf0] %v1620
      %1637 = vst [vmem:[#allocation3 + $0x2e8] sm:$0xf0] %v1621
      %1638 = vst [vmem:[#allocation3 + $0x2f0] sm:$0xf0] %v1622
      %1639 = vst.msk [vmem:[#allocation3 + $0x2f8] sm:$0xf0] %vm328, %v1623
      %v1640 = vld [vmem:[#allocation2 + $0x4] sm:$0xff]
      %v1641 = vld [vmem:[#allocation2 + $0xc] sm:$0xff]
      %v1642 = vld [vmem:[#allocation2 + $0x14] sm:$0xff]
      %v1643 = vld [vmem:[#allocation2 + $0x1c] sm:$0xff]
      %v1644 = vld [vmem:[#allocation2 + $0x24] sm:$0xf]
      %v1650 = vcombine.high %v1640, %v1640
      %v1651 = vcombine.high %v1641, %v1641
      %v1652 = vcombine.high %v1642, %v1642
      %v1653 = vcombine.high %v1643, %v1643
      %1654 = vrot.lane.b32.xlu0 %v1640, 19
      %v1655 = vpop.permute.xlu0 %1654
      %1656 = vrot.lane.b32.xlu0 %v1650, 19
      %v1657 = vpop.permute.xlu0 %1656
      %1658 = vrot.lane.b32.xlu0 %v1641, 19
      %v1659 = vpop.permute.xlu0 %1658
      %1660 = vrot.lane.b32.xlu0 %v1651, 19
      %v1661 = vpop.permute.xlu0 %1660
      %1662 = vrot.lane.b32.xlu0 %v1642, 19
      %v1663 = vpop.permute.xlu0 %1662
      %1664 = vrot.lane.b32.xlu0 %v1652, 19
      %v1665 = vpop.permute.xlu0 %1664
      %1666 = vrot.lane.b32.xlu0 %v1643, 19
      %v1667 = vpop.permute.xlu0 %1666
      %1668 = vrot.lane.b32.xlu0 %v1653, 19
      %v1669 = vpop.permute.xlu0 %1668
      %1670 = vrot.lane.b32.xlu0 %v1644, 19
      %v1671 = vpop.permute.xlu0 %1670
      %vm1672 = vcmask 154624
      %v1673 = vsel %vm1672, %v1655, %v1657
      %v1674 = vsel %vm1672, %v1657, %v1659
      %v1675 = vsel %vm1672, %v1659, %v1661
      %v1676 = vsel %vm1672, %v1661, %v1663
      %v1677 = vsel %vm1672, %v1663, %v1665
      %v1678 = vsel %vm1672, %v1665, %v1667
      %v1679 = vsel %vm1672, %v1667, %v1669
      %v1680 = vsel %vm1672, %v1669, %v1671
      %1689 = vst [vmem:[#allocation3 + $0x300] sm:$0xf] %v1673
      %1690 = vst [vmem:[#allocation3 + $0x308] sm:$0xf] %v1674
      %1691 = vst [vmem:[#allocation3 + $0x310] sm:$0xf] %v1675
      %1692 = vst [vmem:[#allocation3 + $0x318] sm:$0xf] %v1676
      %1693 = vst [vmem:[#allocation3 + $0x320] sm:$0xf] %v1677
      %1694 = vst [vmem:[#allocation3 + $0x328] sm:$0xf] %v1678
      %1695 = vst [vmem:[#allocation3 + $0x330] sm:$0xf] %v1679
      %1696 = vst.msk [vmem:[#allocation3 + $0x338] sm:$0xf] %vm382, %v1680
      %v1697 = vld [vmem:[#allocation2 + $0x4] sm:$0xff]
      %v1698 = vld [vmem:[#allocation2 + $0xc] sm:$0xff]
      %v1699 = vld [vmem:[#allocation2 + $0x14] sm:$0xff]
      %v1700 = vld [vmem:[#allocation2 + $0x1c] sm:$0xff]
      %v1701 = vld [vmem:[#allocation2 + $0x24] sm:$0xf]
      %v1707 = vcombine.low %v1697, %v1697
      %v1708 = vcombine.low %v1698, %v1698
      %v1709 = vcombine.low %v1699, %v1699
      %v1710 = vcombine.low %v1700, %v1700
      %v1711 = vcombine.low %v1701, %v1701
      %1712 = vrot.lane.b32.xlu0 %v1707, 18
      %v1713 = vpop.permute.xlu0 %1712
      %1714 = vrot.lane.b32.xlu0 %v1697, 18
      %v1715 = vpop.permute.xlu0 %1714
      %1716 = vrot.lane.b32.xlu0 %v1708, 18
      %v1717 = vpop.permute.xlu0 %1716
      %1718 = vrot.lane.b32.xlu0 %v1698, 18
      %v1719 = vpop.permute.xlu0 %1718
      %1720 = vrot.lane.b32.xlu0 %v1709, 18
      %v1721 = vpop.permute.xlu0 %1720
      %1722 = vrot.lane.b32.xlu0 %v1699, 18
      %v1723 = vpop.permute.xlu0 %1722
      %1724 = vrot.lane.b32.xlu0 %v1710, 18
      %v1725 = vpop.permute.xlu0 %1724
      %1726 = vrot.lane.b32.xlu0 %v1700, 18
      %v1727 = vpop.permute.xlu0 %1726
      %1728 = vrot.lane.b32.xlu0 %v1711, 18
      %v1729 = vpop.permute.xlu0 %1728
      %vm1730 = vcmask 146432
      %v1731 = vsel %vm1730, %v1713, %v1715
      %v1732 = vsel %vm1730, %v1715, %v1717
      %v1733 = vsel %vm1730, %v1717, %v1719
      %v1734 = vsel %vm1730, %v1719, %v1721
      %v1735 = vsel %vm1730, %v1721, %v1723
      %v1736 = vsel %vm1730, %v1723, %v1725
      %v1737 = vsel %vm1730, %v1725, %v1727
      %v1738 = vsel %vm1730, %v1727, %v1729
      %1747 = vst [vmem:[#allocation3 + $0x300] sm:$0xf0] %v1731
      %1748 = vst [vmem:[#allocation3 + $0x308] sm:$0xf0] %v1732
      %1749 = vst [vmem:[#allocation3 + $0x310] sm:$0xf0] %v1733
      %1750 = vst [vmem:[#allocation3 + $0x318] sm:$0xf0] %v1734
      %1751 = vst [vmem:[#allocation3 + $0x320] sm:$0xf0] %v1735
      %1752 = vst [vmem:[#allocation3 + $0x328] sm:$0xf0] %v1736
      %1753 = vst [vmem:[#allocation3 + $0x330] sm:$0xf0] %v1737
      %1754 = vst.msk [vmem:[#allocation3 + $0x338] sm:$0xf0] %vm328, %v1738
      %v1755 = vld [vmem:[#allocation2 + $0x4] sm:$0xff]
      %v1756 = vld [vmem:[#allocation2 + $0xc] sm:$0xff]
      %v1757 = vld [vmem:[#allocation2 + $0x14] sm:$0xff]
      %v1758 = vld [vmem:[#allocation2 + $0x1c] sm:$0xff]
      %v1759 = vld [vmem:[#allocation2 + $0x24] sm:$0xf]
      %v1765 = vcombine.high %v1755, %v1755
      %v1766 = vcombine.high %v1756, %v1756
      %v1767 = vcombine.high %v1757, %v1757
      %v1768 = vcombine.high %v1758, %v1758
      %1769 = vrot.lane.b32.xlu0 %v1755, 17
      %v1770 = vpop.permute.xlu0 %1769
      %1771 = vrot.lane.b32.xlu0 %v1765, 17
      %v1772 = vpop.permute.xlu0 %1771
      %1773 = vrot.lane.b32.xlu0 %v1756, 17
      %v1774 = vpop.permute.xlu0 %1773
      %1775 = vrot.lane.b32.xlu0 %v1766, 17
      %v1776 = vpop.permute.xlu0 %1775
      %1777 = vrot.lane.b32.xlu0 %v1757, 17
      %v1778 = vpop.permute.xlu0 %1777
      %1779 = vrot.lane.b32.xlu0 %v1767, 17
      %v1780 = vpop.permute.xlu0 %1779
      %1781 = vrot.lane.b32.xlu0 %v1758, 17
      %v1782 = vpop.permute.xlu0 %1781
      %1783 = vrot.lane.b32.xlu0 %v1768, 17
      %v1784 = vpop.permute.xlu0 %1783
      %1785 = vrot.lane.b32.xlu0 %v1759, 17
      %v1786 = vpop.permute.xlu0 %1785
      %vm1787 = vcmask 138240
      %v1788 = vsel %vm1787, %v1770, %v1772
      %v1789 = vsel %vm1787, %v1772, %v1774
      %v1790 = vsel %vm1787, %v1774, %v1776
      %v1791 = vsel %vm1787, %v1776, %v1778
      %v1792 = vsel %vm1787, %v1778, %v1780
      %v1793 = vsel %vm1787, %v1780, %v1782
      %v1794 = vsel %vm1787, %v1782, %v1784
      %v1795 = vsel %vm1787, %v1784, %v1786
      %1804 = vst [vmem:[#allocation3 + $0x340] sm:$0xf] %v1788
      %1805 = vst [vmem:[#allocation3 + $0x348] sm:$0xf] %v1789
      %1806 = vst [vmem:[#allocation3 + $0x350] sm:$0xf] %v1790
      %1807 = vst [vmem:[#allocation3 + $0x358] sm:$0xf] %v1791
      %1808 = vst [vmem:[#allocation3 + $0x360] sm:$0xf] %v1792
      %1809 = vst [vmem:[#allocation3 + $0x368] sm:$0xf] %v1793
      %1810 = vst [vmem:[#allocation3 + $0x370] sm:$0xf] %v1794
      %1811 = vst.msk [vmem:[#allocation3 + $0x378] sm:$0xf] %vm382, %v1795
      %v1812 = vld [vmem:[%s2] sm:$0xf]
      %v1813 = vld [vmem:[#allocation3] sm:$0xff]
      %v1814 = vld [vmem:[#allocation3 + $0x8] sm:$0xff]
      %v1815 = vld [vmem:[#allocation3 + $0x10] sm:$0xff]
      %v1816 = vld [vmem:[#allocation3 + $0x18] sm:$0xff]
      %v1817 = vld [vmem:[#allocation3 + $0x20] sm:$0xff]
      %v1818 = vld [vmem:[#allocation3 + $0x28] sm:$0xff]
      %v1819 = vld [vmem:[#allocation3 + $0x30] sm:$0xff]
      %v1820 = vld [vmem:[#allocation3 + $0x38] sm:$0xff]
      %v1821 = vld [vmem:[#allocation3 + $0x40] sm:$0xff]
      %v1822 = vld [vmem:[#allocation3 + $0x48] sm:$0xff]
      %v1823 = vld [vmem:[#allocation3 + $0x50] sm:$0xff]
      %v1824 = vld [vmem:[#allocation3 + $0x58] sm:$0xff]
      %v1825 = vld [vmem:[#allocation3 + $0x60] sm:$0xff]
      %v1826 = vld [vmem:[#allocation3 + $0x68] sm:$0xff]
      %v1827 = vld [vmem:[#allocation3 + $0x70] sm:$0xff]
      %v1828 = vld [vmem:[#allocation3 + $0x78] sm:$0xff]
      %v1829 = vld [vmem:[#allocation3 + $0x80] sm:$0xff]
      %v1830 = vld [vmem:[#allocation3 + $0x88] sm:$0xff]
      %v1831 = vld [vmem:[#allocation3 + $0x90] sm:$0xff]
      %v1832 = vld [vmem:[#allocation3 + $0x98] sm:$0xff]
      %v1833 = vld [vmem:[#allocation3 + $0xa0] sm:$0xff]
      %v1834 = vld [vmem:[#allocation3 + $0xa8] sm:$0xff]
      %v1835 = vld [vmem:[#allocation3 + $0xb0] sm:$0xff]
      %v1836 = vld [vmem:[#allocation3 + $0xb8] sm:$0xff]
      %v1837 = vld [vmem:[#allocation3 + $0xc0] sm:$0xff]
      %v1838 = vld [vmem:[#allocation3 + $0xc8] sm:$0xff]
      %v1839 = vld [vmem:[#allocation3 + $0xd0] sm:$0xff]
      %v1840 = vld [vmem:[#allocation3 + $0xd8] sm:$0xff]
      %v1841 = vld [vmem:[#allocation3 + $0xe0] sm:$0xff]
      %v1842 = vld [vmem:[#allocation3 + $0xe8] sm:$0xff]
      %v1843 = vld [vmem:[#allocation3 + $0xf0] sm:$0xff]
      %v1844 = vld [vmem:[#allocation3 + $0xf8] sm:$0xff]
      %v1845 = vld [vmem:[#allocation3 + $0x100] sm:$0xff]
      %v1846 = vld [vmem:[#allocation3 + $0x108] sm:$0xff]
      %v1847 = vld [vmem:[#allocation3 + $0x110] sm:$0xff]
      %v1848 = vld [vmem:[#allocation3 + $0x118] sm:$0xff]
      %v1849 = vld [vmem:[#allocation3 + $0x120] sm:$0xff]
      %v1850 = vld [vmem:[#allocation3 + $0x128] sm:$0xff]
      %v1851 = vld [vmem:[#allocation3 + $0x130] sm:$0xff]
      %v1852 = vld [vmem:[#allocation3 + $0x138] sm:$0xff]
      %v1853 = vld [vmem:[#allocation3 + $0x140] sm:$0xff]
      %v1854 = vld [vmem:[#allocation3 + $0x148] sm:$0xff]
      %v1855 = vld [vmem:[#allocation3 + $0x150] sm:$0xff]
      %v1856 = vld [vmem:[#allocation3 + $0x158] sm:$0xff]
      %v1857 = vld [vmem:[#allocation3 + $0x160] sm:$0xff]
      %v1858 = vld [vmem:[#allocation3 + $0x168] sm:$0xff]
      %v1859 = vld [vmem:[#allocation3 + $0x170] sm:$0xff]
      %v1860 = vld [vmem:[#allocation3 + $0x178] sm:$0xff]
      %v1861 = vld [vmem:[#allocation3 + $0x180] sm:$0xff]
      %v1862 = vld [vmem:[#allocation3 + $0x188] sm:$0xff]
      %v1863 = vld [vmem:[#allocation3 + $0x190] sm:$0xff]
      %v1864 = vld [vmem:[#allocation3 + $0x198] sm:$0xff]
      %v1865 = vld [vmem:[#allocation3 + $0x1a0] sm:$0xff]
      %v1866 = vld [vmem:[#allocation3 + $0x1a8] sm:$0xff]
      %v1867 = vld [vmem:[#allocation3 + $0x1b0] sm:$0xff]
      %v1868 = vld [vmem:[#allocation3 + $0x1b8] sm:$0xff]
      %v1869 = vld [vmem:[#allocation3 + $0x1c0] sm:$0xff]
      %v1870 = vld [vmem:[#allocation3 + $0x1c8] sm:$0xff]
      %v1871 = vld [vmem:[#allocation3 + $0x1d0] sm:$0xff]
      %v1872 = vld [vmem:[#allocation3 + $0x1d8] sm:$0xff]
      %v1873 = vld [vmem:[#allocation3 + $0x1e0] sm:$0xff]
      %v1874 = vld [vmem:[#allocation3 + $0x1e8] sm:$0xff]
      %v1875 = vld [vmem:[#allocation3 + $0x1f0] sm:$0xff]
      %v1876 = vld [vmem:[#allocation3 + $0x1f8] sm:$0xff]
      %v1877 = vld [vmem:[#allocation3 + $0x200] sm:$0xff]
      %v1878 = vld [vmem:[#allocation3 + $0x208] sm:$0xff]
      %v1879 = vld [vmem:[#allocation3 + $0x210] sm:$0xff]
      %v1880 = vld [vmem:[#allocation3 + $0x218] sm:$0xff]
      %v1881 = vld [vmem:[#allocation3 + $0x220] sm:$0xff]
      %v1882 = vld [vmem:[#allocation3 + $0x228] sm:$0xff]
      %v1883 = vld [vmem:[#allocation3 + $0x230] sm:$0xff]
      %v1884 = vld [vmem:[#allocation3 + $0x238] sm:$0xff]
      %v1885 = vld [vmem:[#allocation3 + $0x240] sm:$0xff]
      %v1886 = vld [vmem:[#allocation3 + $0x248] sm:$0xff]
      %v1887 = vld [vmem:[#allocation3 + $0x250] sm:$0xff]
      %v1888 = vld [vmem:[#allocation3 + $0x258] sm:$0xff]
      %v1889 = vld [vmem:[#allocation3 + $0x260] sm:$0xff]
      %v1890 = vld [vmem:[#allocation3 + $0x268] sm:$0xff]
      %v1891 = vld [vmem:[#allocation3 + $0x270] sm:$0xff]
      %v1892 = vld [vmem:[#allocation3 + $0x278] sm:$0xff]
      %v1893 = vld [vmem:[#allocation3 + $0x280] sm:$0xff]
      %v1894 = vld [vmem:[#allocation3 + $0x288] sm:$0xff]
      %v1895 = vld [vmem:[#allocation3 + $0x290] sm:$0xff]
      %v1896 = vld [vmem:[#allocation3 + $0x298] sm:$0xff]
      %v1897 = vld [vmem:[#allocation3 + $0x2a0] sm:$0xff]
      %v1898 = vld [vmem:[#allocation3 + $0x2a8] sm:$0xff]
      %v1899 = vld [vmem:[#allocation3 + $0x2b0] sm:$0xff]
      %v1900 = vld [vmem:[#allocation3 + $0x2b8] sm:$0xff]
      %v1901 = vld [vmem:[#allocation3 + $0x2c0] sm:$0xff]
      %v1902 = vld [vmem:[#allocation3 + $0x2c8] sm:$0xff]
      %v1903 = vld [vmem:[#allocation3 + $0x2d0] sm:$0xff]
      %v1904 = vld [vmem:[#allocation3 + $0x2d8] sm:$0xff]
      %v1905 = vld [vmem:[#allocation3 + $0x2e0] sm:$0xff]
      %v1906 = vld [vmem:[#allocation3 + $0x2e8] sm:$0xff]
      %v1907 = vld [vmem:[#allocation3 + $0x2f0] sm:$0xff]
      %v1908 = vld [vmem:[#allocation3 + $0x2f8] sm:$0xff]
      %v1909 = vld [vmem:[#allocation3 + $0x300] sm:$0xff]
      %v1910 = vld [vmem:[#allocation3 + $0x308] sm:$0xff]
      %v1911 = vld [vmem:[#allocation3 + $0x310] sm:$0xff]
      %v1912 = vld [vmem:[#allocation3 + $0x318] sm:$0xff]
      %v1913 = vld [vmem:[#allocation3 + $0x320] sm:$0xff]
      %v1914 = vld [vmem:[#allocation3 + $0x328] sm:$0xff]
      %v1915 = vld [vmem:[#allocation3 + $0x330] sm:$0xff]
      %v1916 = vld [vmem:[#allocation3 + $0x338] sm:$0xff]
      %v1917 = vld [vmem:[#allocation3 + $0x340] sm:$0xf]
      %v1918 = vld [vmem:[#allocation3 + $0x348] sm:$0xf]
      %v1919 = vld [vmem:[#allocation3 + $0x350] sm:$0xf]
      %v1920 = vld [vmem:[#allocation3 + $0x358] sm:$0xf]
      %v1921 = vld [vmem:[#allocation3 + $0x360] sm:$0xf]
      %v1922 = vld [vmem:[#allocation3 + $0x368] sm:$0xf]
      %v1923 = vld [vmem:[#allocation3 + $0x370] sm:$0xf]
      %v1924 = vld [vmem:[#allocation3 + $0x378] sm:$0xf]
      %v1925 = vld [vmem:[%s3] sm:$0xf]
      %1927 = vset.pattern.permute.xlu0 0
      %1928 = vperm.xlu0 %1927, %v1925
      %v1929 = vpop.permute.xlu0 %1928
      %vm1931 = vcmask 883712
      %v1933 = vsel %vm1931, %v1812, 0
      %v1936 = vsel %vm327, %v1917, 0
      %v1939 = vsel %vm327, %v1918, 0
      %v1942 = vsel %vm327, %v1919, 0
      %v1945 = vsel %vm327, %v1920, 0
      %v1948 = vsel %vm327, %v1921, 0
      %v1951 = vsel %vm327, %v1922, 0
      %v1954 = vsel %vm327, %v1923, 0
      %v1957 = vsel %vm327, %v1924, 0
      %1959 = vmatprep.subr.mxu0 %v1814
      %1960 = vmatpush1.msra.mxu0 %v1813
      %1961 = vmatprep.subr.mxu0 %v1822
      %1962 = vmatpush1.msra.mxu0 %v1821
      %1963 = vmatprep.subr.mxu0 %v1830
      %1964 = vmatpush1.msra.mxu0 %v1829
      %1965 = vmatprep.subr.mxu0 %v1838
      %1966 = vmatpush1.msra.mxu0 %v1837
      %1967 = vmatprep.subr.mxu0 %v1846
      %1968 = vmatpush1.msra.mxu0 %v1845
      %1969 = vmatprep.subr.mxu0 %v1854
      %1970 = vmatpush1.msra.mxu0 %v1853
      %1971 = vmatprep.subr.mxu0 %v1862
      %1972 = vmatpush1.msra.mxu0 %v1861
      %1973 = vmatprep.subr.mxu0 %v1870
      %1974 = vmatpush1.msra.mxu0 %v1869
      %1975 = vmatprep.subr.mxu0 %v1878
      %1976 = vmatpush1.msra.mxu0 %v1877
      %1977 = vmatprep.subr.mxu0 %v1886
      %1978 = vmatpush1.msra.mxu0 %v1885
      %1979 = vmatprep.subr.mxu0 %v1894
      %1980 = vmatpush1.msra.mxu0 %v1893
      %1981 = vmatprep.subr.mxu0 %v1902
      %1982 = vmatpush1.msra.mxu0 %v1901
      %1983 = vmatprep.subr.mxu0 %v1910
      %1984 = vmatpush1.msra.mxu0 %v1909
      %1985 = vmatprep.subr.mxu0 %v1939
      %1986 = vmatpush1.msra.mxu0 %v1936
      %1987 = vmatprep.subr.mxu0 0.0
      %1988 = vmatpush1.msra.mxu0 0.0
      %1989 = vmatprep.subr.mxu0 0.0
      %1990 = vmatpush1.msra.mxu0 0.0
      %1991 = vmatprep.subr.mxu0 0.0
      %1992 = vmatpush1.msra.mxu0 0.0
      %1993 = vmatprep.subr.mxu0 0.0
      %1994 = vmatpush1.msra.mxu0 0.0
      %1995 = vmatprep.subr.mxu0 0.0
      %1996 = vmatpush1.msra.mxu0 0.0
      %1997 = vmatprep.subr.mxu0 0.0
      %1998 = vmatpush1.msra.mxu0 0.0
      %1999 = vmatprep.subr.mxu0 0.0
      %2000 = vmatpush1.msra.mxu0 0.0
      %2001 = vmatprep.subr.mxu0 0.0
      %2002 = vmatpush1.msra.mxu0 0.0
      %2003 = vmatprep.subr.mxu0 0.0
      %2004 = vmatpush1.msra.mxu0 0.0
      %2005 = vmatprep.subr.mxu0 0.0
      %2006 = vmatpush1.msra.mxu0 0.0
      %2007 = vmatprep.subr.mxu0 0.0
      %2008 = vmatpush1.msra.mxu0 0.0
      %2009 = vmatprep.subr.mxu0 0.0
      %2010 = vmatpush1.msra.mxu0 0.0
      %2011 = vmatprep.subr.mxu0 0.0
      %2012 = vmatpush1.msra.mxu0 0.0
      %2013 = vmatprep.subr.mxu0 0.0
      %2014 = vmatpush1.msra.mxu0 0.0
      %2015 = vmatprep.subr.mxu0 0.0
      %2016 = vmatpush1.msra.mxu0 0.0
      %2017 = vmatprep.subr.mxu0 0.0
      %2018 = vmatpush1.msra.mxu0 0.0
      %2019 = vmatprep.subr.mxu0 0.0
      %2020 = vmatpush1.msra.mxu0 0.0
      %2021 = vmatprep.subr.mxu0 0.0
      %2022 = vmatpush1.msra.mxu0 0.0
      %2023 = vmatprep.mubr.f32.mxu0 0.0
      %2024 = vmatmul.mubr.f32.gmra.mrb[0].mxu0 %v1933
      %v2025 = vpop.f32.mrb[0].mxu0
      %v2026 = vadd.f32 %v1929, %v2025
      %v2027 = vpop.f32.mrb[0].mxu0
      %v2028 = vadd.f32 %v1929, %v2027
      %2029 = vdwg.mxu0
      %2030 = vmatprep.subr.mxu0 %v1816
      %2031 = vmatpush1.msra.mxu0 %v1815
      %2032 = vmatprep.subr.mxu0 %v1824
      %2033 = vmatpush1.msra.mxu0 %v1823
      %2034 = vmatprep.subr.mxu0 %v1832
      %2035 = vmatpush1.msra.mxu0 %v1831
      %2036 = vmatprep.subr.mxu0 %v1840
      %2037 = vmatpush1.msra.mxu0 %v1839
      %2038 = vmatprep.subr.mxu0 %v1848
      %2039 = vmatpush1.msra.mxu0 %v1847
      %2040 = vmatprep.subr.mxu0 %v1856
      %2041 = vmatpush1.msra.mxu0 %v1855
      %2042 = vmatprep.subr.mxu0 %v1864
      %2043 = vmatpush1.msra.mxu0 %v1863
      %2044 = vmatprep.subr.mxu0 %v1872
      %2045 = vmatpush1.msra.mxu0 %v1871
      %2046 = vmatprep.subr.mxu0 %v1880
      %2047 = vmatpush1.msra.mxu0 %v1879
      %2048 = vmatprep.subr.mxu0 %v1888
      %2049 = vmatpush1.msra.mxu0 %v1887
      %2050 = vmatprep.subr.mxu0 %v1896
      %2051 = vmatpush1.msra.mxu0 %v1895
      %2052 = vmatprep.subr.mxu0 %v1904
      %2053 = vmatpush1.msra.mxu0 %v1903
      %2054 = vmatprep.subr.mxu0 %v1912
      %2055 = vmatpush1.msra.mxu0 %v1911
      %2056 = vmatprep.subr.mxu0 %v1945
      %2057 = vmatpush1.msra.mxu0 %v1942
      %2058 = vmatprep.subr.mxu0 0.0
      %2059 = vmatpush1.msra.mxu0 0.0
      %2060 = vmatprep.subr.mxu0 0.0
      %2061 = vmatpush1.msra.mxu0 0.0
      %2062 = vmatprep.subr.mxu0 0.0
      %2063 = vmatpush1.msra.mxu0 0.0
      %2064 = vmatprep.subr.mxu0 0.0
      %2065 = vmatpush1.msra.mxu0 0.0
      %2066 = vmatprep.subr.mxu0 0.0
      %2067 = vmatpush1.msra.mxu0 0.0
      %2068 = vmatprep.subr.mxu0 0.0
      %2069 = vmatpush1.msra.mxu0 0.0
      %2070 = vmatprep.subr.mxu0 0.0
      %2071 = vmatpush1.msra.mxu0 0.0
      %2072 = vmatprep.subr.mxu0 0.0
      %2073 = vmatpush1.msra.mxu0 0.0
      %2074 = vmatprep.subr.mxu0 0.0
      %2075 = vmatpush1.msra.mxu0 0.0
      %2076 = vmatprep.subr.mxu0 0.0
      %2077 = vmatpush1.msra.mxu0 0.0
      %2078 = vmatprep.subr.mxu0 0.0
      %2079 = vmatpush1.msra.mxu0 0.0
      %2080 = vmatprep.subr.mxu0 0.0
      %2081 = vmatpush1.msra.mxu0 0.0
      %2082 = vmatprep.subr.mxu0 0.0
      %2083 = vmatpush1.msra.mxu0 0.0
      %2084 = vmatprep.subr.mxu0 0.0
      %2085 = vmatpush1.msra.mxu0 0.0
      %2086 = vmatprep.subr.mxu0 0.0
      %2087 = vmatpush1.msra.mxu0 0.0
      %2088 = vmatprep.subr.mxu0 0.0
      %2089 = vmatpush1.msra.mxu0 0.0
      %2090 = vmatprep.subr.mxu0 0.0
      %2091 = vmatpush1.msra.mxu0 0.0
      %2092 = vmatprep.subr.mxu0 0.0
      %2093 = vmatpush1.msra.mxu0 0.0
      %2094 = vmatprep.mubr.f32.mxu0 0.0
      %2095 = vmatmul.mubr.f32.gmra.mrb[0].mxu0 %v1933
      %v2096 = vpop.f32.mrb[0].mxu0
      %v2097 = vadd.f32 %v1929, %v2096
      %v2098 = vpop.f32.mrb[0].mxu0
      %v2099 = vadd.f32 %v1929, %v2098
      %2100 = vdwg.mxu0
      %2101 = vmatprep.subr.mxu0 %v1818
      %2102 = vmatpush1.msra.mxu0 %v1817
      %2103 = vmatprep.subr.mxu0 %v1826
      %2104 = vmatpush1.msra.mxu0 %v1825
      %2105 = vmatprep.subr.mxu0 %v1834
      %2106 = vmatpush1.msra.mxu0 %v1833
      %2107 = vmatprep.subr.mxu0 %v1842
      %2108 = vmatpush1.msra.mxu0 %v1841
      %2109 = vmatprep.subr.mxu0 %v1850
      %2110 = vmatpush1.msra.mxu0 %v1849
      %2111 = vmatprep.subr.mxu0 %v1858
      %2112 = vmatpush1.msra.mxu0 %v1857
      %2113 = vmatprep.subr.mxu0 %v1866
      %2114 = vmatpush1.msra.mxu0 %v1865
      %2115 = vmatprep.subr.mxu0 %v1874
      %2116 = vmatpush1.msra.mxu0 %v1873
      %2117 = vmatprep.subr.mxu0 %v1882
      %2118 = vmatpush1.msra.mxu0 %v1881
      %2119 = vmatprep.subr.mxu0 %v1890
      %2120 = vmatpush1.msra.mxu0 %v1889
      %2121 = vmatprep.subr.mxu0 %v1898
      %2122 = vmatpush1.msra.mxu0 %v1897
      %2123 = vmatprep.subr.mxu0 %v1906
      %2124 = vmatpush1.msra.mxu0 %v1905
      %2125 = vmatprep.subr.mxu0 %v1914
      %2126 = vmatpush1.msra.mxu0 %v1913
      %2127 = vmatprep.subr.mxu0 %v1951
      %2128 = vmatpush1.msra.mxu0 %v1948
      %2129 = vmatprep.subr.mxu0 0.0
      %2130 = vmatpush1.msra.mxu0 0.0
      %2131 = vmatprep.subr.mxu0 0.0
      %2132 = vmatpush1.msra.mxu0 0.0
      %2133 = vmatprep.subr.mxu0 0.0
      %2134 = vmatpush1.msra.mxu0 0.0
      %2135 = vmatprep.subr.mxu0 0.0
      %2136 = vmatpush1.msra.mxu0 0.0
      %2137 = vmatprep.subr.mxu0 0.0
      %2138 = vmatpush1.msra.mxu0 0.0
      %2139 = vmatprep.subr.mxu0 0.0
      %2140 = vmatpush1.msra.mxu0 0.0
      %2141 = vmatprep.subr.mxu0 0.0
      %2142 = vmatpush1.msra.mxu0 0.0
      %2143 = vmatprep.subr.mxu0 0.0
      %2144 = vmatpush1.msra.mxu0 0.0
      %2145 = vmatprep.subr.mxu0 0.0
      %2146 = vmatpush1.msra.mxu0 0.0
      %2147 = vmatprep.subr.mxu0 0.0
      %2148 = vmatpush1.msra.mxu0 0.0
      %2149 = vmatprep.subr.mxu0 0.0
      %2150 = vmatpush1.msra.mxu0 0.0
      %2151 = vmatprep.subr.mxu0 0.0
      %2152 = vmatpush1.msra.mxu0 0.0
      %2153 = vmatprep.subr.mxu0 0.0
      %2154 = vmatpush1.msra.mxu0 0.0
      %2155 = vmatprep.subr.mxu0 0.0
      %2156 = vmatpush1.msra.mxu0 0.0
      %2157 = vmatprep.subr.mxu0 0.0
      %2158 = vmatpush1.msra.mxu0 0.0
      %2159 = vmatprep.subr.mxu0 0.0
      %2160 = vmatpush1.msra.mxu0 0.0
      %2161 = vmatprep.subr.mxu0 0.0
      %2162 = vmatpush1.msra.mxu0 0.0
      %2163 = vmatprep.subr.mxu0 0.0
      %2164 = vmatpush1.msra.mxu0 0.0
      %2165 = vmatprep.mubr.f32.mxu0 0.0
      %2166 = vmatmul.mubr.f32.gmra.mrb[0].mxu0 %v1933
      %v2167 = vpop.f32.mrb[0].mxu0
      %v2168 = vadd.f32 %v1929, %v2167
      %v2169 = vpop.f32.mrb[0].mxu0
      %v2170 = vadd.f32 %v1929, %v2169
      %2171 = vdwg.mxu0
      %2172 = vmatprep.subr.mxu0 %v1820
      %2173 = vmatpush1.msra.mxu0 %v1819
      %2174 = vmatprep.subr.mxu0 %v1828
      %2175 = vmatpush1.msra.mxu0 %v1827
      %2176 = vmatprep.subr.mxu0 %v1836
      %2177 = vmatpush1.msra.mxu0 %v1835
      %2178 = vmatprep.subr.mxu0 %v1844
      %2179 = vmatpush1.msra.mxu0 %v1843
      %2180 = vmatprep.subr.mxu0 %v1852
      %2181 = vmatpush1.msra.mxu0 %v1851
      %2182 = vmatprep.subr.mxu0 %v1860
      %2183 = vmatpush1.msra.mxu0 %v1859
      %2184 = vmatprep.subr.mxu0 %v1868
      %2185 = vmatpush1.msra.mxu0 %v1867
      %2186 = vmatprep.subr.mxu0 %v1876
      %2187 = vmatpush1.msra.mxu0 %v1875
      %2188 = vmatprep.subr.mxu0 %v1884
      %2189 = vmatpush1.msra.mxu0 %v1883
      %2190 = vmatprep.subr.mxu0 %v1892
      %2191 = vmatpush1.msra.mxu0 %v1891
      %2192 = vmatprep.subr.mxu0 %v1900
      %2193 = vmatpush1.msra.mxu0 %v1899
      %2194 = vmatprep.subr.mxu0 %v1908
      %2195 = vmatpush1.msra.mxu0 %v1907
      %2196 = vmatprep.subr.mxu0 %v1916
      %2197 = vmatpush1.msra.mxu0 %v1915
      %2198 = vmatprep.subr.mxu0 %v1957
      %2199 = vmatpush1.msra.mxu0 %v1954
      %2200 = vmatprep.subr.mxu0 0.0
      %2201 = vmatpush1.msra.mxu0 0.0
      %2202 = vmatprep.subr.mxu0 0.0
      %2203 = vmatpush1.msra.mxu0 0.0
      %2204 = vmatprep.subr.mxu0 0.0
      %2205 = vmatpush1.msra.mxu0 0.0
      %2206 = vmatprep.subr.mxu0 0.0
      %2207 = vmatpush1.msra.mxu0 0.0
      %2208 = vmatprep.subr.mxu0 0.0
      %2209 = vmatpush1.msra.mxu0 0.0
      %2210 = vmatprep.subr.mxu0 0.0
      %2211 = vmatpush1.msra.mxu0 0.0
      %2212 = vmatprep.subr.mxu0 0.0
      %2213 = vmatpush1.msra.mxu0 0.0
      %2214 = vmatprep.subr.mxu0 0.0
      %2215 = vmatpush1.msra.mxu0 0.0
      %2216 = vmatprep.subr.mxu0 0.0
      %2217 = vmatpush1.msra.mxu0 0.0
      %2218 = vmatprep.subr.mxu0 0.0
      %2219 = vmatpush1.msra.mxu0 0.0
      %2220 = vmatprep.subr.mxu0 0.0
      %2221 = vmatpush1.msra.mxu0 0.0
      %2222 = vmatprep.subr.mxu0 0.0
      %2223 = vmatpush1.msra.mxu0 0.0
      %2224 = vmatprep.subr.mxu0 0.0
      %2225 = vmatpush1.msra.mxu0 0.0
      %2226 = vmatprep.subr.mxu0 0.0
      %2227 = vmatpush1.msra.mxu0 0.0
      %2228 = vmatprep.subr.mxu0 0.0
      %2229 = vmatpush1.msra.mxu0 0.0
      %2230 = vmatprep.subr.mxu0 0.0
      %2231 = vmatpush1.msra.mxu0 0.0
      %2232 = vmatprep.subr.mxu0 0.0
      %2233 = vmatpush1.msra.mxu0 0.0
      %2234 = vmatprep.subr.mxu0 0.0
      %2235 = vmatpush1.msra.mxu0 0.0
      %2236 = vmatprep.mubr.f32.mxu0 0.0
      %2237 = vmatmul.mubr.f32.gmra.mrb[0].mxu0 %v1933
      %v2238 = vpop.f32.mrb[0].mxu0
      %v2239 = vadd.f32 %v1929, %v2238
      %v2240 = vpop.f32.mrb[0].mxu0
      %v2241 = vadd.f32 %v1929, %v2240
      %2242 = vdwg.mxu0
      %v2243 = vmul.f32 %v2026, %v270
      %v2244 = vmul.f32 %v2028, %v274
      %v2245 = vmul.f32 %v2097, %v278
      %v2246 = vmul.f32 %v2099, %v282
      %v2247 = vmul.f32 %v2168, %v286
      %v2248 = vmul.f32 %v2170, %v290
      %v2249 = vmul.f32 %v2239, %v294
      %v2250 = vmul.f32 %v2241, %v298
      %v2259 = vcombine.low %v2243, %v2244
      %v2260 = vcombine.low %v2245, %v2246
      %v2261 = vcombine.low %v2247, %v2248
      %v2262 = vcombine.low %v2249, %v2250
      %2267 = vst [vmem:[%s224] sm:$0xff] %v2259
      %2268 = vst [vmem:[%s224 + $0x8] sm:$0xff] %v2260
      %2269 = vst [vmem:[%s224 + $0x10] sm:$0xff] %v2261
      %2270 = vst.msk [vmem:[%s224 + $0x18] sm:$0xff] %vm329, %v2262
      %p2271 = scmp.lt.s32.totalorder %s16, 1
      %s2272 = scalar_select %p2271, %s16, 1
      %s2273 = smul.addr %s2272, 8
      %s2274 = smul.addr %s2273, 4
      %s2275 = scalar_lea.vmem %s5, %s2274
      // Predicated region
      $region41: #{residual_block.5} parent=39 // pred_check
        %p2276 = pneg %p144
      $region42: #{residual_block.5} parent=39 // pred_check_branch
        %2278 = sbr.rel (%p2276) target = $region44
      $region43: #{residual_block.5} parent=39 // pred_region
        _
      $region44: #{residual_block.5} parent=39 // pred_fallthru
        _
    $region40: #{residual_block.5} parent=5 // pred_fallthru
      _
    %p2279 = scmp.le.s32.totalorder 2, %s11
    // Predicated region
    $region45: #{residual_block.5} parent=5 // pred_check
      %p2280 = pneg %p2279
    $region46: #{residual_block.5} parent=5 // pred_check_branch
      %2282 = sbr.rel (%p2280) target = $region48
    $region47: #{residual_block.5} parent=5 // pred_region
      %s2283 = ssub.s32 %s11, 2
      // Predicated region
      $region49: #{residual_block.5} parent=47 // pred_check
        %p2284 = pneg %p150
      $region50: #{residual_block.5} parent=47 // pred_check_branch
        %2286 = sbr.rel (%p2284) target = $region52
      $region51: #{residual_block.5} parent=47 // pred_region
        %p2287 = scmp.lt.s32.totalorder %s17, 1
        %s2288 = scalar_select %p2287, %s17, 1
        %s2289 = smul.addr %s2288, 8
        %s2290 = smul.addr %s2289, 4
        %s2291 = scalar_lea.vmem %s5, %s2290
      $region52: #{residual_block.5} parent=47 // pred_fallthru
        _
    $region48: #{residual_block.5} parent=5 // pred_fallthru
      _
  $region6: #{residual_block.5} parent=0 // loop_footer
    %s15 = sadd.s32 1, %s11
  $region7: #{residual_block.5} parent=0 // loop_footer_branch
    %10 = sbr.rel target = $region3
  $region8: #{residual_block.5} parent=0 // loop_exit
    _

// kernel: residual_block.7
$region0: #{residual_block.7}
  #allocation0 [shape = 'u32[]', space=smem, size = 0x4, offset = 0x4, fixed_abs, tag = 'smem constant byte address 0x4 - core index']
  #allocation1 [shape = 'u32[144,128]{1,0:T(1,128)}', space=vmem, size = 0x12000, scoped, tag = 'internal scratch']
  #allocation2 [shape = 'f32[4,1280]{1,0:T(4,128)}', space=vmem, size = 0x5000, scoped, tag = 'scratch operand']
  #allocation3 [shape = 'f32[108,1000]{1,0:T(8,128)}', space=vmem, size = 0x70000, scoped, tag = 'scratch operand']
  %s0 = inlined_call_operand.vmem [shape: f32[2,4,1000], index: 0, kind: input, shape index: {}, may-alias: {0,5}]
  %s1 = inlined_call_operand.vmem [shape: f32[4,2], index: 1, kind: input, shape index: {}]
  %s2 = inlined_call_operand.vmem [shape: f32[4,108], index: 2, kind: input, shape index: {}]
  %s3 = inlined_call_operand.vmem [shape: f32[4,1], index: 3, kind: input, shape index: {}]
  %s4 = inlined_call_operand.vmem [shape: f32[1,1000], index: 4, kind: input, shape index: {}]
  %s5 = inlined_call_operand.vmem [shape: f32[2,4,1000], index: 5, kind: input, shape index: {}, may-alias: {0,5}]
  %s6 = inlined_call_operand.vmem [shape: f32[2,4,1000], index: 6, kind: output, shape index: {}]
  %s7 = sld [smem:[#allocation0]]
  $region57: #{residual_block.7} parent=0
    _
  %s9 = ssub.s32 1, %s7
  %s10 = scalar_select 0, %s9, %s7
  loop: start=0, step=1, limit=4
  $region2: #{residual_block.7} parent=0 // loop_pre_header
    _
  $region3: #{residual_block.7} parent=0 // loop_header
    %s12 = sphi 0, %s16
    %p13 = scmp.ge.s32.totalorder %s12, 4
    %s22 = sphi 0, %s24
    %s25 = sphi 0, %s22
    %s26 = sphi 0, %s25
    %s42 = sphi 0, %s26
    %s46 = sphi 0, %s46
    %s48 = sphi 0, %s46
    %s49 = sphi 0, %s48
    %s63 = sphi 0, %s49
    %s67 = sphi 0, %s67
    %s69 = sphi 0, %s67
    %s70 = sphi 0, %s69
    %s84 = sphi 0, %s70
    %s88 = sphi 0, %s88
    %s90 = sphi 0, %s88
    %s91 = sphi 0, %s90
    %s105 = sphi 0, %s91
    %s109 = sphi 0, %s109
    %s111 = sphi 0, %s109
    %s112 = sphi 0, %s111
    %s126 = sphi 0, %s112
    %s132 = sphi 0, %s134
    %s135 = sphi 0, %s132
    %s136 = sphi 0, %s135
    %s152 = sphi 0, %s136
    %s158 = sphi 0, %s160
    %s161 = sphi 0, %s158
    %s162 = sphi 0, %s161
    %s178 = sphi 0, %s162
  $region4: #{residual_block.7} parent=0 // loop_header_branch
    %15 = sbr.rel (%p13) target = $region8
  $region5: #{residual_block.7} parent=0 // loop_body
    %s17 = ssub.s32 %s12, 1
    %s18 = ssub.s32 %s12, 2
    %s19 = sadd.s32 %s12, 1
    %s20 = ssub.s32 %s12, %s19
    %p21 = scmp.eq.s32.totalorder %s20, 0
    %s23 = sadd.s32 %s22, 1
    %s24 = scalar_select %p21, %s22, %s23
    %p27 = pneg %p21
    %p28 = scmp.eq.s32.totalorder %s12, 1
    %p29 = por %p27, %p28
    %p30 = scmp.ne.s32.totalorder %s22, %s25
    %p31 = scmp.eq.s32.totalorder %s12, 0
    %p32 = por %p30, %p31
    %p33 = scmp.ne.s32.totalorder %s22, %s25
    %p34 = scmp.eq.s32.totalorder %s17, 1
    %p35 = por %p33, %p34
    %p36 = scmp.ne.s32.totalorder %s25, %s26
    %p37 = scmp.eq.s32.totalorder %s17, 0
    %p38 = por %p36, %p37
    %p39 = scmp.ne.s32.totalorder %s25, %s26
    %p40 = scmp.eq.s32.totalorder %s18, 1
    %p41 = por %p39, %p40
    %p43 = scmp.ne.s32.totalorder %s26, %s42
    %p44 = scmp.eq.s32.totalorder %s18, 0
    %p45 = por %p43, %p44
    %s47 = sadd.s32 %s46, 1
    %p50 = scmp.eq.s32.totalorder %s12, 1
    %p51 = scmp.ne.s32.totalorder %s46, %s48
    %p52 = scmp.eq.s32.totalorder %s12, 0
    %p53 = por %p51, %p52
    %p54 = scmp.ne.s32.totalorder %s46, %s48
    %p55 = scmp.eq.s32.totalorder %s17, 1
    %p56 = por %p54, %p55
    %p57 = scmp.ne.s32.totalorder %s48, %s49
    %p58 = scmp.eq.s32.totalorder %s17, 0
    %p59 = por %p57, %p58
    %p60 = scmp.ne.s32.totalorder %s48, %s49
    %p61 = scmp.eq.s32.totalorder %s18, 1
    %p62 = por %p60, %p61
    %p64 = scmp.ne.s32.totalorder %s49, %s63
    %p65 = scmp.eq.s32.totalorder %s18, 0
    %p66 = por %p64, %p65
    %s68 = sadd.s32 %s67, 1
    %p71 = scmp.eq.s32.totalorder %s12, 1
    %p72 = scmp.ne.s32.totalorder %s67, %s69
    %p73 = scmp.eq.s32.totalorder %s12, 0
    %p74 = por %p72, %p73
    %p75 = scmp.ne.s32.totalorder %s67, %s69
    %p76 = scmp.eq.s32.totalorder %s17, 1
    %p77 = por %p75, %p76
    %p78 = scmp.ne.s32.totalorder %s69, %s70
    %p79 = scmp.eq.s32.totalorder %s17, 0
    %p80 = por %p78, %p79
    %p81 = scmp.ne.s32.totalorder %s69, %s70
    %p82 = scmp.eq.s32.totalorder %s18, 1
    %p83 = por %p81, %p82
    %p85 = scmp.ne.s32.totalorder %s70, %s84
    %p86 = scmp.eq.s32.totalorder %s18, 0
    %p87 = por %p85, %p86
    %s89 = sadd.s32 %s88, 1
    %p92 = scmp.eq.s32.totalorder %s12, 1
    %p93 = scmp.ne.s32.totalorder %s88, %s90
    %p94 = scmp.eq.s32.totalorder %s12, 0
    %p95 = por %p93, %p94
    %p96 = scmp.ne.s32.totalorder %s88, %s90
    %p97 = scmp.eq.s32.totalorder %s17, 1
    %p98 = por %p96, %p97
    %p99 = scmp.ne.s32.totalorder %s90, %s91
    %p100 = scmp.eq.s32.totalorder %s17, 0
    %p101 = por %p99, %p100
    %p102 = scmp.ne.s32.totalorder %s90, %s91
    %p103 = scmp.eq.s32.totalorder %s18, 1
    %p104 = por %p102, %p103
    %p106 = scmp.ne.s32.totalorder %s91, %s105
    %p107 = scmp.eq.s32.totalorder %s18, 0
    %p108 = por %p106, %p107
    %s110 = sadd.s32 %s109, 1
    %p113 = scmp.eq.s32.totalorder %s12, 1
    %p114 = scmp.ne.s32.totalorder %s109, %s111
    %p115 = scmp.eq.s32.totalorder %s12, 0
    %p116 = por %p114, %p115
    %p117 = scmp.ne.s32.totalorder %s109, %s111
    %p118 = scmp.eq.s32.totalorder %s17, 1
    %p119 = por %p117, %p118
    %p120 = scmp.ne.s32.totalorder %s111, %s112
    %p121 = scmp.eq.s32.totalorder %s17, 0
    %p122 = por %p120, %p121
    %p123 = scmp.ne.s32.totalorder %s111, %s112
    %p124 = scmp.eq.s32.totalorder %s18, 1
    %p125 = por %p123, %p124
    %p127 = scmp.ne.s32.totalorder %s112, %s126
    %p128 = scmp.eq.s32.totalorder %s18, 0
    %p129 = por %p127, %p128
    %s130 = ssub.s32 %s12, %s19
    %p131 = scmp.eq.s32.totalorder %s130, 0
    %s133 = sadd.s32 %s132, 1
    %s134 = scalar_select %p131, %s132, %s133
    %p137 = pneg %p131
    %p138 = scmp.eq.s32.totalorder %s12, 1
    %p139 = por %p137, %p138
    %p140 = scmp.ne.s32.totalorder %s132, %s135
    %p141 = scmp.eq.s32.totalorder %s12, 0
    %p142 = por %p140, %p141
    %p143 = scmp.ne.s32.totalorder %s132, %s135
    %p144 = scmp.eq.s32.totalorder %s17, 1
    %p145 = por %p143, %p144
    %p146 = scmp.ne.s32.totalorder %s135, %s136
    %p147 = scmp.eq.s32.totalorder %s17, 0
    %p148 = por %p146, %p147
    %p149 = scmp.ne.s32.totalorder %s135, %s136
    %p150 = scmp.eq.s32.totalorder %s18, 1
    %p151 = por %p149, %p150
    %p153 = scmp.ne.s32.totalorder %s136, %s152
    %p154 = scmp.eq.s32.totalorder %s18, 0
    %p155 = por %p153, %p154
    %s156 = ssub.s32 %s12, %s19
    %p157 = scmp.eq.s32.totalorder %s156, 0
    %s159 = sadd.s32 %s158, 1
    %s160 = scalar_select %p157, %s158, %s159
    %p163 = pneg %p157
    %p164 = scmp.eq.s32.totalorder %s12, 1
    %p165 = por %p163, %p164
    %p166 = scmp.ne.s32.totalorder %s158, %s161
    %p167 = scmp.eq.s32.totalorder %s12, 0
    %p168 = por %p166, %p167
    %p169 = scmp.ne.s32.totalorder %s158, %s161
    %p170 = scmp.eq.s32.totalorder %s17, 1
    %p171 = por %p169, %p170
    %p172 = scmp.ne.s32.totalorder %s161, %s162
    %p173 = scmp.eq.s32.totalorder %s17, 0
    %p174 = por %p172, %p173
    %p175 = scmp.ne.s32.totalorder %s161, %s162
    %p176 = scmp.eq.s32.totalorder %s18, 1
    %p177 = por %p175, %p176
    %p179 = scmp.ne.s32.totalorder %s162, %s178
    %p180 = scmp.eq.s32.totalorder %s18, 0
    %p181 = por %p179, %p180
    %p182 = scmp.le.s32.totalorder 1, %s12
    %p183 = scmp.lt.s32.totalorder %s12, 3
    %p184 = pnand %p182, %p183
    %p185 = pneg %p184
    // Predicated region
    $region9: #{residual_block.7} parent=5 // pred_check
      _
    $region10: #{residual_block.7} parent=5 // pred_check_branch
      %187 = sbr.rel (%p184) target = $region12
    $region11: #{residual_block.7} parent=5 // pred_region
      %s188 = ssub.s32 %s12, 1
      // Predicated region
      $region13: #{residual_block.7} parent=11 // pred_check
        %p189 = pneg %p59
      $region14: #{residual_block.7} parent=11 // pred_check_branch
        %191 = sbr.rel (%p189) target = $region16
      $region15: #{residual_block.7} parent=11 // pred_region
        _
      $region16: #{residual_block.7} parent=11 // pred_fallthru
        _
      // Predicated region
      $region17: #{residual_block.7} parent=11 // pred_check
        %p192 = pneg %p80
      $region18: #{residual_block.7} parent=11 // pred_check_branch
        %194 = sbr.rel (%p192) target = $region20
      $region19: #{residual_block.7} parent=11 // pred_region
        _
      $region20: #{residual_block.7} parent=11 // pred_fallthru
        _
      // Predicated region
      $region21: #{residual_block.7} parent=11 // pred_check
        %p195 = pneg %p101
      $region22: #{residual_block.7} parent=11 // pred_check_branch
        %197 = sbr.rel (%p195) target = $region24
      $region23: #{residual_block.7} parent=11 // pred_region
        _
      $region24: #{residual_block.7} parent=11 // pred_fallthru
        _
      // Predicated region
      $region25: #{residual_block.7} parent=11 // pred_check
        %p198 = pneg %p122
      $region26: #{residual_block.7} parent=11 // pred_check_branch
        %200 = sbr.rel (%p198) target = $region28
      $region27: #{residual_block.7} parent=11 // pred_region
        _
      $region28: #{residual_block.7} parent=11 // pred_fallthru
        _
    $region12: #{residual_block.7} parent=5 // pred_fallthru
      _
    %p201 = scmp.lt.s32.totalorder %s12, 2
    // Predicated region
    $region29: #{residual_block.7} parent=5 // pred_check
      %p202 = pneg %p201
    $region30: #{residual_block.7} parent=5 // pred_check_branch
      %204 = sbr.rel (%p202) target = $region32
    $region31: #{residual_block.7} parent=5 // pred_region
      // Predicated region
      $region33: #{residual_block.7} parent=31 // pred_check
        %p205 = pneg %p32
      $region34: #{residual_block.7} parent=31 // pred_check_branch
        %207 = sbr.rel (%p205) target = $region36
      $region35: #{residual_block.7} parent=31 // pred_region
        %p208 = scmp.lt.s32.totalorder %s12, 1
        %s209 = scalar_select %p208, %s12, 1
        %s210 = smul.addr %s209, 8
        %s211 = smul.addr %s210, 4
        %s212 = scalar_lea.vmem %s0, %s211
      $region36: #{residual_block.7} parent=31 // pred_fallthru
        _
      // Predicated region
      $region37: #{residual_block.7} parent=31 // pred_check
        %p213 = pneg %p142
      $region38: #{residual_block.7} parent=31 // pred_check_branch
        %215 = sbr.rel (%p213) target = $region40
      $region39: #{residual_block.7} parent=31 // pred_region
        %p216 = scmp.lt.s32.totalorder %s12, 1
        %s217 = scalar_select %p216, %s12, 1
        %s218 = smul.addr %s217, 8
        %s219 = smul.addr %s218, 4
        %s220 = scalar_lea.vmem %s5, %s219
      $region40: #{residual_block.7} parent=31 // pred_fallthru
        _
    $region32: #{residual_block.7} parent=5 // pred_fallthru
      _
    %p221 = scmp.le.s32.totalorder 1, %s12
    %p222 = scmp.lt.s32.totalorder %s12, 3
    %p223 = pnand %p221, %p222
    %p224 = pneg %p223
    // Predicated region
    $region41: #{residual_block.7} parent=5 // pred_check
      _
    $region42: #{residual_block.7} parent=5 // pred_check_branch
      %226 = sbr.rel (%p223) target = $region44
    $region43: #{residual_block.7} parent=5 // pred_region
      %s227 = ssub.s32 %s12, 1
      %p228 = scmp.lt.s32.totalorder %s17, 1
      %s229 = scalar_select %p228, %s17, 1
      %s230 = smul.addr %s229, 8
      %s231 = smul.addr %s230, 4
      %s232 = scalar_lea.vmem %s0, %s231
      %p233 = pneg %p38
      %p234 = pneg %p35
      %p235 = pneg %p59
      %p236 = pneg %p56
      %p237 = pneg %p80
      %p238 = pneg %p77
      %p239 = pneg %p101
      %p240 = pneg %p98
      %p241 = pneg %p122
      %p242 = pneg %p119
      %p243 = scmp.lt.s32.totalorder %s17, 1
      %s244 = scalar_select %p243, %s17, 1
      %s245 = smul.addr %s244, 8
      %s246 = smul.addr %s245, 4
      %s247 = scalar_lea.vmem %s5, %s246
      %p248 = pneg %p148
      %p249 = pneg %p145
      %p250 = pneg %p174
      %p251 = pneg %p171
      %p252 = scmp.lt.s32.totalorder %s17, 1
      %s253 = scalar_select %p252, %s17, 1
      %s254 = smul.addr %s253, 8
      %s255 = smul.addr %s254, 4
      %s256 = scalar_lea.vmem %s6, %s255
      %p257 = scmp.lt.s32.totalorder %s17, 1
      %s258 = scalar_select %p257, %s17, 1
      %s259 = smul.addr %s258, 8
      %s260 = smul.addr %s259, 4
      %s261 = scalar_lea.vmem %s0, %s260
      %p262 = scmp.lt.s32.totalorder %s17, 1
      %s263 = scalar_select %p262, %s17, 1
      %s264 = smul.addr %s263, 8
      %s265 = smul.addr %s264, 4
      %s266 = scalar_lea.vmem %s5, %s265
      %p267 = scmp.lt.s32.totalorder %s17, 1
      %s268 = scalar_select %p267, %s17, 1
      %s269 = smul.addr %s268, 8
      %s270 = smul.addr %s269, 4
      %s271 = scalar_lea.vmem %s6, %s270
      %v272 = vld [vmem:[%s1] sm:$0xf]
      %v273 = vld [vmem:[%s4] sm:$0xff]
      %v274 = vld [vmem:[%s261] sm:$0xff]
      %v275 = vld [vmem:[%s261 + $0x8] sm:$0xff]
      %v276 = vld [vmem:[%s261 + $0x10] sm:$0xff]
      %v277 = vld [vmem:[%s261 + $0x18] sm:$0xff]
      %279 = vset.pattern.permute.xlu0 0
      %280 = vperm.xlu0 %279, %v272
      %v281 = vpop.permute.xlu0 %280
      %v283 = vunpack.c.l.s4 839922192
      %v284 = vunpack.c.0.s8 %v283
      %v285 = vlaneseq
      %v286 = vshrl.u32 %v285, 7
      %v287 = vsub.s32 %v284, %v286
      %v288 = vrot.slane %v281, %v287
      %v290 = vmul.f32 %v274, %v288
      %v291 = vmul.f32 %v275, %v288
      %v292 = vmul.f32 %v276, %v288
      %v293 = vmul.f32 %v277, %v288
      %294 = vset.pattern.permute.xlu0 1
      %295 = vperm.xlu0 %294, %v272
      %v296 = vpop.permute.xlu0 %295
      %v298 = vunpack.c.l.s4 839922192
      %v299 = vunpack.c.0.s8 %v298
      %v300 = vlaneseq
      %v301 = vshrl.u32 %v300, 7
      %v302 = vsub.s32 %v299, %v301
      %v303 = vrot.slane %v296, %v302
      %v305 = vadd.f32 %v290, %v303
      %v306 = vadd.f32 %v291, %v303
      %v307 = vadd.f32 %v292, %v303
      %v308 = vadd.f32 %v293, %v303
      %v309 = vmax.f32 %v305, 0.0
      %v310 = vmax.f32 %v306, 0.0
      %v311 = vmax.f32 %v307, 0.0
      %v312 = vmax.f32 %v308, 0.0
      %v314 = vlaneseq
      %v315 = vshrl.u32 %v314, 7
      %v316 = vsub.s32 0, %v315
      %v317 = vrot.slane %v273, %v316
      %v318 = vlaneseq
      %v319 = vshrl.u32 %v318, 7
      %v320 = vsub.s32 1, %v319
      %v321 = vrot.slane %v273, %v320
      %v322 = vlaneseq
      %v323 = vshrl.u32 %v322, 7
      %v324 = vsub.s32 2, %v323
      %v325 = vrot.slane %v273, %v324
      %v326 = vlaneseq
      %v327 = vshrl.u32 %v326, 7
      %v328 = vsub.s32 3, %v327
      %v329 = vrot.slane %v273, %v328
      %v330 = vlaneseq
      %v331 = vshrl.u32 %v330, 7
      %v332 = vsub.s32 4, %v331
      %v333 = vrot.slane %v273, %v332
      %v334 = vlaneseq
      %v335 = vshrl.u32 %v334, 7
      %v336 = vsub.s32 5, %v335
      %v337 = vrot.slane %v273, %v336
      %v338 = vlaneseq
      %v339 = vshrl.u32 %v338, 7
      %v340 = vsub.s32 6, %v339
      %v341 = vrot.slane %v273, %v340
      %v342 = vlaneseq
      %v343 = vshrl.u32 %v342, 7
      %v344 = vsub.s32 7, %v343
      %v345 = vrot.slane %v273, %v344
      %v354 = vcombine.low %v317, %v321
      %v355 = vcombine.low %v325, %v329
      %v356 = vcombine.low %v333, %v337
      %v357 = vcombine.low %v341, %v345
      %v362 = vmul.f32 %v309, %v354
      %v363 = vmul.f32 %v310, %v355
      %v364 = vmul.f32 %v311, %v356
      %v365 = vmul.f32 %v312, %v357
      %366 = vst [vmem:[#allocation2] sm:$0xff] 0.0
      %367 = vst [vmem:[#allocation2 + $0x8] sm:$0xff] 0.0
      %368 = vst [vmem:[#allocation2 + $0x10] sm:$0xff] 0.0
      %369 = vst [vmem:[#allocation2 + $0x18] sm:$0xff] 0.0
      %370 = vst [vmem:[#allocation2 + $0x20] sm:$0xff] 0.0
      %371 = vst [vmem:[#allocation2 + $0x4] sm:$0xff] %v362
      %372 = vst [vmem:[#allocation2 + $0xc] sm:$0xff] %v363
      %373 = vst [vmem:[#allocation2 + $0x14] sm:$0xff] %v364
      %vm374 = vcmask 1043456
      %vm375 = vcmask 850948
      %vm376 = vmor %vm375, %vm374
      %377 = vst.msk [vmem:[#allocation2 + $0x1c] sm:$0xff] %vm376, %v365
      %v378 = vld [vmem:[#allocation2] sm:$0xff]
      %v379 = vld [vmem:[#allocation2 + $0x8] sm:$0xff]
      %v380 = vld [vmem:[#allocation2 + $0x10] sm:$0xff]
      %v381 = vld [vmem:[#allocation2 + $0x18] sm:$0xff]
      %v386 = vcombine.high %v378, %v378
      %v387 = vcombine.high %v379, %v379
      %v388 = vcombine.high %v380, %v380
      %v389 = vcombine.high %v381, %v381
      %390 = vrot.lane.b32.xlu0 %v378, 111
      %v391 = vpop.permute.xlu0 %390
      %392 = vrot.lane.b32.xlu0 %v386, 111
      %v393 = vpop.permute.xlu0 %392
      %394 = vrot.lane.b32.xlu0 %v379, 111
      %v395 = vpop.permute.xlu0 %394
      %396 = vrot.lane.b32.xlu0 %v387, 111
      %v397 = vpop.permute.xlu0 %396
      %398 = vrot.lane.b32.xlu0 %v380, 111
      %v399 = vpop.permute.xlu0 %398
      %400 = vrot.lane.b32.xlu0 %v388, 111
      %v401 = vpop.permute.xlu0 %400
      %402 = vrot.lane.b32.xlu0 %v381, 111
      %v403 = vpop.permute.xlu0 %402
      %404 = vrot.lane.b32.xlu0 %v389, 111
      %v405 = vpop.permute.xlu0 %404
      %vm406 = vcmask 908288
      %v407 = vsel %vm406, %v391, %v393
      %v408 = vsel %vm406, %v393, %v395
      %v409 = vsel %vm406, %v395, %v397
      %v410 = vsel %vm406, %v397, %v399
      %v411 = vsel %vm406, %v399, %v401
      %v412 = vsel %vm406, %v401, %v403
      %v413 = vsel %vm406, %v403, %v405
      %422 = vst [vmem:[#allocation3] sm:$0xf] %v407
      %423 = vst [vmem:[#allocation3 + $0x8] sm:$0xf] %v408
      %424 = vst [vmem:[#allocation3 + $0x10] sm:$0xf] %v409
      %425 = vst [vmem:[#allocation3 + $0x18] sm:$0xf] %v410
      %426 = vst [vmem:[#allocation3 + $0x20] sm:$0xf] %v411
      %427 = vst [vmem:[#allocation3 + $0x28] sm:$0xf] %v412
      %428 = vst [vmem:[#allocation3 + $0x30] sm:$0xf] %v413
      %vm429 = vcmask 846848
      %430 = vst.msk [vmem:[#allocation3 + $0x38] sm:$0xf] %vm429, %v405
      %v431 = vld [vmem:[#allocation2] sm:$0xff]
      %v432 = vld [vmem:[#allocation2 + $0x8] sm:$0xff]
      %v433 = vld [vmem:[#allocation2 + $0x10] sm:$0xff]
      %v434 = vld [vmem:[#allocation2 + $0x18] sm:$0xff]
      %v439 = vcombine.low %v431, %v431
      %v440 = vcombine.low %v432, %v432
      %v441 = vcombine.low %v433, %v433
      %v442 = vcombine.low %v434, %v434
      %443 = vrot.lane.b32.xlu0 %v439, 110
      %v444 = vpop.permute.xlu0 %443
      %445 = vrot.lane.b32.xlu0 %v431, 110
      %v446 = vpop.permute.xlu0 %445
      %447 = vrot.lane.b32.xlu0 %v440, 110
      %v448 = vpop.permute.xlu0 %447
      %449 = vrot.lane.b32.xlu0 %v432, 110
      %v450 = vpop.permute.xlu0 %449
      %451 = vrot.lane.b32.xlu0 %v441, 110
      %v452 = vpop.permute.xlu0 %451
      %453 = vrot.lane.b32.xlu0 %v433, 110
      %v454 = vpop.permute.xlu0 %453
      %455 = vrot.lane.b32.xlu0 %v442, 110
      %v456 = vpop.permute.xlu0 %455
      %457 = vrot.lane.b32.xlu0 %v434, 110
      %v458 = vpop.permute.xlu0 %457
      %vm459 = vcmask 900096
      %v460 = vsel %vm459, %v444, %v446
      %v461 = vsel %vm459, %v446, %v448
      %v462 = vsel %vm459, %v448, %v450
      %v463 = vsel %vm459, %v450, %v452
      %v464 = vsel %vm459, %v452, %v454
      %v465 = vsel %vm459, %v454, %v456
      %v466 = vsel %vm459, %v456, %v458
      %475 = vst [vmem:[#allocation3] sm:$0xf0] %v460
      %476 = vst [vmem:[#allocation3 + $0x8] sm:$0xf0] %v461
      %477 = vst [vmem:[#allocation3 + $0x10] sm:$0xf0] %v462
      %478 = vst [vmem:[#allocation3 + $0x18] sm:$0xf0] %v463
      %479 = vst [vmem:[#allocation3 + $0x20] sm:$0xf0] %v464
      %480 = vst [vmem:[#allocation3 + $0x28] sm:$0xf0] %v465
      %481 = vst [vmem:[#allocation3 + $0x30] sm:$0xf0] %v466
      %482 = vst.msk [vmem:[#allocation3 + $0x38] sm:$0xf0] %vm375, %v458
      %v483 = vld [vmem:[#allocation2] sm:$0xff]
      %v484 = vld [vmem:[#allocation2 + $0x8] sm:$0xff]
      %v485 = vld [vmem:[#allocation2 + $0x10] sm:$0xff]
      %v486 = vld [vmem:[#allocation2 + $0x18] sm:$0xff]
      %v491 = vcombine.high %v483, %v483
      %v492 = vcombine.high %v484, %v484
      %v493 = vcombine.high %v485, %v485
      %v494 = vcombine.high %v486, %v486
      %495 = vrot.lane.b32.xlu0 %v483, 109
      %v496 = vpop.permute.xlu0 %495
      %497 = vrot.lane.b32.xlu0 %v491, 109
      %v498 = vpop.permute.xlu0 %497
      %499 = vrot.lane.b32.xlu0 %v484, 109
      %v500 = vpop.permute.xlu0 %499
      %501 = vrot.lane.b32.xlu0 %v492, 109
      %v502 = vpop.permute.xlu0 %501
      %503 = vrot.lane.b32.xlu0 %v485, 109
      %v504 = vpop.permute.xlu0 %503
      %505 = vrot.lane.b32.xlu0 %v493, 109
      %v506 = vpop.permute.xlu0 %505
      %507 = vrot.lane.b32.xlu0 %v486, 109
      %v508 = vpop.permute.xlu0 %507
      %509 = vrot.lane.b32.xlu0 %v494, 109
      %v510 = vpop.permute.xlu0 %509
      %vm511 = vcmask 891904
      %v512 = vsel %vm511, %v496, %v498
      %v513 = vsel %vm511, %v498, %v500
      %v514 = vsel %vm511, %v500, %v502
      %v515 = vsel %vm511, %v502, %v504
      %v516 = vsel %vm511, %v504, %v506
      %v517 = vsel %vm511, %v506, %v508
      %v518 = vsel %vm511, %v508, %v510
      %527 = vst [vmem:[#allocation3 + $0x40] sm:$0xf] %v512
      %528 = vst [vmem:[#allocation3 + $0x48] sm:$0xf] %v513
      %529 = vst [vmem:[#allocation3 + $0x50] sm:$0xf] %v514
      %530 = vst [vmem:[#allocation3 + $0x58] sm:$0xf] %v515
      %531 = vst [vmem:[#allocation3 + $0x60] sm:$0xf] %v516
      %532 = vst [vmem:[#allocation3 + $0x68] sm:$0xf] %v517
      %533 = vst [vmem:[#allocation3 + $0x70] sm:$0xf] %v518
      %534 = vst.msk [vmem:[#allocation3 + $0x78] sm:$0xf] %vm429, %v510
      %v535 = vld [vmem:[#allocation2] sm:$0xff]
      %v536 = vld [vmem:[#allocation2 + $0x8] sm:$0xff]
      %v537 = vld [vmem:[#allocation2 + $0x10] sm:$0xff]
      %v538 = vld [vmem:[#allocation2 + $0x18] sm:$0xff]
      %v539 = vld [vmem:[#allocation2 + $0x20] sm:$0xf]
      %v545 = vcombine.low %v535, %v535
      %v546 = vcombine.low %v536, %v536
      %v547 = vcombine.low %v537, %v537
      %v548 = vcombine.low %v538, %v538
      %v549 = vcombine.low %v539, %v539
      %550 = vrot.lane.b32.xlu0 %v545, 101
      %v551 = vpop.permute.xlu0 %550
      %552 = vrot.lane.b32.xlu0 %v535, 101
      %v553 = vpop.permute.xlu0 %552
      %554 = vrot.lane.b32.xlu0 %v546, 101
      %v555 = vpop.permute.xlu0 %554
      %556 = vrot.lane.b32.xlu0 %v536, 101
      %v557 = vpop.permute.xlu0 %556
      %558 = vrot.lane.b32.xlu0 %v547, 101
      %v559 = vpop.permute.xlu0 %558
      %560 = vrot.lane.b32.xlu0 %v537, 101
      %v561 = vpop.permute.xlu0 %560
      %562 = vrot.lane.b32.xlu0 %v548, 101
      %v563 = vpop.permute.xlu0 %562
      %564 = vrot.lane.b32.xlu0 %v538, 101
      %v565 = vpop.permute.xlu0 %564
      %566 = vrot.lane.b32.xlu0 %v549, 101
      %v567 = vpop.permute.xlu0 %566
      %vm568 = vcmask 826368
      %v569 = vsel %vm568, %v551, %v553
      %v570 = vsel %vm568, %v553, %v555
      %v571 = vsel %vm568, %v555, %v557
      %v572 = vsel %vm568, %v557, %v559
      %v573 = vsel %vm568, %v559, %v561
      %v574 = vsel %vm568, %v561, %v563
      %v575 = vsel %vm568, %v563, %v565
      %v576 = vsel %vm568, %v565, %v567
      %585 = vst [vmem:[#allocation3 + $0x40] sm:$0xf0] %v569
      %586 = vst [vmem:[#allocation3 + $0x48] sm:$0xf0] %v570
      %587 = vst [vmem:[#allocation3 + $0x50] sm:$0xf0] %v571
      %588 = vst [vmem:[#allocation3 + $0x58] sm:$0xf0] %v572
      %589 = vst [vmem:[#allocation3 + $0x60] sm:$0xf0] %v573
      %590 = vst [vmem:[#allocation3 + $0x68] sm:$0xf0] %v574
      %591 = vst [vmem:[#allocation3 + $0x70] sm:$0xf0] %v575
      %592 = vst.msk [vmem:[#allocation3 + $0x78] sm:$0xf0] %vm375, %v576
      %v593 = vld [vmem:[#allocation2] sm:$0xff]
      %v594 = vld [vmem:[#allocation2 + $0x8] sm:$0xff]
      %v595 = vld [vmem:[#allocation2 + $0x10] sm:$0xff]
      %v596 = vld [vmem:[#allocation2 + $0x18] sm:$0xff]
      %v597 = vld [vmem:[#allocation2 + $0x20] sm:$0xf]
      %v603 = vcombine.high %v593, %v593
      %v604 = vcombine.high %v594, %v594
      %v605 = vcombine.high %v595, %v595
      %v606 = vcombine.high %v596, %v596
      %607 = vrot.lane.b32.xlu0 %v593, 100
      %v608 = vpop.permute.xlu0 %607
      %609 = vrot.lane.b32.xlu0 %v603, 100
      %v610 = vpop.permute.xlu0 %609
      %611 = vrot.lane.b32.xlu0 %v594, 100
      %v612 = vpop.permute.xlu0 %611
      %613 = vrot.lane.b32.xlu0 %v604, 100
      %v614 = vpop.permute.xlu0 %613
      %615 = vrot.lane.b32.xlu0 %v595, 100
      %v616 = vpop.permute.xlu0 %615
      %617 = vrot.lane.b32.xlu0 %v605, 100
      %v618 = vpop.permute.xlu0 %617
      %619 = vrot.lane.b32.xlu0 %v596, 100
      %v620 = vpop.permute.xlu0 %619
      %621 = vrot.lane.b32.xlu0 %v606, 100
      %v622 = vpop.permute.xlu0 %621
      %623 = vrot.lane.b32.xlu0 %v597, 100
      %v624 = vpop.permute.xlu0 %623
      %vm625 = vcmask 818176
      %v626 = vsel %vm625, %v608, %v610
      %v627 = vsel %vm625, %v610, %v612
      %v628 = vsel %vm625, %v612, %v614
      %v629 = vsel %vm625, %v614, %v616
      %v630 = vsel %vm625, %v616, %v618
      %v631 = vsel %vm625, %v618, %v620
      %v632 = vsel %vm625, %v620, %v622
      %v633 = vsel %vm625, %v622, %v624
      %642 = vst [vmem:[#allocation3 + $0x80] sm:$0xf] %v626
      %643 = vst [vmem:[#allocation3 + $0x88] sm:$0xf] %v627
      %644 = vst [vmem:[#allocation3 + $0x90] sm:$0xf] %v628
      %645 = vst [vmem:[#allocation3 + $0x98] sm:$0xf] %v629
      %646 = vst [vmem:[#allocation3 + $0xa0] sm:$0xf] %v630
      %647 = vst [vmem:[#allocation3 + $0xa8] sm:$0xf] %v631
      %648 = vst [vmem:[#allocation3 + $0xb0] sm:$0xf] %v632
      %649 = vst.msk [vmem:[#allocation3 + $0xb8] sm:$0xf] %vm429, %v633
      %v650 = vld [vmem:[#allocation2] sm:$0xff]
      %v651 = vld [vmem:[#allocation2 + $0x8] sm:$0xff]
      %v652 = vld [vmem:[#allocation2 + $0x10] sm:$0xff]
      %v653 = vld [vmem:[#allocation2 + $0x18] sm:$0xff]
      %v654 = vld [vmem:[#allocation2 + $0x20] sm:$0xf]
      %v660 = vcombine.low %v650, %v650
      %v661 = vcombine.low %v651, %v651
      %v662 = vcombine.low %v652, %v652
      %v663 = vcombine.low %v653, %v653
      %v664 = vcombine.low %v654, %v654
      %665 = vrot.lane.b32.xlu0 %v660, 99
      %v666 = vpop.permute.xlu0 %665
      %667 = vrot.lane.b32.xlu0 %v650, 99
      %v668 = vpop.permute.xlu0 %667
      %669 = vrot.lane.b32.xlu0 %v661, 99
      %v670 = vpop.permute.xlu0 %669
      %671 = vrot.lane.b32.xlu0 %v651, 99
      %v672 = vpop.permute.xlu0 %671
      %673 = vrot.lane.b32.xlu0 %v662, 99
      %v674 = vpop.permute.xlu0 %673
      %675 = vrot.lane.b32.xlu0 %v652, 99
      %v676 = vpop.permute.xlu0 %675
      %677 = vrot.lane.b32.xlu0 %v663, 99
      %v678 = vpop.permute.xlu0 %677
      %679 = vrot.lane.b32.xlu0 %v653, 99
      %v680 = vpop.permute.xlu0 %679
      %681 = vrot.lane.b32.xlu0 %v664, 99
      %v682 = vpop.permute.xlu0 %681
      %vm683 = vcmask 809984
      %v684 = vsel %vm683, %v666, %v668
      %v685 = vsel %vm683, %v668, %v670
      %v686 = vsel %vm683, %v670, %v672
      %v687 = vsel %vm683, %v672, %v674
      %v688 = vsel %vm683, %v674, %v676
      %v689 = vsel %vm683, %v676, %v678
      %v690 = vsel %vm683, %v678, %v680
      %v691 = vsel %vm683, %v680, %v682
      %700 = vst [vmem:[#allocation3 + $0x80] sm:$0xf0] %v684
      %701 = vst [vmem:[#allocation3 + $0x88] sm:$0xf0] %v685
      %702 = vst [vmem:[#allocation3 + $0x90] sm:$0xf0] %v686
      %703 = vst [vmem:[#allocation3 + $0x98] sm:$0xf0] %v687
      %704 = vst [vmem:[#allocation3 + $0xa0] sm:$0xf0] %v688
      %705 = vst [vmem:[#allocation3 + $0xa8] sm:$0xf0] %v689
      %706 = vst [vmem:[#allocation3 + $0xb0] sm:$0xf0] %v690
      %707 = vst.msk [vmem:[#allocation3 + $0xb8] sm:$0xf0] %vm375, %v691
      %v708 = vld [vmem:[#allocation2] sm:$0xff]
      %v709 = vld [vmem:[#allocation2 + $0x8] sm:$0xff]
      %v710 = vld [vmem:[#allocation2 + $0x10] sm:$0xff]
      %v711 = vld [vmem:[#allocation2 + $0x18] sm:$0xff]
      %v712 = vld [vmem:[#allocation2 + $0x20] sm:$0xf]
      %v718 = vcombine.high %v708, %v708
      %v719 = vcombine.high %v709, %v709
      %v720 = vcombine.high %v710, %v710
      %v721 = vcombine.high %v711, %v711
      %722 = vrot.lane.b32.xlu0 %v708, 91
      %v723 = vpop.permute.xlu0 %722
      %724 = vrot.lane.b32.xlu0 %v718, 91
      %v725 = vpop.permute.xlu0 %724
      %726 = vrot.lane.b32.xlu0 %v709, 91
      %v727 = vpop.permute.xlu0 %726
      %728 = vrot.lane.b32.xlu0 %v719, 91
      %v729 = vpop.permute.xlu0 %728
      %730 = vrot.lane.b32.xlu0 %v710, 91
      %v731 = vpop.permute.xlu0 %730
      %732 = vrot.lane.b32.xlu0 %v720, 91
      %v733 = vpop.permute.xlu0 %732
      %734 = vrot.lane.b32.xlu0 %v711, 91
      %v735 = vpop.permute.xlu0 %734
      %736 = vrot.lane.b32.xlu0 %v721, 91
      %v737 = vpop.permute.xlu0 %736
      %738 = vrot.lane.b32.xlu0 %v712, 91
      %v739 = vpop.permute.xlu0 %738
      %vm740 = vcmask 744448
      %v741 = vsel %vm740, %v723, %v725
      %v742 = vsel %vm740, %v725, %v727
      %v743 = vsel %vm740, %v727, %v729
      %v744 = vsel %vm740, %v729, %v731
      %v745 = vsel %vm740, %v731, %v733
      %v746 = vsel %vm740, %v733, %v735
      %v747 = vsel %vm740, %v735, %v737
      %v748 = vsel %vm740, %v737, %v739
      %757 = vst [vmem:[#allocation3 + $0xc0] sm:$0xf] %v741
      %758 = vst [vmem:[#allocation3 + $0xc8] sm:$0xf] %v742
      %759 = vst [vmem:[#allocation3 + $0xd0] sm:$0xf] %v743
      %760 = vst [vmem:[#allocation3 + $0xd8] sm:$0xf] %v744
      %761 = vst [vmem:[#allocation3 + $0xe0] sm:$0xf] %v745
      %762 = vst [vmem:[#allocation3 + $0xe8] sm:$0xf] %v746
      %763 = vst [vmem:[#allocation3 + $0xf0] sm:$0xf] %v747
      %764 = vst.msk [vmem:[#allocation3 + $0xf8] sm:$0xf] %vm429, %v748
      %v765 = vld [vmem:[#allocation2] sm:$0xff]
      %v766 = vld [vmem:[#allocation2 + $0x8] sm:$0xff]
      %v767 = vld [vmem:[#allocation2 + $0x10] sm:$0xff]
      %v768 = vld [vmem:[#allocation2 + $0x18] sm:$0xff]
      %v769 = vld [vmem:[#allocation2 + $0x20] sm:$0xf]
      %v775 = vcombine.low %v765, %v765
      %v776 = vcombine.low %v766, %v766
      %v777 = vcombine.low %v767, %v767
      %v778 = vcombine.low %v768, %v768
      %v779 = vcombine.low %v769, %v769
      %780 = vrot.lane.b32.xlu0 %v775, 90
      %v781 = vpop.permute.xlu0 %780
      %782 = vrot.lane.b32.xlu0 %v765, 90
      %v783 = vpop.permute.xlu0 %782
      %784 = vrot.lane.b32.xlu0 %v776, 90
      %v785 = vpop.permute.xlu0 %784
      %786 = vrot.lane.b32.xlu0 %v766, 90
      %v787 = vpop.permute.xlu0 %786
      %788 = vrot.lane.b32.xlu0 %v777, 90
      %v789 = vpop.permute.xlu0 %788
      %790 = vrot.lane.b32.xlu0 %v767, 90
      %v791 = vpop.permute.xlu0 %790
      %792 = vrot.lane.b32.xlu0 %v778, 90
      %v793 = vpop.permute.xlu0 %792
      %794 = vrot.lane.b32.xlu0 %v768, 90
      %v795 = vpop.permute.xlu0 %794
      %796 = vrot.lane.b32.xlu0 %v779, 90
      %v797 = vpop.permute.xlu0 %796
      %vm798 = vcmask 736256
      %v799 = vsel %vm798, %v781, %v783
      %v800 = vsel %vm798, %v783, %v785
      %v801 = vsel %vm798, %v785, %v787
      %v802 = vsel %vm798, %v787, %v789
      %v803 = vsel %vm798, %v789, %v791
      %v804 = vsel %vm798, %v791, %v793
      %v805 = vsel %vm798, %v793, %v795
      %v806 = vsel %vm798, %v795, %v797
      %815 = vst [vmem:[#allocation3 + $0xc0] sm:$0xf0] %v799
      %816 = vst [vmem:[#allocation3 + $0xc8] sm:$0xf0] %v800
      %817 = vst [vmem:[#allocation3 + $0xd0] sm:$0xf0] %v801
      %818 = vst [vmem:[#allocation3 + $0xd8] sm:$0xf0] %v802
      %819 = vst [vmem:[#allocation3 + $0xe0] sm:$0xf0] %v803
      %820 = vst [vmem:[#allocation3 + $0xe8] sm:$0xf0] %v804
      %821 = vst [vmem:[#allocation3 + $0xf0] sm:$0xf0] %v805
      %822 = vst.msk [vmem:[#allocation3 + $0xf8] sm:$0xf0] %vm375, %v806
      %v823 = vld [vmem:[#allocation2] sm:$0xff]
      %v824 = vld [vmem:[#allocation2 + $0x8] sm:$0xff]
      %v825 = vld [vmem:[#allocation2 + $0x10] sm:$0xff]
      %v826 = vld [vmem:[#allocation2 + $0x18] sm:$0xff]
      %v827 = vld [vmem:[#allocation2 + $0x20] sm:$0xf]
      %v833 = vcombine.high %v823, %v823
      %v834 = vcombine.high %v824, %v824
      %v835 = vcombine.high %v825, %v825
      %v836 = vcombine.high %v826, %v826
      %837 = vrot.lane.b32.xlu0 %v823, 89
      %v838 = vpop.permute.xlu0 %837
      %839 = vrot.lane.b32.xlu0 %v833, 89
      %v840 = vpop.permute.xlu0 %839
      %841 = vrot.lane.b32.xlu0 %v824, 89
      %v842 = vpop.permute.xlu0 %841
      %843 = vrot.lane.b32.xlu0 %v834, 89
      %v844 = vpop.permute.xlu0 %843
      %845 = vrot.lane.b32.xlu0 %v825, 89
      %v846 = vpop.permute.xlu0 %845
      %847 = vrot.lane.b32.xlu0 %v835, 89
      %v848 = vpop.permute.xlu0 %847
      %849 = vrot.lane.b32.xlu0 %v826, 89
      %v850 = vpop.permute.xlu0 %849
      %851 = vrot.lane.b32.xlu0 %v836, 89
      %v852 = vpop.permute.xlu0 %851
      %853 = vrot.lane.b32.xlu0 %v827, 89
      %v854 = vpop.permute.xlu0 %853
      %vm855 = vcmask 728064
      %v856 = vsel %vm855, %v838, %v840
      %v857 = vsel %vm855, %v840, %v842
      %v858 = vsel %vm855, %v842, %v844
      %v859 = vsel %vm855, %v844, %v846
      %v860 = vsel %vm855, %v846, %v848
      %v861 = vsel %vm855, %v848, %v850
      %v862 = vsel %vm855, %v850, %v852
      %v863 = vsel %vm855, %v852, %v854
      %872 = vst [vmem:[#allocation3 + $0x100] sm:$0xf] %v856
      %873 = vst [vmem:[#allocation3 + $0x108] sm:$0xf] %v857
      %874 = vst [vmem:[#allocation3 + $0x110] sm:$0xf] %v858
      %875 = vst [vmem:[#allocation3 + $0x118] sm:$0xf] %v859
      %876 = vst [vmem:[#allocation3 + $0x120] sm:$0xf] %v860
      %877 = vst [vmem:[#allocation3 + $0x128] sm:$0xf] %v861
      %878 = vst [vmem:[#allocation3 + $0x130] sm:$0xf] %v862
      %879 = vst.msk [vmem:[#allocation3 + $0x138] sm:$0xf] %vm429, %v863
      %v880 = vld [vmem:[#allocation2] sm:$0xff]
      %v881 = vld [vmem:[#allocation2 + $0x8] sm:$0xff]
      %v882 = vld [vmem:[#allocation2 + $0x10] sm:$0xff]
      %v883 = vld [vmem:[#allocation2 + $0x18] sm:$0xff]
      %v884 = vld [vmem:[#allocation2 + $0x20] sm:$0xf]
      %v890 = vcombine.low %v880, %v880
      %v891 = vcombine.low %v881, %v881
      %v892 = vcombine.low %v882, %v882
      %v893 = vcombine.low %v883, %v883
      %v894 = vcombine.low %v884, %v884
      %895 = vrot.lane.b32.xlu0 %v890, 11
      %v896 = vpop.permute.xlu0 %895
      %897 = vrot.lane.b32.xlu0 %v880, 11
      %v898 = vpop.permute.xlu0 %897
      %899 = vrot.lane.b32.xlu0 %v891, 11
      %v900 = vpop.permute.xlu0 %899
      %901 = vrot.lane.b32.xlu0 %v881, 11
      %v902 = vpop.permute.xlu0 %901
      %903 = vrot.lane.b32.xlu0 %v892, 11
      %v904 = vpop.permute.xlu0 %903
      %905 = vrot.lane.b32.xlu0 %v882, 11
      %v906 = vpop.permute.xlu0 %905
      %907 = vrot.lane.b32.xlu0 %v893, 11
      %v908 = vpop.permute.xlu0 %907
      %909 = vrot.lane.b32.xlu0 %v883, 11
      %v910 = vpop.permute.xlu0 %909
      %911 = vrot.lane.b32.xlu0 %v894, 11
      %v912 = vpop.permute.xlu0 %911
      %vm913 = vcmask 89088
      %v914 = vsel %vm913, %v896, %v898
      %v915 = vsel %vm913, %v898, %v900
      %v916 = vsel %vm913, %v900, %v902
      %v917 = vsel %vm913, %v902, %v904
      %v918 = vsel %vm913, %v904, %v906
      %v919 = vsel %vm913, %v906, %v908
      %v920 = vsel %vm913, %v908, %v910
      %v921 = vsel %vm913, %v910, %v912
      %930 = vst [vmem:[#allocation3 + $0x100] sm:$0xf0] %v914
      %931 = vst [vmem:[#allocation3 + $0x108] sm:$0xf0] %v915
      %932 = vst [vmem:[#allocation3 + $0x110] sm:$0xf0] %v916
      %933 = vst [vmem:[#allocation3 + $0x118] sm:$0xf0] %v917
      %934 = vst [vmem:[#allocation3 + $0x120] sm:$0xf0] %v918
      %935 = vst [vmem:[#allocation3 + $0x128] sm:$0xf0] %v919
      %936 = vst [vmem:[#allocation3 + $0x130] sm:$0xf0] %v920
      %937 = vst.msk [vmem:[#allocation3 + $0x138] sm:$0xf0] %vm375, %v921
      %v938 = vld [vmem:[#allocation2] sm:$0xff]
      %v939 = vld [vmem:[#allocation2 + $0x8] sm:$0xff]
      %v940 = vld [vmem:[#allocation2 + $0x10] sm:$0xff]
      %v941 = vld [vmem:[#allocation2 + $0x18] sm:$0xff]
      %v942 = vld [vmem:[#allocation2 + $0x20] sm:$0xf]
      %v948 = vcombine.high %v938, %v938
      %v949 = vcombine.high %v939, %v939
      %v950 = vcombine.high %v940, %v940
      %v951 = vcombine.high %v941, %v941
      %952 = vrot.lane.b32.xlu0 %v938, 10
      %v953 = vpop.permute.xlu0 %952
      %954 = vrot.lane.b32.xlu0 %v948, 10
      %v955 = vpop.permute.xlu0 %954
      %956 = vrot.lane.b32.xlu0 %v939, 10
      %v957 = vpop.permute.xlu0 %956
      %958 = vrot.lane.b32.xlu0 %v949, 10
      %v959 = vpop.permute.xlu0 %958
      %960 = vrot.lane.b32.xlu0 %v940, 10
      %v961 = vpop.permute.xlu0 %960
      %962 = vrot.lane.b32.xlu0 %v950, 10
      %v963 = vpop.permute.xlu0 %962
      %964 = vrot.lane.b32.xlu0 %v941, 10
      %v965 = vpop.permute.xlu0 %964
      %966 = vrot.lane.b32.xlu0 %v951, 10
      %v967 = vpop.permute.xlu0 %966
      %968 = vrot.lane.b32.xlu0 %v942, 10
      %v969 = vpop.permute.xlu0 %968
      %vm970 = vcmask 80896
      %v971 = vsel %vm970, %v953, %v955
      %v972 = vsel %vm970, %v955, %v957
      %v973 = vsel %vm970, %v957, %v959
      %v974 = vsel %vm970, %v959, %v961
      %v975 = vsel %vm970, %v961, %v963
      %v976 = vsel %vm970, %v963, %v965
      %v977 = vsel %vm970, %v965, %v967
      %v978 = vsel %vm970, %v967, %v969
      %987 = vst [vmem:[#allocation3 + $0x140] sm:$0xf] %v971
      %988 = vst [vmem:[#allocation3 + $0x148] sm:$0xf] %v972
      %989 = vst [vmem:[#allocation3 + $0x150] sm:$0xf] %v973
      %990 = vst [vmem:[#allocation3 + $0x158] sm:$0xf] %v974
      %991 = vst [vmem:[#allocation3 + $0x160] sm:$0xf] %v975
      %992 = vst [vmem:[#allocation3 + $0x168] sm:$0xf] %v976
      %993 = vst [vmem:[#allocation3 + $0x170] sm:$0xf] %v977
      %994 = vst.msk [vmem:[#allocation3 + $0x178] sm:$0xf] %vm429, %v978
      %v995 = vld [vmem:[#allocation2] sm:$0xff]
      %v996 = vld [vmem:[#allocation2 + $0x8] sm:$0xff]
      %v997 = vld [vmem:[#allocation2 + $0x10] sm:$0xff]
      %v998 = vld [vmem:[#allocation2 + $0x18] sm:$0xff]
      %v999 = vld [vmem:[#allocation2 + $0x20] sm:$0xf]
      %v1005 = vcombine.low %v995, %v995
      %v1006 = vcombine.low %v996, %v996
      %v1007 = vcombine.low %v997, %v997
      %v1008 = vcombine.low %v998, %v998
      %v1009 = vcombine.low %v999, %v999
      %1010 = vrot.lane.b32.xlu0 %v1005, 9
      %v1011 = vpop.permute.xlu0 %1010
      %1012 = vrot.lane.b32.xlu0 %v995, 9
      %v1013 = vpop.permute.xlu0 %1012
      %1014 = vrot.lane.b32.xlu0 %v1006, 9
      %v1015 = vpop.permute.xlu0 %1014
      %1016 = vrot.lane.b32.xlu0 %v996, 9
      %v1017 = vpop.permute.xlu0 %1016
      %1018 = vrot.lane.b32.xlu0 %v1007, 9
      %v1019 = vpop.permute.xlu0 %1018
      %1020 = vrot.lane.b32.xlu0 %v997, 9
      %v1021 = vpop.permute.xlu0 %1020
      %1022 = vrot.lane.b32.xlu0 %v1008, 9
      %v1023 = vpop.permute.xlu0 %1022
      %1024 = vrot.lane.b32.xlu0 %v998, 9
      %v1025 = vpop.permute.xlu0 %1024
      %1026 = vrot.lane.b32.xlu0 %v1009, 9
      %v1027 = vpop.permute.xlu0 %1026
      %vm1028 = vcmask 72704
      %v1029 = vsel %vm1028, %v1011, %v1013
      %v1030 = vsel %vm1028, %v1013, %v1015
      %v1031 = vsel %vm1028, %v1015, %v1017
      %v1032 = vsel %vm1028, %v1017, %v1019
      %v1033 = vsel %vm1028, %v1019, %v1021
      %v1034 = vsel %vm1028, %v1021, %v1023
      %v1035 = vsel %vm1028, %v1023, %v1025
      %v1036 = vsel %vm1028, %v1025, %v1027
      %1045 = vst [vmem:[#allocation3 + $0x140] sm:$0xf0] %v1029
      %1046 = vst [vmem:[#allocation3 + $0x148] sm:$0xf0] %v1030
      %1047 = vst [vmem:[#allocation3 + $0x150] sm:$0xf0] %v1031
      %1048 = vst [vmem:[#allocation3 + $0x158] sm:$0xf0] %v1032
      %1049 = vst [vmem:[#allocation3 + $0x160] sm:$0xf0] %v1033
      %1050 = vst [vmem:[#allocation3 + $0x168] sm:$0xf0] %v1034
      %1051 = vst [vmem:[#allocation3 + $0x170] sm:$0xf0] %v1035
      %1052 = vst.msk [vmem:[#allocation3 + $0x178] sm:$0xf0] %vm375, %v1036
      %v1053 = vld [vmem:[#allocation2] sm:$0xff]
      %v1054 = vld [vmem:[#allocation2 + $0x8] sm:$0xff]
      %v1055 = vld [vmem:[#allocation2 + $0x10] sm:$0xff]
      %v1056 = vld [vmem:[#allocation2 + $0x18] sm:$0xff]
      %v1057 = vld [vmem:[#allocation2 + $0x20] sm:$0xf]
      %v1063 = vcombine.high %v1053, %v1053
      %v1064 = vcombine.high %v1054, %v1054
      %v1065 = vcombine.high %v1055, %v1055
      %v1066 = vcombine.high %v1056, %v1056
      %1067 = vrot.lane.b32.xlu0 %v1053, 1
      %v1068 = vpop.permute.xlu0 %1067
      %1069 = vrot.lane.b32.xlu0 %v1063, 1
      %v1070 = vpop.permute.xlu0 %1069
      %1071 = vrot.lane.b32.xlu0 %v1054, 1
      %v1072 = vpop.permute.xlu0 %1071
      %1073 = vrot.lane.b32.xlu0 %v1064, 1
      %v1074 = vpop.permute.xlu0 %1073
      %1075 = vrot.lane.b32.xlu0 %v1055, 1
      %v1076 = vpop.permute.xlu0 %1075
      %1077 = vrot.lane.b32.xlu0 %v1065, 1
      %v1078 = vpop.permute.xlu0 %1077
      %1079 = vrot.lane.b32.xlu0 %v1056, 1
      %v1080 = vpop.permute.xlu0 %1079
      %1081 = vrot.lane.b32.xlu0 %v1066, 1
      %v1082 = vpop.permute.xlu0 %1081
      %1083 = vrot.lane.b32.xlu0 %v1057, 1
      %v1084 = vpop.permute.xlu0 %1083
      %vm1085 = vcmask 7168
      %v1086 = vsel %vm1085, %v1068, %v1070
      %v1087 = vsel %vm1085, %v1070, %v1072
      %v1088 = vsel %vm1085, %v1072, %v1074
      %v1089 = vsel %vm1085, %v1074, %v1076
      %v1090 = vsel %vm1085, %v1076, %v1078
      %v1091 = vsel %vm1085, %v1078, %v1080
      %v1092 = vsel %vm1085, %v1080, %v1082
      %v1093 = vsel %vm1085, %v1082, %v1084
      %1102 = vst [vmem:[#allocation3 + $0x180] sm:$0xf] %v1086
      %1103 = vst [vmem:[#allocation3 + $0x188] sm:$0xf] %v1087
      %1104 = vst [vmem:[#allocation3 + $0x190] sm:$0xf] %v1088
      %1105 = vst [vmem:[#allocation3 + $0x198] sm:$0xf] %v1089
      %1106 = vst [vmem:[#allocation3 + $0x1a0] sm:$0xf] %v1090
      %1107 = vst [vmem:[#allocation3 + $0x1a8] sm:$0xf] %v1091
      %1108 = vst [vmem:[#allocation3 + $0x1b0] sm:$0xf] %v1092
      %1109 = vst.msk [vmem:[#allocation3 + $0x1b8] sm:$0xf] %vm429, %v1093
      %v1110 = vld [vmem:[#allocation2 + $0x4] sm:$0xff]
      %v1111 = vld [vmem:[#allocation2 + $0xc] sm:$0xff]
      %v1112 = vld [vmem:[#allocation2 + $0x14] sm:$0xff]
      %v1113 = vld [vmem:[#allocation2 + $0x1c] sm:$0xff]
      %v1118 = vcombine.low %v1110, %v1110
      %v1119 = vcombine.low %v1111, %v1111
      %v1120 = vcombine.low %v1112, %v1112
      %v1121 = vcombine.low %v1113, %v1113
      %1126 = vst [vmem:[#allocation3 + $0x180] sm:$0xf0] %v1118
      %1127 = vst [vmem:[#allocation3 + $0x188] sm:$0xf0] %v1110
      %1128 = vst [vmem:[#allocation3 + $0x190] sm:$0xf0] %v1119
      %1129 = vst [vmem:[#allocation3 + $0x198] sm:$0xf0] %v1111
      %1130 = vst [vmem:[#allocation3 + $0x1a0] sm:$0xf0] %v1120
      %1131 = vst [vmem:[#allocation3 + $0x1a8] sm:$0xf0] %v1112
      %1132 = vst [vmem:[#allocation3 + $0x1b0] sm:$0xf0] %v1121
      %1133 = vst.msk [vmem:[#allocation3 + $0x1b8] sm:$0xf0] %vm375, %v1113
      %v1134 = vld [vmem:[#allocation2 + $0x4] sm:$0xff]
      %v1135 = vld [vmem:[#allocation2 + $0xc] sm:$0xff]
      %v1136 = vld [vmem:[#allocation2 + $0x14] sm:$0xff]
      %v1137 = vld [vmem:[#allocation2 + $0x1c] sm:$0xff]
      %v1142 = vcombine.high %v1134, %v1134
      %v1143 = vcombine.high %v1135, %v1135
      %v1144 = vcombine.high %v1136, %v1136
      %v1145 = vcombine.high %v1137, %v1137
      %1146 = vrot.lane.b32.xlu0 %v1134, 127
      %v1147 = vpop.permute.xlu0 %1146
      %1148 = vrot.lane.b32.xlu0 %v1142, 127
      %v1149 = vpop.permute.xlu0 %1148
      %1150 = vrot.lane.b32.xlu0 %v1135, 127
      %v1151 = vpop.permute.xlu0 %1150
      %1152 = vrot.lane.b32.xlu0 %v1143, 127
      %v1153 = vpop.permute.xlu0 %1152
      %1154 = vrot.lane.b32.xlu0 %v1136, 127
      %v1155 = vpop.permute.xlu0 %1154
      %1156 = vrot.lane.b32.xlu0 %v1144, 127
      %v1157 = vpop.permute.xlu0 %1156
      %1158 = vrot.lane.b32.xlu0 %v1137, 127
      %v1159 = vpop.permute.xlu0 %1158
      %1160 = vrot.lane.b32.xlu0 %v1145, 127
      %v1161 = vpop.permute.xlu0 %1160
      %vm1162 = vcmask 1039360
      %v1163 = vsel %vm1162, %v1147, %v1149
      %v1164 = vsel %vm1162, %v1149, %v1151
      %v1165 = vsel %vm1162, %v1151, %v1153
      %v1166 = vsel %vm1162, %v1153, %v1155
      %v1167 = vsel %vm1162, %v1155, %v1157
      %v1168 = vsel %vm1162, %v1157, %v1159
      %v1169 = vsel %vm1162, %v1159, %v1161
      %1178 = vst [vmem:[#allocation3 + $0x1c0] sm:$0xf] %v1163
      %1179 = vst [vmem:[#allocation3 + $0x1c8] sm:$0xf] %v1164
      %1180 = vst [vmem:[#allocation3 + $0x1d0] sm:$0xf] %v1165
      %1181 = vst [vmem:[#allocation3 + $0x1d8] sm:$0xf] %v1166
      %1182 = vst [vmem:[#allocation3 + $0x1e0] sm:$0xf] %v1167
      %1183 = vst [vmem:[#allocation3 + $0x1e8] sm:$0xf] %v1168
      %1184 = vst [vmem:[#allocation3 + $0x1f0] sm:$0xf] %v1169
      %1185 = vst.msk [vmem:[#allocation3 + $0x1f8] sm:$0xf] %vm429, %v1161
      %v1186 = vld [vmem:[#allocation2 + $0x4] sm:$0xff]
      %v1187 = vld [vmem:[#allocation2 + $0xc] sm:$0xff]
      %v1188 = vld [vmem:[#allocation2 + $0x14] sm:$0xff]
      %v1189 = vld [vmem:[#allocation2 + $0x1c] sm:$0xff]
      %v1194 = vcombine.low %v1186, %v1186
      %v1195 = vcombine.low %v1187, %v1187
      %v1196 = vcombine.low %v1188, %v1188
      %v1197 = vcombine.low %v1189, %v1189
      %1198 = vrot.lane.b32.xlu0 %v1194, 119
      %v1199 = vpop.permute.xlu0 %1198
      %1200 = vrot.lane.b32.xlu0 %v1186, 119
      %v1201 = vpop.permute.xlu0 %1200
      %1202 = vrot.lane.b32.xlu0 %v1195, 119
      %v1203 = vpop.permute.xlu0 %1202
      %1204 = vrot.lane.b32.xlu0 %v1187, 119
      %v1205 = vpop.permute.xlu0 %1204
      %1206 = vrot.lane.b32.xlu0 %v1196, 119
      %v1207 = vpop.permute.xlu0 %1206
      %1208 = vrot.lane.b32.xlu0 %v1188, 119
      %v1209 = vpop.permute.xlu0 %1208
      %1210 = vrot.lane.b32.xlu0 %v1197, 119
      %v1211 = vpop.permute.xlu0 %1210
      %1212 = vrot.lane.b32.xlu0 %v1189, 119
      %v1213 = vpop.permute.xlu0 %1212
      %vm1214 = vcmask 973824
      %v1215 = vsel %vm1214, %v1199, %v1201
      %v1216 = vsel %vm1214, %v1201, %v1203
      %v1217 = vsel %vm1214, %v1203, %v1205
      %v1218 = vsel %vm1214, %v1205, %v1207
      %v1219 = vsel %vm1214, %v1207, %v1209
      %v1220 = vsel %vm1214, %v1209, %v1211
      %v1221 = vsel %vm1214, %v1211, %v1213
      %1230 = vst [vmem:[#allocation3 + $0x1c0] sm:$0xf0] %v1215
      %1231 = vst [vmem:[#allocation3 + $0x1c8] sm:$0xf0] %v1216
      %1232 = vst [vmem:[#allocation3 + $0x1d0] sm:$0xf0] %v1217
      %1233 = vst [vmem:[#allocation3 + $0x1d8] sm:$0xf0] %v1218
      %1234 = vst [vmem:[#allocation3 + $0x1e0] sm:$0xf0] %v1219
      %1235 = vst [vmem:[#allocation3 + $0x1e8] sm:$0xf0] %v1220
      %1236 = vst [vmem:[#allocation3 + $0x1f0] sm:$0xf0] %v1221
      %1237 = vst.msk [vmem:[#allocation3 + $0x1f8] sm:$0xf0] %vm375, %v1213
      %v1238 = vld [vmem:[#allocation2 + $0x4] sm:$0xff]
      %v1239 = vld [vmem:[#allocation2 + $0xc] sm:$0xff]
      %v1240 = vld [vmem:[#allocation2 + $0x14] sm:$0xff]
      %v1241 = vld [vmem:[#allocation2 + $0x1c] sm:$0xff]
      %v1246 = vcombine.high %v1238, %v1238
      %v1247 = vcombine.high %v1239, %v1239
      %v1248 = vcombine.high %v1240, %v1240
      %v1249 = vcombine.high %v1241, %v1241
      %1250 = vrot.lane.b32.xlu0 %v1238, 118
      %v1251 = vpop.permute.xlu0 %1250
      %1252 = vrot.lane.b32.xlu0 %v1246, 118
      %v1253 = vpop.permute.xlu0 %1252
      %1254 = vrot.lane.b32.xlu0 %v1239, 118
      %v1255 = vpop.permute.xlu0 %1254
      %1256 = vrot.lane.b32.xlu0 %v1247, 118
      %v1257 = vpop.permute.xlu0 %1256
      %1258 = vrot.lane.b32.xlu0 %v1240, 118
      %v1259 = vpop.permute.xlu0 %1258
      %1260 = vrot.lane.b32.xlu0 %v1248, 118
      %v1261 = vpop.permute.xlu0 %1260
      %1262 = vrot.lane.b32.xlu0 %v1241, 118
      %v1263 = vpop.permute.xlu0 %1262
      %1264 = vrot.lane.b32.xlu0 %v1249, 118
      %v1265 = vpop.permute.xlu0 %1264
      %vm1266 = vcmask 965632
      %v1267 = vsel %vm1266, %v1251, %v1253
      %v1268 = vsel %vm1266, %v1253, %v1255
      %v1269 = vsel %vm1266, %v1255, %v1257
      %v1270 = vsel %vm1266, %v1257, %v1259
      %v1271 = vsel %vm1266, %v1259, %v1261
      %v1272 = vsel %vm1266, %v1261, %v1263
      %v1273 = vsel %vm1266, %v1263, %v1265
      %1282 = vst [vmem:[#allocation3 + $0x200] sm:$0xf] %v1267
      %1283 = vst [vmem:[#allocation3 + $0x208] sm:$0xf] %v1268
      %1284 = vst [vmem:[#allocation3 + $0x210] sm:$0xf] %v1269
      %1285 = vst [vmem:[#allocation3 + $0x218] sm:$0xf] %v1270
      %1286 = vst [vmem:[#allocation3 + $0x220] sm:$0xf] %v1271
      %1287 = vst [vmem:[#allocation3 + $0x228] sm:$0xf] %v1272
      %1288 = vst [vmem:[#allocation3 + $0x230] sm:$0xf] %v1273
      %1289 = vst.msk [vmem:[#allocation3 + $0x238] sm:$0xf] %vm429, %v1265
      %v1290 = vld [vmem:[#allocation2 + $0x4] sm:$0xff]
      %v1291 = vld [vmem:[#allocation2 + $0xc] sm:$0xff]
      %v1292 = vld [vmem:[#allocation2 + $0x14] sm:$0xff]
      %v1293 = vld [vmem:[#allocation2 + $0x1c] sm:$0xff]
      %v1298 = vcombine.low %v1290, %v1290
      %v1299 = vcombine.low %v1291, %v1291
      %v1300 = vcombine.low %v1292, %v1292
      %v1301 = vcombine.low %v1293, %v1293
      %1302 = vrot.lane.b32.xlu0 %v1298, 117
      %v1303 = vpop.permute.xlu0 %1302
      %1304 = vrot.lane.b32.xlu0 %v1290, 117
      %v1305 = vpop.permute.xlu0 %1304
      %1306 = vrot.lane.b32.xlu0 %v1299, 117
      %v1307 = vpop.permute.xlu0 %1306
      %1308 = vrot.lane.b32.xlu0 %v1291, 117
      %v1309 = vpop.permute.xlu0 %1308
      %1310 = vrot.lane.b32.xlu0 %v1300, 117
      %v1311 = vpop.permute.xlu0 %1310
      %1312 = vrot.lane.b32.xlu0 %v1292, 117
      %v1313 = vpop.permute.xlu0 %1312
      %1314 = vrot.lane.b32.xlu0 %v1301, 117
      %v1315 = vpop.permute.xlu0 %1314
      %1316 = vrot.lane.b32.xlu0 %v1293, 117
      %v1317 = vpop.permute.xlu0 %1316
      %vm1318 = vcmask 957440
      %v1319 = vsel %vm1318, %v1303, %v1305
      %v1320 = vsel %vm1318, %v1305, %v1307
      %v1321 = vsel %vm1318, %v1307, %v1309
      %v1322 = vsel %vm1318, %v1309, %v1311
      %v1323 = vsel %vm1318, %v1311, %v1313
      %v1324 = vsel %vm1318, %v1313, %v1315
      %v1325 = vsel %vm1318, %v1315, %v1317
      %1334 = vst [vmem:[#allocation3 + $0x200] sm:$0xf0] %v1319
      %1335 = vst [vmem:[#allocation3 + $0x208] sm:$0xf0] %v1320
      %1336 = vst [vmem:[#allocation3 + $0x210] sm:$0xf0] %v1321
      %1337 = vst [vmem:[#allocation3 + $0x218] sm:$0xf0] %v1322
      %1338 = vst [vmem:[#allocation3 + $0x220] sm:$0xf0] %v1323
      %1339 = vst [vmem:[#allocation3 + $0x228] sm:$0xf0] %v1324
      %1340 = vst [vmem:[#allocation3 + $0x230] sm:$0xf0] %v1325
      %1341 = vst.msk [vmem:[#allocation3 + $0x238] sm:$0xf0] %vm375, %v1317
      %v1342 = vld [vmem:[#allocation2 + $0x4] sm:$0xff]
      %v1343 = vld [vmem:[#allocation2 + $0xc] sm:$0xff]
      %v1344 = vld [vmem:[#allocation2 + $0x14] sm:$0xff]
      %v1345 = vld [vmem:[#allocation2 + $0x1c] sm:$0xff]
      %v1346 = vld [vmem:[#allocation2 + $0x24] sm:$0xf]
      %v1352 = vcombine.high %v1342, %v1342
      %v1353 = vcombine.high %v1343, %v1343
      %v1354 = vcombine.high %v1344, %v1344
      %v1355 = vcombine.high %v1345, %v1345
      %1356 = vrot.lane.b32.xlu0 %v1342, 39
      %v1357 = vpop.permute.xlu0 %1356
      %1358 = vrot.lane.b32.xlu0 %v1352, 39
      %v1359 = vpop.permute.xlu0 %1358
      %1360 = vrot.lane.b32.xlu0 %v1343, 39
      %v1361 = vpop.permute.xlu0 %1360
      %1362 = vrot.lane.b32.xlu0 %v1353, 39
      %v1363 = vpop.permute.xlu0 %1362
      %1364 = vrot.lane.b32.xlu0 %v1344, 39
      %v1365 = vpop.permute.xlu0 %1364
      %1366 = vrot.lane.b32.xlu0 %v1354, 39
      %v1367 = vpop.permute.xlu0 %1366
      %1368 = vrot.lane.b32.xlu0 %v1345, 39
      %v1369 = vpop.permute.xlu0 %1368
      %1370 = vrot.lane.b32.xlu0 %v1355, 39
      %v1371 = vpop.permute.xlu0 %1370
      %1372 = vrot.lane.b32.xlu0 %v1346, 39
      %v1373 = vpop.permute.xlu0 %1372
      %vm1374 = vcmask 318464
      %v1375 = vsel %vm1374, %v1357, %v1359
      %v1376 = vsel %vm1374, %v1359, %v1361
      %v1377 = vsel %vm1374, %v1361, %v1363
      %v1378 = vsel %vm1374, %v1363, %v1365
      %v1379 = vsel %vm1374, %v1365, %v1367
      %v1380 = vsel %vm1374, %v1367, %v1369
      %v1381 = vsel %vm1374, %v1369, %v1371
      %v1382 = vsel %vm1374, %v1371, %v1373
      %1391 = vst [vmem:[#allocation3 + $0x240] sm:$0xf] %v1375
      %1392 = vst [vmem:[#allocation3 + $0x248] sm:$0xf] %v1376
      %1393 = vst [vmem:[#allocation3 + $0x250] sm:$0xf] %v1377
      %1394 = vst [vmem:[#allocation3 + $0x258] sm:$0xf] %v1378
      %1395 = vst [vmem:[#allocation3 + $0x260] sm:$0xf] %v1379
      %1396 = vst [vmem:[#allocation3 + $0x268] sm:$0xf] %v1380
      %1397 = vst [vmem:[#allocation3 + $0x270] sm:$0xf] %v1381
      %1398 = vst.msk [vmem:[#allocation3 + $0x278] sm:$0xf] %vm429, %v1382
      %v1399 = vld [vmem:[#allocation2 + $0x4] sm:$0xff]
      %v1400 = vld [vmem:[#allocation2 + $0xc] sm:$0xff]
      %v1401 = vld [vmem:[#allocation2 + $0x14] sm:$0xff]
      %v1402 = vld [vmem:[#allocation2 + $0x1c] sm:$0xff]
      %v1403 = vld [vmem:[#allocation2 + $0x24] sm:$0xf]
      %v1409 = vcombine.low %v1399, %v1399
      %v1410 = vcombine.low %v1400, %v1400
      %v1411 = vcombine.low %v1401, %v1401
      %v1412 = vcombine.low %v1402, %v1402
      %v1413 = vcombine.low %v1403, %v1403
      %1414 = vrot.lane.b32.xlu0 %v1409, 38
      %v1415 = vpop.permute.xlu0 %1414
      %1416 = vrot.lane.b32.xlu0 %v1399, 38
      %v1417 = vpop.permute.xlu0 %1416
      %1418 = vrot.lane.b32.xlu0 %v1410, 38
      %v1419 = vpop.permute.xlu0 %1418
      %1420 = vrot.lane.b32.xlu0 %v1400, 38
      %v1421 = vpop.permute.xlu0 %1420
      %1422 = vrot.lane.b32.xlu0 %v1411, 38
      %v1423 = vpop.permute.xlu0 %1422
      %1424 = vrot.lane.b32.xlu0 %v1401, 38
      %v1425 = vpop.permute.xlu0 %1424
      %1426 = vrot.lane.b32.xlu0 %v1412, 38
      %v1427 = vpop.permute.xlu0 %1426
      %1428 = vrot.lane.b32.xlu0 %v1402, 38
      %v1429 = vpop.permute.xlu0 %1428
      %1430 = vrot.lane.b32.xlu0 %v1413, 38
      %v1431 = vpop.permute.xlu0 %1430
      %vm1432 = vcmask 310272
      %v1433 = vsel %vm1432, %v1415, %v1417
      %v1434 = vsel %vm1432, %v1417, %v1419
      %v1435 = vsel %vm1432, %v1419, %v1421
      %v1436 = vsel %vm1432, %v1421, %v1423
      %v1437 = vsel %vm1432, %v1423, %v1425
      %v1438 = vsel %vm1432, %v1425, %v1427
      %v1439 = vsel %vm1432, %v1427, %v1429
      %v1440 = vsel %vm1432, %v1429, %v1431
      %1449 = vst [vmem:[#allocation3 + $0x240] sm:$0xf0] %v1433
      %1450 = vst [vmem:[#allocation3 + $0x248] sm:$0xf0] %v1434
      %1451 = vst [vmem:[#allocation3 + $0x250] sm:$0xf0] %v1435
      %1452 = vst [vmem:[#allocation3 + $0x258] sm:$0xf0] %v1436
      %1453 = vst [vmem:[#allocation3 + $0x260] sm:$0xf0] %v1437
      %1454 = vst [vmem:[#allocation3 + $0x268] sm:$0xf0] %v1438
      %1455 = vst [vmem:[#allocation3 + $0x270] sm:$0xf0] %v1439
      %1456 = vst.msk [vmem:[#allocation3 + $0x278] sm:$0xf0] %vm375, %v1440
      %v1457 = vld [vmem:[#allocation2 + $0x4] sm:$0xff]
      %v1458 = vld [vmem:[#allocation2 + $0xc] sm:$0xff]
      %v1459 = vld [vmem:[#allocation2 + $0x14] sm:$0xff]
      %v1460 = vld [vmem:[#allocation2 + $0x1c] sm:$0xff]
      %v1461 = vld [vmem:[#allocation2 + $0x24] sm:$0xf]
      %v1467 = vcombine.high %v1457, %v1457
      %v1468 = vcombine.high %v1458, %v1458
      %v1469 = vcombine.high %v1459, %v1459
      %v1470 = vcombine.high %v1460, %v1460
      %1471 = vrot.lane.b32.xlu0 %v1457, 37
      %v1472 = vpop.permute.xlu0 %1471
      %1473 = vrot.lane.b32.xlu0 %v1467, 37
      %v1474 = vpop.permute.xlu0 %1473
      %1475 = vrot.lane.b32.xlu0 %v1458, 37
      %v1476 = vpop.permute.xlu0 %1475
      %1477 = vrot.lane.b32.xlu0 %v1468, 37
      %v1478 = vpop.permute.xlu0 %1477
      %1479 = vrot.lane.b32.xlu0 %v1459, 37
      %v1480 = vpop.permute.xlu0 %1479
      %1481 = vrot.lane.b32.xlu0 %v1469, 37
      %v1482 = vpop.permute.xlu0 %1481
      %1483 = vrot.lane.b32.xlu0 %v1460, 37
      %v1484 = vpop.permute.xlu0 %1483
      %1485 = vrot.lane.b32.xlu0 %v1470, 37
      %v1486 = vpop.permute.xlu0 %1485
      %1487 = vrot.lane.b32.xlu0 %v1461, 37
      %v1488 = vpop.permute.xlu0 %1487
      %vm1489 = vcmask 302080
      %v1490 = vsel %vm1489, %v1472, %v1474
      %v1491 = vsel %vm1489, %v1474, %v1476
      %v1492 = vsel %vm1489, %v1476, %v1478
      %v1493 = vsel %vm1489, %v1478, %v1480
      %v1494 = vsel %vm1489, %v1480, %v1482
      %v1495 = vsel %vm1489, %v1482, %v1484
      %v1496 = vsel %vm1489, %v1484, %v1486
      %v1497 = vsel %vm1489, %v1486, %v1488
      %1506 = vst [vmem:[#allocation3 + $0x280] sm:$0xf] %v1490
      %1507 = vst [vmem:[#allocation3 + $0x288] sm:$0xf] %v1491
      %1508 = vst [vmem:[#allocation3 + $0x290] sm:$0xf] %v1492
      %1509 = vst [vmem:[#allocation3 + $0x298] sm:$0xf] %v1493
      %1510 = vst [vmem:[#allocation3 + $0x2a0] sm:$0xf] %v1494
      %1511 = vst [vmem:[#allocation3 + $0x2a8] sm:$0xf] %v1495
      %1512 = vst [vmem:[#allocation3 + $0x2b0] sm:$0xf] %v1496
      %1513 = vst.msk [vmem:[#allocation3 + $0x2b8] sm:$0xf] %vm429, %v1497
      %v1514 = vld [vmem:[#allocation2 + $0x4] sm:$0xff]
      %v1515 = vld [vmem:[#allocation2 + $0xc] sm:$0xff]
      %v1516 = vld [vmem:[#allocation2 + $0x14] sm:$0xff]
      %v1517 = vld [vmem:[#allocation2 + $0x1c] sm:$0xff]
      %v1518 = vld [vmem:[#allocation2 + $0x24] sm:$0xf]
      %v1524 = vcombine.low %v1514, %v1514
      %v1525 = vcombine.low %v1515, %v1515
      %v1526 = vcombine.low %v1516, %v1516
      %v1527 = vcombine.low %v1517, %v1517
      %v1528 = vcombine.low %v1518, %v1518
      %1529 = vrot.lane.b32.xlu0 %v1524, 29
      %v1530 = vpop.permute.xlu0 %1529
      %1531 = vrot.lane.b32.xlu0 %v1514, 29
      %v1532 = vpop.permute.xlu0 %1531
      %1533 = vrot.lane.b32.xlu0 %v1525, 29
      %v1534 = vpop.permute.xlu0 %1533
      %1535 = vrot.lane.b32.xlu0 %v1515, 29
      %v1536 = vpop.permute.xlu0 %1535
      %1537 = vrot.lane.b32.xlu0 %v1526, 29
      %v1538 = vpop.permute.xlu0 %1537
      %1539 = vrot.lane.b32.xlu0 %v1516, 29
      %v1540 = vpop.permute.xlu0 %1539
      %1541 = vrot.lane.b32.xlu0 %v1527, 29
      %v1542 = vpop.permute.xlu0 %1541
      %1543 = vrot.lane.b32.xlu0 %v1517, 29
      %v1544 = vpop.permute.xlu0 %1543
      %1545 = vrot.lane.b32.xlu0 %v1528, 29
      %v1546 = vpop.permute.xlu0 %1545
      %vm1547 = vcmask 236544
      %v1548 = vsel %vm1547, %v1530, %v1532
      %v1549 = vsel %vm1547, %v1532, %v1534
      %v1550 = vsel %vm1547, %v1534, %v1536
      %v1551 = vsel %vm1547, %v1536, %v1538
      %v1552 = vsel %vm1547, %v1538, %v1540
      %v1553 = vsel %vm1547, %v1540, %v1542
      %v1554 = vsel %vm1547, %v1542, %v1544
      %v1555 = vsel %vm1547, %v1544, %v1546
      %1564 = vst [vmem:[#allocation3 + $0x280] sm:$0xf0] %v1548
      %1565 = vst [vmem:[#allocation3 + $0x288] sm:$0xf0] %v1549
      %1566 = vst [vmem:[#allocation3 + $0x290] sm:$0xf0] %v1550
      %1567 = vst [vmem:[#allocation3 + $0x298] sm:$0xf0] %v1551
      %1568 = vst [vmem:[#allocation3 + $0x2a0] sm:$0xf0] %v1552
      %1569 = vst [vmem:[#allocation3 + $0x2a8] sm:$0xf0] %v1553
      %1570 = vst [vmem:[#allocation3 + $0x2b0] sm:$0xf0] %v1554
      %1571 = vst.msk [vmem:[#allocation3 + $0x2b8] sm:$0xf0] %vm375, %v1555
      %v1572 = vld [vmem:[#allocation2 + $0x4] sm:$0xff]
      %v1573 = vld [vmem:[#allocation2 + $0xc] sm:$0xff]
      %v1574 = vld [vmem:[#allocation2 + $0x14] sm:$0xff]
      %v1575 = vld [vmem:[#allocation2 + $0x1c] sm:$0xff]
      %v1576 = vld [vmem:[#allocation2 + $0x24] sm:$0xf]
      %v1582 = vcombine.high %v1572, %v1572
      %v1583 = vcombine.high %v1573, %v1573
      %v1584 = vcombine.high %v1574, %v1574
      %v1585 = vcombine.high %v1575, %v1575
      %1586 = vrot.lane.b32.xlu0 %v1572, 28
      %v1587 = vpop.permute.xlu0 %1586
      %1588 = vrot.lane.b32.xlu0 %v1582, 28
      %v1589 = vpop.permute.xlu0 %1588
      %1590 = vrot.lane.b32.xlu0 %v1573, 28
      %v1591 = vpop.permute.xlu0 %1590
      %1592 = vrot.lane.b32.xlu0 %v1583, 28
      %v1593 = vpop.permute.xlu0 %1592
      %1594 = vrot.lane.b32.xlu0 %v1574, 28
      %v1595 = vpop.permute.xlu0 %1594
      %1596 = vrot.lane.b32.xlu0 %v1584, 28
      %v1597 = vpop.permute.xlu0 %1596
      %1598 = vrot.lane.b32.xlu0 %v1575, 28
      %v1599 = vpop.permute.xlu0 %1598
      %1600 = vrot.lane.b32.xlu0 %v1585, 28
      %v1601 = vpop.permute.xlu0 %1600
      %1602 = vrot.lane.b32.xlu0 %v1576, 28
      %v1603 = vpop.permute.xlu0 %1602
      %vm1604 = vcmask 228352
      %v1605 = vsel %vm1604, %v1587, %v1589
      %v1606 = vsel %vm1604, %v1589, %v1591
      %v1607 = vsel %vm1604, %v1591, %v1593
      %v1608 = vsel %vm1604, %v1593, %v1595
      %v1609 = vsel %vm1604, %v1595, %v1597
      %v1610 = vsel %vm1604, %v1597, %v1599
      %v1611 = vsel %vm1604, %v1599, %v1601
      %v1612 = vsel %vm1604, %v1601, %v1603
      %1621 = vst [vmem:[#allocation3 + $0x2c0] sm:$0xf] %v1605
      %1622 = vst [vmem:[#allocation3 + $0x2c8] sm:$0xf] %v1606
      %1623 = vst [vmem:[#allocation3 + $0x2d0] sm:$0xf] %v1607
      %1624 = vst [vmem:[#allocation3 + $0x2d8] sm:$0xf] %v1608
      %1625 = vst [vmem:[#allocation3 + $0x2e0] sm:$0xf] %v1609
      %1626 = vst [vmem:[#allocation3 + $0x2e8] sm:$0xf] %v1610
      %1627 = vst [vmem:[#allocation3 + $0x2f0] sm:$0xf] %v1611
      %1628 = vst.msk [vmem:[#allocation3 + $0x2f8] sm:$0xf] %vm429, %v1612
      %v1629 = vld [vmem:[#allocation2 + $0x4] sm:$0xff]
      %v1630 = vld [vmem:[#allocation2 + $0xc] sm:$0xff]
      %v1631 = vld [vmem:[#allocation2 + $0x14] sm:$0xff]
      %v1632 = vld [vmem:[#allocation2 + $0x1c] sm:$0xff]
      %v1633 = vld [vmem:[#allocation2 + $0x24] sm:$0xf]
      %v1639 = vcombine.low %v1629, %v1629
      %v1640 = vcombine.low %v1630, %v1630
      %v1641 = vcombine.low %v1631, %v1631
      %v1642 = vcombine.low %v1632, %v1632
      %v1643 = vcombine.low %v1633, %v1633
      %1644 = vrot.lane.b32.xlu0 %v1639, 27
      %v1645 = vpop.permute.xlu0 %1644
      %1646 = vrot.lane.b32.xlu0 %v1629, 27
      %v1647 = vpop.permute.xlu0 %1646
      %1648 = vrot.lane.b32.xlu0 %v1640, 27
      %v1649 = vpop.permute.xlu0 %1648
      %1650 = vrot.lane.b32.xlu0 %v1630, 27
      %v1651 = vpop.permute.xlu0 %1650
      %1652 = vrot.lane.b32.xlu0 %v1641, 27
      %v1653 = vpop.permute.xlu0 %1652
      %1654 = vrot.lane.b32.xlu0 %v1631, 27
      %v1655 = vpop.permute.xlu0 %1654
      %1656 = vrot.lane.b32.xlu0 %v1642, 27
      %v1657 = vpop.permute.xlu0 %1656
      %1658 = vrot.lane.b32.xlu0 %v1632, 27
      %v1659 = vpop.permute.xlu0 %1658
      %1660 = vrot.lane.b32.xlu0 %v1643, 27
      %v1661 = vpop.permute.xlu0 %1660
      %vm1662 = vcmask 220160
      %v1663 = vsel %vm1662, %v1645, %v1647
      %v1664 = vsel %vm1662, %v1647, %v1649
      %v1665 = vsel %vm1662, %v1649, %v1651
      %v1666 = vsel %vm1662, %v1651, %v1653
      %v1667 = vsel %vm1662, %v1653, %v1655
      %v1668 = vsel %vm1662, %v1655, %v1657
      %v1669 = vsel %vm1662, %v1657, %v1659
      %v1670 = vsel %vm1662, %v1659, %v1661
      %1679 = vst [vmem:[#allocation3 + $0x2c0] sm:$0xf0] %v1663
      %1680 = vst [vmem:[#allocation3 + $0x2c8] sm:$0xf0] %v1664
      %1681 = vst [vmem:[#allocation3 + $0x2d0] sm:$0xf0] %v1665
      %1682 = vst [vmem:[#allocation3 + $0x2d8] sm:$0xf0] %v1666
      %1683 = vst [vmem:[#allocation3 + $0x2e0] sm:$0xf0] %v1667
      %1684 = vst [vmem:[#allocation3 + $0x2e8] sm:$0xf0] %v1668
      %1685 = vst [vmem:[#allocation3 + $0x2f0] sm:$0xf0] %v1669
      %1686 = vst.msk [vmem:[#allocation3 + $0x2f8] sm:$0xf0] %vm375, %v1670
      %v1687 = vld [vmem:[#allocation2 + $0x4] sm:$0xff]
      %v1688 = vld [vmem:[#allocation2 + $0xc] sm:$0xff]
      %v1689 = vld [vmem:[#allocation2 + $0x14] sm:$0xff]
      %v1690 = vld [vmem:[#allocation2 + $0x1c] sm:$0xff]
      %v1691 = vld [vmem:[#allocation2 + $0x24] sm:$0xf]
      %v1697 = vcombine.high %v1687, %v1687
      %v1698 = vcombine.high %v1688, %v1688
      %v1699 = vcombine.high %v1689, %v1689
      %v1700 = vcombine.high %v1690, %v1690
      %1701 = vrot.lane.b32.xlu0 %v1687, 19
      %v1702 = vpop.permute.xlu0 %1701
      %1703 = vrot.lane.b32.xlu0 %v1697, 19
      %v1704 = vpop.permute.xlu0 %1703
      %1705 = vrot.lane.b32.xlu0 %v1688, 19
      %v1706 = vpop.permute.xlu0 %1705
      %1707 = vrot.lane.b32.xlu0 %v1698, 19
      %v1708 = vpop.permute.xlu0 %1707
      %1709 = vrot.lane.b32.xlu0 %v1689, 19
      %v1710 = vpop.permute.xlu0 %1709
      %1711 = vrot.lane.b32.xlu0 %v1699, 19
      %v1712 = vpop.permute.xlu0 %1711
      %1713 = vrot.lane.b32.xlu0 %v1690, 19
      %v1714 = vpop.permute.xlu0 %1713
      %1715 = vrot.lane.b32.xlu0 %v1700, 19
      %v1716 = vpop.permute.xlu0 %1715
      %1717 = vrot.lane.b32.xlu0 %v1691, 19
      %v1718 = vpop.permute.xlu0 %1717
      %vm1719 = vcmask 154624
      %v1720 = vsel %vm1719, %v1702, %v1704
      %v1721 = vsel %vm1719, %v1704, %v1706
      %v1722 = vsel %vm1719, %v1706, %v1708
      %v1723 = vsel %vm1719, %v1708, %v1710
      %v1724 = vsel %vm1719, %v1710, %v1712
      %v1725 = vsel %vm1719, %v1712, %v1714
      %v1726 = vsel %vm1719, %v1714, %v1716
      %v1727 = vsel %vm1719, %v1716, %v1718
      %1736 = vst [vmem:[#allocation3 + $0x300] sm:$0xf] %v1720
      %1737 = vst [vmem:[#allocation3 + $0x308] sm:$0xf] %v1721
      %1738 = vst [vmem:[#allocation3 + $0x310] sm:$0xf] %v1722
      %1739 = vst [vmem:[#allocation3 + $0x318] sm:$0xf] %v1723
      %1740 = vst [vmem:[#allocation3 + $0x320] sm:$0xf] %v1724
      %1741 = vst [vmem:[#allocation3 + $0x328] sm:$0xf] %v1725
      %1742 = vst [vmem:[#allocation3 + $0x330] sm:$0xf] %v1726
      %1743 = vst.msk [vmem:[#allocation3 + $0x338] sm:$0xf] %vm429, %v1727
      %v1744 = vld [vmem:[#allocation2 + $0x4] sm:$0xff]
      %v1745 = vld [vmem:[#allocation2 + $0xc] sm:$0xff]
      %v1746 = vld [vmem:[#allocation2 + $0x14] sm:$0xff]
      %v1747 = vld [vmem:[#allocation2 + $0x1c] sm:$0xff]
      %v1748 = vld [vmem:[#allocation2 + $0x24] sm:$0xf]
      %v1754 = vcombine.low %v1744, %v1744
      %v1755 = vcombine.low %v1745, %v1745
      %v1756 = vcombine.low %v1746, %v1746
      %v1757 = vcombine.low %v1747, %v1747
      %v1758 = vcombine.low %v1748, %v1748
      %1759 = vrot.lane.b32.xlu0 %v1754, 18
      %v1760 = vpop.permute.xlu0 %1759
      %1761 = vrot.lane.b32.xlu0 %v1744, 18
      %v1762 = vpop.permute.xlu0 %1761
      %1763 = vrot.lane.b32.xlu0 %v1755, 18
      %v1764 = vpop.permute.xlu0 %1763
      %1765 = vrot.lane.b32.xlu0 %v1745, 18
      %v1766 = vpop.permute.xlu0 %1765
      %1767 = vrot.lane.b32.xlu0 %v1756, 18
      %v1768 = vpop.permute.xlu0 %1767
      %1769 = vrot.lane.b32.xlu0 %v1746, 18
      %v1770 = vpop.permute.xlu0 %1769
      %1771 = vrot.lane.b32.xlu0 %v1757, 18
      %v1772 = vpop.permute.xlu0 %1771
      %1773 = vrot.lane.b32.xlu0 %v1747, 18
      %v1774 = vpop.permute.xlu0 %1773
      %1775 = vrot.lane.b32.xlu0 %v1758, 18
      %v1776 = vpop.permute.xlu0 %1775
      %vm1777 = vcmask 146432
      %v1778 = vsel %vm1777, %v1760, %v1762
      %v1779 = vsel %vm1777, %v1762, %v1764
      %v1780 = vsel %vm1777, %v1764, %v1766
      %v1781 = vsel %vm1777, %v1766, %v1768
      %v1782 = vsel %vm1777, %v1768, %v1770
      %v1783 = vsel %vm1777, %v1770, %v1772
      %v1784 = vsel %vm1777, %v1772, %v1774
      %v1785 = vsel %vm1777, %v1774, %v1776
      %1794 = vst [vmem:[#allocation3 + $0x300] sm:$0xf0] %v1778
      %1795 = vst [vmem:[#allocation3 + $0x308] sm:$0xf0] %v1779
      %1796 = vst [vmem:[#allocation3 + $0x310] sm:$0xf0] %v1780
      %1797 = vst [vmem:[#allocation3 + $0x318] sm:$0xf0] %v1781
      %1798 = vst [vmem:[#allocation3 + $0x320] sm:$0xf0] %v1782
      %1799 = vst [vmem:[#allocation3 + $0x328] sm:$0xf0] %v1783
      %1800 = vst [vmem:[#allocation3 + $0x330] sm:$0xf0] %v1784
      %1801 = vst.msk [vmem:[#allocation3 + $0x338] sm:$0xf0] %vm375, %v1785
      %v1802 = vld [vmem:[#allocation2 + $0x4] sm:$0xff]
      %v1803 = vld [vmem:[#allocation2 + $0xc] sm:$0xff]
      %v1804 = vld [vmem:[#allocation2 + $0x14] sm:$0xff]
      %v1805 = vld [vmem:[#allocation2 + $0x1c] sm:$0xff]
      %v1806 = vld [vmem:[#allocation2 + $0x24] sm:$0xf]
      %v1812 = vcombine.high %v1802, %v1802
      %v1813 = vcombine.high %v1803, %v1803
      %v1814 = vcombine.high %v1804, %v1804
      %v1815 = vcombine.high %v1805, %v1805
      %1816 = vrot.lane.b32.xlu0 %v1802, 17
      %v1817 = vpop.permute.xlu0 %1816
      %1818 = vrot.lane.b32.xlu0 %v1812, 17
      %v1819 = vpop.permute.xlu0 %1818
      %1820 = vrot.lane.b32.xlu0 %v1803, 17
      %v1821 = vpop.permute.xlu0 %1820
      %1822 = vrot.lane.b32.xlu0 %v1813, 17
      %v1823 = vpop.permute.xlu0 %1822
      %1824 = vrot.lane.b32.xlu0 %v1804, 17
      %v1825 = vpop.permute.xlu0 %1824
      %1826 = vrot.lane.b32.xlu0 %v1814, 17
      %v1827 = vpop.permute.xlu0 %1826
      %1828 = vrot.lane.b32.xlu0 %v1805, 17
      %v1829 = vpop.permute.xlu0 %1828
      %1830 = vrot.lane.b32.xlu0 %v1815, 17
      %v1831 = vpop.permute.xlu0 %1830
      %1832 = vrot.lane.b32.xlu0 %v1806, 17
      %v1833 = vpop.permute.xlu0 %1832
      %vm1834 = vcmask 138240
      %v1835 = vsel %vm1834, %v1817, %v1819
      %v1836 = vsel %vm1834, %v1819, %v1821
      %v1837 = vsel %vm1834, %v1821, %v1823
      %v1838 = vsel %vm1834, %v1823, %v1825
      %v1839 = vsel %vm1834, %v1825, %v1827
      %v1840 = vsel %vm1834, %v1827, %v1829
      %v1841 = vsel %vm1834, %v1829, %v1831
      %v1842 = vsel %vm1834, %v1831, %v1833
      %1851 = vst [vmem:[#allocation3 + $0x340] sm:$0xf] %v1835
      %1852 = vst [vmem:[#allocation3 + $0x348] sm:$0xf] %v1836
      %1853 = vst [vmem:[#allocation3 + $0x350] sm:$0xf] %v1837
      %1854 = vst [vmem:[#allocation3 + $0x358] sm:$0xf] %v1838
      %1855 = vst [vmem:[#allocation3 + $0x360] sm:$0xf] %v1839
      %1856 = vst [vmem:[#allocation3 + $0x368] sm:$0xf] %v1840
      %1857 = vst [vmem:[#allocation3 + $0x370] sm:$0xf] %v1841
      %1858 = vst.msk [vmem:[#allocation3 + $0x378] sm:$0xf] %vm429, %v1842
      %v1859 = vld [vmem:[%s2] sm:$0xf]
      %v1860 = vld [vmem:[#allocation3] sm:$0xff]
      %v1861 = vld [vmem:[#allocation3 + $0x8] sm:$0xff]
      %v1862 = vld [vmem:[#allocation3 + $0x10] sm:$0xff]
      %v1863 = vld [vmem:[#allocation3 + $0x18] sm:$0xff]
      %v1864 = vld [vmem:[#allocation3 + $0x20] sm:$0xff]
      %v1865 = vld [vmem:[#allocation3 + $0x28] sm:$0xff]
      %v1866 = vld [vmem:[#allocation3 + $0x30] sm:$0xff]
      %v1867 = vld [vmem:[#allocation3 + $0x38] sm:$0xff]
      %v1868 = vld [vmem:[#allocation3 + $0x40] sm:$0xff]
      %v1869 = vld [vmem:[#allocation3 + $0x48] sm:$0xff]
      %v1870 = vld [vmem:[#allocation3 + $0x50] sm:$0xff]
      %v1871 = vld [vmem:[#allocation3 + $0x58] sm:$0xff]
      %v1872 = vld [vmem:[#allocation3 + $0x60] sm:$0xff]
      %v1873 = vld [vmem:[#allocation3 + $0x68] sm:$0xff]
      %v1874 = vld [vmem:[#allocation3 + $0x70] sm:$0xff]
      %v1875 = vld [vmem:[#allocation3 + $0x78] sm:$0xff]
      %v1876 = vld [vmem:[#allocation3 + $0x80] sm:$0xff]
      %v1877 = vld [vmem:[#allocation3 + $0x88] sm:$0xff]
      %v1878 = vld [vmem:[#allocation3 + $0x90] sm:$0xff]
      %v1879 = vld [vmem:[#allocation3 + $0x98] sm:$0xff]
      %v1880 = vld [vmem:[#allocation3 + $0xa0] sm:$0xff]
      %v1881 = vld [vmem:[#allocation3 + $0xa8] sm:$0xff]
      %v1882 = vld [vmem:[#allocation3 + $0xb0] sm:$0xff]
      %v1883 = vld [vmem:[#allocation3 + $0xb8] sm:$0xff]
      %v1884 = vld [vmem:[#allocation3 + $0xc0] sm:$0xff]
      %v1885 = vld [vmem:[#allocation3 + $0xc8] sm:$0xff]
      %v1886 = vld [vmem:[#allocation3 + $0xd0] sm:$0xff]
      %v1887 = vld [vmem:[#allocation3 + $0xd8] sm:$0xff]
      %v1888 = vld [vmem:[#allocation3 + $0xe0] sm:$0xff]
      %v1889 = vld [vmem:[#allocation3 + $0xe8] sm:$0xff]
      %v1890 = vld [vmem:[#allocation3 + $0xf0] sm:$0xff]
      %v1891 = vld [vmem:[#allocation3 + $0xf8] sm:$0xff]
      %v1892 = vld [vmem:[#allocation3 + $0x100] sm:$0xff]
      %v1893 = vld [vmem:[#allocation3 + $0x108] sm:$0xff]
      %v1894 = vld [vmem:[#allocation3 + $0x110] sm:$0xff]
      %v1895 = vld [vmem:[#allocation3 + $0x118] sm:$0xff]
      %v1896 = vld [vmem:[#allocation3 + $0x120] sm:$0xff]
      %v1897 = vld [vmem:[#allocation3 + $0x128] sm:$0xff]
      %v1898 = vld [vmem:[#allocation3 + $0x130] sm:$0xff]
      %v1899 = vld [vmem:[#allocation3 + $0x138] sm:$0xff]
      %v1900 = vld [vmem:[#allocation3 + $0x140] sm:$0xff]
      %v1901 = vld [vmem:[#allocation3 + $0x148] sm:$0xff]
      %v1902 = vld [vmem:[#allocation3 + $0x150] sm:$0xff]
      %v1903 = vld [vmem:[#allocation3 + $0x158] sm:$0xff]
      %v1904 = vld [vmem:[#allocation3 + $0x160] sm:$0xff]
      %v1905 = vld [vmem:[#allocation3 + $0x168] sm:$0xff]
      %v1906 = vld [vmem:[#allocation3 + $0x170] sm:$0xff]
      %v1907 = vld [vmem:[#allocation3 + $0x178] sm:$0xff]
      %v1908 = vld [vmem:[#allocation3 + $0x180] sm:$0xff]
      %v1909 = vld [vmem:[#allocation3 + $0x188] sm:$0xff]
      %v1910 = vld [vmem:[#allocation3 + $0x190] sm:$0xff]
      %v1911 = vld [vmem:[#allocation3 + $0x198] sm:$0xff]
      %v1912 = vld [vmem:[#allocation3 + $0x1a0] sm:$0xff]
      %v1913 = vld [vmem:[#allocation3 + $0x1a8] sm:$0xff]
      %v1914 = vld [vmem:[#allocation3 + $0x1b0] sm:$0xff]
      %v1915 = vld [vmem:[#allocation3 + $0x1b8] sm:$0xff]
      %v1916 = vld [vmem:[#allocation3 + $0x1c0] sm:$0xff]
      %v1917 = vld [vmem:[#allocation3 + $0x1c8] sm:$0xff]
      %v1918 = vld [vmem:[#allocation3 + $0x1d0] sm:$0xff]
      %v1919 = vld [vmem:[#allocation3 + $0x1d8] sm:$0xff]
      %v1920 = vld [vmem:[#allocation3 + $0x1e0] sm:$0xff]
      %v1921 = vld [vmem:[#allocation3 + $0x1e8] sm:$0xff]
      %v1922 = vld [vmem:[#allocation3 + $0x1f0] sm:$0xff]
      %v1923 = vld [vmem:[#allocation3 + $0x1f8] sm:$0xff]
      %v1924 = vld [vmem:[#allocation3 + $0x200] sm:$0xff]
      %v1925 = vld [vmem:[#allocation3 + $0x208] sm:$0xff]
      %v1926 = vld [vmem:[#allocation3 + $0x210] sm:$0xff]
      %v1927 = vld [vmem:[#allocation3 + $0x218] sm:$0xff]
      %v1928 = vld [vmem:[#allocation3 + $0x220] sm:$0xff]
      %v1929 = vld [vmem:[#allocation3 + $0x228] sm:$0xff]
      %v1930 = vld [vmem:[#allocation3 + $0x230] sm:$0xff]
      %v1931 = vld [vmem:[#allocation3 + $0x238] sm:$0xff]
      %v1932 = vld [vmem:[#allocation3 + $0x240] sm:$0xff]
      %v1933 = vld [vmem:[#allocation3 + $0x248] sm:$0xff]
      %v1934 = vld [vmem:[#allocation3 + $0x250] sm:$0xff]
      %v1935 = vld [vmem:[#allocation3 + $0x258] sm:$0xff]
      %v1936 = vld [vmem:[#allocation3 + $0x260] sm:$0xff]
      %v1937 = vld [vmem:[#allocation3 + $0x268] sm:$0xff]
      %v1938 = vld [vmem:[#allocation3 + $0x270] sm:$0xff]
      %v1939 = vld [vmem:[#allocation3 + $0x278] sm:$0xff]
      %v1940 = vld [vmem:[#allocation3 + $0x280] sm:$0xff]
      %v1941 = vld [vmem:[#allocation3 + $0x288] sm:$0xff]
      %v1942 = vld [vmem:[#allocation3 + $0x290] sm:$0xff]
      %v1943 = vld [vmem:[#allocation3 + $0x298] sm:$0xff]
      %v1944 = vld [vmem:[#allocation3 + $0x2a0] sm:$0xff]
      %v1945 = vld [vmem:[#allocation3 + $0x2a8] sm:$0xff]
      %v1946 = vld [vmem:[#allocation3 + $0x2b0] sm:$0xff]
      %v1947 = vld [vmem:[#allocation3 + $0x2b8] sm:$0xff]
      %v1948 = vld [vmem:[#allocation3 + $0x2c0] sm:$0xff]
      %v1949 = vld [vmem:[#allocation3 + $0x2c8] sm:$0xff]
      %v1950 = vld [vmem:[#allocation3 + $0x2d0] sm:$0xff]
      %v1951 = vld [vmem:[#allocation3 + $0x2d8] sm:$0xff]
      %v1952 = vld [vmem:[#allocation3 + $0x2e0] sm:$0xff]
      %v1953 = vld [vmem:[#allocation3 + $0x2e8] sm:$0xff]
      %v1954 = vld [vmem:[#allocation3 + $0x2f0] sm:$0xff]
      %v1955 = vld [vmem:[#allocation3 + $0x2f8] sm:$0xff]
      %v1956 = vld [vmem:[#allocation3 + $0x300] sm:$0xff]
      %v1957 = vld [vmem:[#allocation3 + $0x308] sm:$0xff]
      %v1958 = vld [vmem:[#allocation3 + $0x310] sm:$0xff]
      %v1959 = vld [vmem:[#allocation3 + $0x318] sm:$0xff]
      %v1960 = vld [vmem:[#allocation3 + $0x320] sm:$0xff]
      %v1961 = vld [vmem:[#allocation3 + $0x328] sm:$0xff]
      %v1962 = vld [vmem:[#allocation3 + $0x330] sm:$0xff]
      %v1963 = vld [vmem:[#allocation3 + $0x338] sm:$0xff]
      %v1964 = vld [vmem:[#allocation3 + $0x340] sm:$0xf]
      %v1965 = vld [vmem:[#allocation3 + $0x348] sm:$0xf]
      %v1966 = vld [vmem:[#allocation3 + $0x350] sm:$0xf]
      %v1967 = vld [vmem:[#allocation3 + $0x358] sm:$0xf]
      %v1968 = vld [vmem:[#allocation3 + $0x360] sm:$0xf]
      %v1969 = vld [vmem:[#allocation3 + $0x368] sm:$0xf]
      %v1970 = vld [vmem:[#allocation3 + $0x370] sm:$0xf]
      %v1971 = vld [vmem:[#allocation3 + $0x378] sm:$0xf]
      %v1972 = vld [vmem:[%s3] sm:$0xf]
      %1974 = vset.pattern.permute.xlu0 0
      %1975 = vperm.xlu0 %1974, %v1972
      %v1976 = vpop.permute.xlu0 %1975
      %vm1978 = vcmask 883712
      %v1980 = vsel %vm1978, %v1859, 0
      %v1983 = vsel %vm374, %v1964, 0
      %v1986 = vsel %vm374, %v1965, 0
      %v1989 = vsel %vm374, %v1966, 0
      %v1992 = vsel %vm374, %v1967, 0
      %v1995 = vsel %vm374, %v1968, 0
      %v1998 = vsel %vm374, %v1969, 0
      %v2001 = vsel %vm374, %v1970, 0
      %v2004 = vsel %vm374, %v1971, 0
      %2006 = vmatprep.subr.mxu0 %v1861
      %2007 = vmatpush1.msra.mxu0 %v1860
      %2008 = vmatprep.subr.mxu0 %v1869
      %2009 = vmatpush1.msra.mxu0 %v1868
      %2010 = vmatprep.subr.mxu0 %v1877
      %2011 = vmatpush1.msra.mxu0 %v1876
      %2012 = vmatprep.subr.mxu0 %v1885
      %2013 = vmatpush1.msra.mxu0 %v1884
      %2014 = vmatprep.subr.mxu0 %v1893
      %2015 = vmatpush1.msra.mxu0 %v1892
      %2016 = vmatprep.subr.mxu0 %v1901
      %2017 = vmatpush1.msra.mxu0 %v1900
      %2018 = vmatprep.subr.mxu0 %v1909
      %2019 = vmatpush1.msra.mxu0 %v1908
      %2020 = vmatprep.subr.mxu0 %v1917
      %2021 = vmatpush1.msra.mxu0 %v1916
      %2022 = vmatprep.subr.mxu0 %v1925
      %2023 = vmatpush1.msra.mxu0 %v1924
      %2024 = vmatprep.subr.mxu0 %v1933
      %2025 = vmatpush1.msra.mxu0 %v1932
      %2026 = vmatprep.subr.mxu0 %v1941
      %2027 = vmatpush1.msra.mxu0 %v1940
      %2028 = vmatprep.subr.mxu0 %v1949
      %2029 = vmatpush1.msra.mxu0 %v1948
      %2030 = vmatprep.subr.mxu0 %v1957
      %2031 = vmatpush1.msra.mxu0 %v1956
      %2032 = vmatprep.subr.mxu0 %v1986
      %2033 = vmatpush1.msra.mxu0 %v1983
      %2034 = vmatprep.subr.mxu0 0.0
      %2035 = vmatpush1.msra.mxu0 0.0
      %2036 = vmatprep.subr.mxu0 0.0
      %2037 = vmatpush1.msra.mxu0 0.0
      %2038 = vmatprep.subr.mxu0 0.0
      %2039 = vmatpush1.msra.mxu0 0.0
      %2040 = vmatprep.subr.mxu0 0.0
      %2041 = vmatpush1.msra.mxu0 0.0
      %2042 = vmatprep.subr.mxu0 0.0
      %2043 = vmatpush1.msra.mxu0 0.0
      %2044 = vmatprep.subr.mxu0 0.0
      %2045 = vmatpush1.msra.mxu0 0.0
      %2046 = vmatprep.subr.mxu0 0.0
      %2047 = vmatpush1.msra.mxu0 0.0
      %2048 = vmatprep.subr.mxu0 0.0
      %2049 = vmatpush1.msra.mxu0 0.0
      %2050 = vmatprep.subr.mxu0 0.0
      %2051 = vmatpush1.msra.mxu0 0.0
      %2052 = vmatprep.subr.mxu0 0.0
      %2053 = vmatpush1.msra.mxu0 0.0
      %2054 = vmatprep.subr.mxu0 0.0
      %2055 = vmatpush1.msra.mxu0 0.0
      %2056 = vmatprep.subr.mxu0 0.0
      %2057 = vmatpush1.msra.mxu0 0.0
      %2058 = vmatprep.subr.mxu0 0.0
      %2059 = vmatpush1.msra.mxu0 0.0
      %2060 = vmatprep.subr.mxu0 0.0
      %2061 = vmatpush1.msra.mxu0 0.0
      %2062 = vmatprep.subr.mxu0 0.0
      %2063 = vmatpush1.msra.mxu0 0.0
      %2064 = vmatprep.subr.mxu0 0.0
      %2065 = vmatpush1.msra.mxu0 0.0
      %2066 = vmatprep.subr.mxu0 0.0
      %2067 = vmatpush1.msra.mxu0 0.0
      %2068 = vmatprep.subr.mxu0 0.0
      %2069 = vmatpush1.msra.mxu0 0.0
      %2070 = vmatprep.mubr.f32.mxu0 0.0
      %2071 = vmatmul.mubr.f32.gmra.mrb[0].mxu0 %v1980
      %v2072 = vpop.f32.mrb[0].mxu0
      %v2073 = vadd.f32 %v1976, %v2072
      %v2074 = vpop.f32.mrb[0].mxu0
      %v2075 = vadd.f32 %v1976, %v2074
      %2076 = vdwg.mxu0
      %2077 = vmatprep.subr.mxu0 %v1863
      %2078 = vmatpush1.msra.mxu0 %v1862
      %2079 = vmatprep.subr.mxu0 %v1871
      %2080 = vmatpush1.msra.mxu0 %v1870
      %2081 = vmatprep.subr.mxu0 %v1879
      %2082 = vmatpush1.msra.mxu0 %v1878
      %2083 = vmatprep.subr.mxu0 %v1887
      %2084 = vmatpush1.msra.mxu0 %v1886
      %2085 = vmatprep.subr.mxu0 %v1895
      %2086 = vmatpush1.msra.mxu0 %v1894
      %2087 = vmatprep.subr.mxu0 %v1903
      %2088 = vmatpush1.msra.mxu0 %v1902
      %2089 = vmatprep.subr.mxu0 %v1911
      %2090 = vmatpush1.msra.mxu0 %v1910
      %2091 = vmatprep.subr.mxu0 %v1919
      %2092 = vmatpush1.msra.mxu0 %v1918
      %2093 = vmatprep.subr.mxu0 %v1927
      %2094 = vmatpush1.msra.mxu0 %v1926
      %2095 = vmatprep.subr.mxu0 %v1935
      %2096 = vmatpush1.msra.mxu0 %v1934
      %2097 = vmatprep.subr.mxu0 %v1943
      %2098 = vmatpush1.msra.mxu0 %v1942
      %2099 = vmatprep.subr.mxu0 %v1951
      %2100 = vmatpush1.msra.mxu0 %v1950
      %2101 = vmatprep.subr.mxu0 %v1959
      %2102 = vmatpush1.msra.mxu0 %v1958
      %2103 = vmatprep.subr.mxu0 %v1992
      %2104 = vmatpush1.msra.mxu0 %v1989
      %2105 = vmatprep.subr.mxu0 0.0
      %2106 = vmatpush1.msra.mxu0 0.0
      %2107 = vmatprep.subr.mxu0 0.0
      %2108 = vmatpush1.msra.mxu0 0.0
      %2109 = vmatprep.subr.mxu0 0.0
      %2110 = vmatpush1.msra.mxu0 0.0
      %2111 = vmatprep.subr.mxu0 0.0
      %2112 = vmatpush1.msra.mxu0 0.0
      %2113 = vmatprep.subr.mxu0 0.0
      %2114 = vmatpush1.msra.mxu0 0.0
      %2115 = vmatprep.subr.mxu0 0.0
      %2116 = vmatpush1.msra.mxu0 0.0
      %2117 = vmatprep.subr.mxu0 0.0
      %2118 = vmatpush1.msra.mxu0 0.0
      %2119 = vmatprep.subr.mxu0 0.0
      %2120 = vmatpush1.msra.mxu0 0.0
      %2121 = vmatprep.subr.mxu0 0.0
      %2122 = vmatpush1.msra.mxu0 0.0
      %2123 = vmatprep.subr.mxu0 0.0
      %2124 = vmatpush1.msra.mxu0 0.0
      %2125 = vmatprep.subr.mxu0 0.0
      %2126 = vmatpush1.msra.mxu0 0.0
      %2127 = vmatprep.subr.mxu0 0.0
      %2128 = vmatpush1.msra.mxu0 0.0
      %2129 = vmatprep.subr.mxu0 0.0
      %2130 = vmatpush1.msra.mxu0 0.0
      %2131 = vmatprep.subr.mxu0 0.0
      %2132 = vmatpush1.msra.mxu0 0.0
      %2133 = vmatprep.subr.mxu0 0.0
      %2134 = vmatpush1.msra.mxu0 0.0
      %2135 = vmatprep.subr.mxu0 0.0
      %2136 = vmatpush1.msra.mxu0 0.0
      %2137 = vmatprep.subr.mxu0 0.0
      %2138 = vmatpush1.msra.mxu0 0.0
      %2139 = vmatprep.subr.mxu0 0.0
      %2140 = vmatpush1.msra.mxu0 0.0
      %2141 = vmatprep.mubr.f32.mxu0 0.0
      %2142 = vmatmul.mubr.f32.gmra.mrb[0].mxu0 %v1980
      %v2143 = vpop.f32.mrb[0].mxu0
      %v2144 = vadd.f32 %v1976, %v2143
      %v2145 = vpop.f32.mrb[0].mxu0
      %v2146 = vadd.f32 %v1976, %v2145
      %2147 = vdwg.mxu0
      %2148 = vmatprep.subr.mxu0 %v1865
      %2149 = vmatpush1.msra.mxu0 %v1864
      %2150 = vmatprep.subr.mxu0 %v1873
      %2151 = vmatpush1.msra.mxu0 %v1872
      %2152 = vmatprep.subr.mxu0 %v1881
      %2153 = vmatpush1.msra.mxu0 %v1880
      %2154 = vmatprep.subr.mxu0 %v1889
      %2155 = vmatpush1.msra.mxu0 %v1888
      %2156 = vmatprep.subr.mxu0 %v1897
      %2157 = vmatpush1.msra.mxu0 %v1896
      %2158 = vmatprep.subr.mxu0 %v1905
      %2159 = vmatpush1.msra.mxu0 %v1904
      %2160 = vmatprep.subr.mxu0 %v1913
      %2161 = vmatpush1.msra.mxu0 %v1912
      %2162 = vmatprep.subr.mxu0 %v1921
      %2163 = vmatpush1.msra.mxu0 %v1920
      %2164 = vmatprep.subr.mxu0 %v1929
      %2165 = vmatpush1.msra.mxu0 %v1928
      %2166 = vmatprep.subr.mxu0 %v1937
      %2167 = vmatpush1.msra.mxu0 %v1936
      %2168 = vmatprep.subr.mxu0 %v1945
      %2169 = vmatpush1.msra.mxu0 %v1944
      %2170 = vmatprep.subr.mxu0 %v1953
      %2171 = vmatpush1.msra.mxu0 %v1952
      %2172 = vmatprep.subr.mxu0 %v1961
      %2173 = vmatpush1.msra.mxu0 %v1960
      %2174 = vmatprep.subr.mxu0 %v1998
      %2175 = vmatpush1.msra.mxu0 %v1995
      %2176 = vmatprep.subr.mxu0 0.0
      %2177 = vmatpush1.msra.mxu0 0.0
      %2178 = vmatprep.subr.mxu0 0.0
      %2179 = vmatpush1.msra.mxu0 0.0
      %2180 = vmatprep.subr.mxu0 0.0
      %2181 = vmatpush1.msra.mxu0 0.0
      %2182 = vmatprep.subr.mxu0 0.0
      %2183 = vmatpush1.msra.mxu0 0.0
      %2184 = vmatprep.subr.mxu0 0.0
      %2185 = vmatpush1.msra.mxu0 0.0
      %2186 = vmatprep.subr.mxu0 0.0
      %2187 = vmatpush1.msra.mxu0 0.0
      %2188 = vmatprep.subr.mxu0 0.0
      %2189 = vmatpush1.msra.mxu0 0.0
      %2190 = vmatprep.subr.mxu0 0.0
      %2191 = vmatpush1.msra.mxu0 0.0
      %2192 = vmatprep.subr.mxu0 0.0
      %2193 = vmatpush1.msra.mxu0 0.0
      %2194 = vmatprep.subr.mxu0 0.0
      %2195 = vmatpush1.msra.mxu0 0.0
      %2196 = vmatprep.subr.mxu0 0.0
      %2197 = vmatpush1.msra.mxu0 0.0
      %2198 = vmatprep.subr.mxu0 0.0
      %2199 = vmatpush1.msra.mxu0 0.0
      %2200 = vmatprep.subr.mxu0 0.0
      %2201 = vmatpush1.msra.mxu0 0.0
      %2202 = vmatprep.subr.mxu0 0.0
      %2203 = vmatpush1.msra.mxu0 0.0
      %2204 = vmatprep.subr.mxu0 0.0
      %2205 = vmatpush1.msra.mxu0 0.0
      %2206 = vmatprep.subr.mxu0 0.0
      %2207 = vmatpush1.msra.mxu0 0.0
      %2208 = vmatprep.subr.mxu0 0.0
      %2209 = vmatpush1.msra.mxu0 0.0
      %2210 = vmatprep.subr.mxu0 0.0
      %2211 = vmatpush1.msra.mxu0 0.0
      %2212 = vmatprep.mubr.f32.mxu0 0.0
      %2213 = vmatmul.mubr.f32.gmra.mrb[0].mxu0 %v1980
      %v2214 = vpop.f32.mrb[0].mxu0
      %v2215 = vadd.f32 %v1976, %v2214
      %v2216 = vpop.f32.mrb[0].mxu0
      %v2217 = vadd.f32 %v1976, %v2216
      %2218 = vdwg.mxu0
      %2219 = vmatprep.subr.mxu0 %v1867
      %2220 = vmatpush1.msra.mxu0 %v1866
      %2221 = vmatprep.subr.mxu0 %v1875
      %2222 = vmatpush1.msra.mxu0 %v1874
      %2223 = vmatprep.subr.mxu0 %v1883
      %2224 = vmatpush1.msra.mxu0 %v1882
      %2225 = vmatprep.subr.mxu0 %v1891
      %2226 = vmatpush1.msra.mxu0 %v1890
      %2227 = vmatprep.subr.mxu0 %v1899
      %2228 = vmatpush1.msra.mxu0 %v1898
      %2229 = vmatprep.subr.mxu0 %v1907
      %2230 = vmatpush1.msra.mxu0 %v1906
      %2231 = vmatprep.subr.mxu0 %v1915
      %2232 = vmatpush1.msra.mxu0 %v1914
      %2233 = vmatprep.subr.mxu0 %v1923
      %2234 = vmatpush1.msra.mxu0 %v1922
      %2235 = vmatprep.subr.mxu0 %v1931
      %2236 = vmatpush1.msra.mxu0 %v1930
      %2237 = vmatprep.subr.mxu0 %v1939
      %2238 = vmatpush1.msra.mxu0 %v1938
      %2239 = vmatprep.subr.mxu0 %v1947
      %2240 = vmatpush1.msra.mxu0 %v1946
      %2241 = vmatprep.subr.mxu0 %v1955
      %2242 = vmatpush1.msra.mxu0 %v1954
      %2243 = vmatprep.subr.mxu0 %v1963
      %2244 = vmatpush1.msra.mxu0 %v1962
      %2245 = vmatprep.subr.mxu0 %v2004
      %2246 = vmatpush1.msra.mxu0 %v2001
      %2247 = vmatprep.subr.mxu0 0.0
      %2248 = vmatpush1.msra.mxu0 0.0
      %2249 = vmatprep.subr.mxu0 0.0
      %2250 = vmatpush1.msra.mxu0 0.0
      %2251 = vmatprep.subr.mxu0 0.0
      %2252 = vmatpush1.msra.mxu0 0.0
      %2253 = vmatprep.subr.mxu0 0.0
      %2254 = vmatpush1.msra.mxu0 0.0
      %2255 = vmatprep.subr.mxu0 0.0
      %2256 = vmatpush1.msra.mxu0 0.0
      %2257 = vmatprep.subr.mxu0 0.0
      %2258 = vmatpush1.msra.mxu0 0.0
      %2259 = vmatprep.subr.mxu0 0.0
      %2260 = vmatpush1.msra.mxu0 0.0
      %2261 = vmatprep.subr.mxu0 0.0
      %2262 = vmatpush1.msra.mxu0 0.0
      %2263 = vmatprep.subr.mxu0 0.0
      %2264 = vmatpush1.msra.mxu0 0.0
      %2265 = vmatprep.subr.mxu0 0.0
      %2266 = vmatpush1.msra.mxu0 0.0
      %2267 = vmatprep.subr.mxu0 0.0
      %2268 = vmatpush1.msra.mxu0 0.0
      %2269 = vmatprep.subr.mxu0 0.0
      %2270 = vmatpush1.msra.mxu0 0.0
      %2271 = vmatprep.subr.mxu0 0.0
      %2272 = vmatpush1.msra.mxu0 0.0
      %2273 = vmatprep.subr.mxu0 0.0
      %2274 = vmatpush1.msra.mxu0 0.0
      %2275 = vmatprep.subr.mxu0 0.0
      %2276 = vmatpush1.msra.mxu0 0.0
      %2277 = vmatprep.subr.mxu0 0.0
      %2278 = vmatpush1.msra.mxu0 0.0
      %2279 = vmatprep.subr.mxu0 0.0
      %2280 = vmatpush1.msra.mxu0 0.0
      %2281 = vmatprep.subr.mxu0 0.0
      %2282 = vmatpush1.msra.mxu0 0.0
      %2283 = vmatprep.mubr.f32.mxu0 0.0
      %2284 = vmatmul.mubr.f32.gmra.mrb[0].mxu0 %v1980
      %v2285 = vpop.f32.mrb[0].mxu0
      %v2286 = vadd.f32 %v1976, %v2285
      %v2287 = vpop.f32.mrb[0].mxu0
      %v2288 = vadd.f32 %v1976, %v2287
      %2289 = vdwg.mxu0
      %v2290 = vld [vmem:[%s266] sm:$0xff]
      %v2291 = vld [vmem:[%s266 + $0x8] sm:$0xff]
      %v2292 = vld [vmem:[%s266 + $0x10] sm:$0xff]
      %v2293 = vld [vmem:[%s266 + $0x18] sm:$0xff]
      %v2298 = vcombine.high %v2290, %v2290
      %v2299 = vcombine.high %v2291, %v2291
      %v2300 = vcombine.high %v2292, %v2292
      %v2301 = vcombine.high %v2293, %v2293
      %v2306 = vadd.f32 %v2073, %v2290
      %v2307 = vadd.f32 %v2075, %v2298
      %v2308 = vadd.f32 %v2144, %v2291
      %v2309 = vadd.f32 %v2146, %v2299
      %v2310 = vadd.f32 %v2215, %v2292
      %v2311 = vadd.f32 %v2217, %v2300
      %v2312 = vadd.f32 %v2286, %v2293
      %v2313 = vadd.f32 %v2288, %v2301
      %v2314 = vmul.f32 %v2306, %v317
      %v2315 = vmul.f32 %v2307, %v321
      %v2316 = vmul.f32 %v2308, %v325
      %v2317 = vmul.f32 %v2309, %v329
      %v2318 = vmul.f32 %v2310, %v333
      %v2319 = vmul.f32 %v2311, %v337
      %v2320 = vmul.f32 %v2312, %v341
      %v2321 = vmul.f32 %v2313, %v345
      %v2330 = vcombine.low %v2314, %v2315
      %v2331 = vcombine.low %v2316, %v2317
      %v2332 = vcombine.low %v2318, %v2319
      %v2333 = vcombine.low %v2320, %v2321
      %2338 = vst [vmem:[%s271] sm:$0xff] %v2330
      %2339 = vst [vmem:[%s271 + $0x8] sm:$0xff] %v2331
      %2340 = vst [vmem:[%s271 + $0x10] sm:$0xff] %v2332
      %2341 = vst.msk [vmem:[%s271 + $0x18] sm:$0xff] %vm376, %v2333
      %p2342 = scmp.lt.s32.totalorder %s17, 1
      %s2343 = scalar_select %p2342, %s17, 1
      %s2344 = smul.addr %s2343, 8
      %s2345 = smul.addr %s2344, 4
      %s2346 = scalar_lea.vmem %s6, %s2345
      // Predicated region
      $region45: #{residual_block.7} parent=43 // pred_check
        %p2347 = pneg %p171
      $region46: #{residual_block.7} parent=43 // pred_check_branch
        %2349 = sbr.rel (%p2347) target = $region48
      $region47: #{residual_block.7} parent=43 // pred_region
        _
      $region48: #{residual_block.7} parent=43 // pred_fallthru
        _
    $region44: #{residual_block.7} parent=5 // pred_fallthru
      _
    %p2350 = scmp.le.s32.totalorder 2, %s12
    // Predicated region
    $region49: #{residual_block.7} parent=5 // pred_check
      %p2351 = pneg %p2350
    $region50: #{residual_block.7} parent=5 // pred_check_branch
      %2353 = sbr.rel (%p2351) target = $region52
    $region51: #{residual_block.7} parent=5 // pred_region
      %s2354 = ssub.s32 %s12, 2
      // Predicated region
      $region53: #{residual_block.7} parent=51 // pred_check
        %p2355 = pneg %p177
      $region54: #{residual_block.7} parent=51 // pred_check_branch
        %2357 = sbr.rel (%p2355) target = $region56
      $region55: #{residual_block.7} parent=51 // pred_region
        %p2358 = scmp.lt.s32.totalorder %s18, 1
        %s2359 = scalar_select %p2358, %s18, 1
        %s2360 = smul.addr %s2359, 8
        %s2361 = smul.addr %s2360, 4
        %s2362 = scalar_lea.vmem %s6, %s2361
      $region56: #{residual_block.7} parent=51 // pred_fallthru
        _
    $region52: #{residual_block.7} parent=5 // pred_fallthru
      _
  $region6: #{residual_block.7} parent=0 // loop_footer
    %s16 = sadd.s32 1, %s12
  $region7: #{residual_block.7} parent=0 // loop_footer_branch
    %11 = sbr.rel target = $region3
  $region8: #{residual_block.7} parent=0 // loop_exit
    _

</llo_original>
